<compile_context>
chip_gen: v7x
topology: tpu7x:2x2x1
jax: 0.10.0
libtpu: 0.0.40
codegen_flags: <defaults>
</compile_context>

<pallas_src>
import functools
import math

import jax
import jax.numpy as jnp
from jax.experimental import pallas as pl
from jax.experimental.pallas import tpu as pltpu

NEG_SLOPE = 0.01                       # F.leaky_relu default
LANE = 128                             # pad every feature dim to a multiple of this
AGG_DTYPE = jnp.bfloat16               # MXU input dtype for A / xW (f32 accumulation)
A_STORE_DTYPE = jnp.int8               # HBM storage dtype for dense A (counts <= 127)
VMEM_LIMIT = 48 * 1024 * 1024          # safe on v7x (64 MiB phys); ~100 MiB ok on v5e/v6e
XW_RESIDENT_MAX_BYTES = 8 * 1024 * 1024  # keep xW fully VMEM-resident below this size


def _leaky_relu(v):
    return jnp.where(v >= 0, v, NEG_SLOPE * v)


def _round_up(x, m):
    return ((x + m - 1) // m) * m


def _pad2d(x, rows, cols):
    return jnp.pad(x, ((0, rows - x.shape[0]), (0, cols - x.shape[1])))


# ----------------------------------------------------------------------------
# Kernel 1: row-tiled linear  y = x @ W_t + b   (used for self.MLP)
# ----------------------------------------------------------------------------
def _linear_kernel(x_ref, w_ref, b_ref, o_ref):
    o_ref[...] = (
        jnp.dot(x_ref[...], w_ref[...], preferred_element_type=jnp.float32)
        + b_ref[...]
    )


def linear_tiled(x, w_t, b_row, *, row_tile):
    n, d_in = x.shape
    d_out = w_t.shape[1]
    assert n % row_tile == 0
    return pl.pallas_call(
        _linear_kernel,
        out_shape=jax.ShapeDtypeStruct((n, d_out), jnp.float32),
        grid_spec=pltpu.PrefetchScalarGridSpec(
            num_scalar_prefetch=0,
            grid=(n // row_tile,),
            in_specs=[
                pl.BlockSpec((row_tile, d_in), lambda i: (i, 0)),
                pl.BlockSpec((d_in, d_out), lambda i: (0, 0)),
                pl.BlockSpec((1, d_out), lambda i: (0, 0)),
            ],
            out_specs=pl.BlockSpec((row_tile, d_out), lambda i: (i, 0)),
        ),
        compiler_params=pltpu.CompilerParams(
            dimension_semantics=("parallel",),
            vmem_limit_bytes=VMEM_LIMIT,
        ),
    )(x, w_t, b_row)


# ----------------------------------------------------------------------------
# Kernel 2: per-layer x-side prologue (fused conv-weight + linear_layer matmul,
#           optional fused F.normalize).  Emits:
#             xw       = x @ Wc               (bf16, fed to the A aggregation)
#             xhat_pre = x @ Wl^T + bl        (f32, consumed in the epilogue)
# ----------------------------------------------------------------------------
def _xside_kernel(x_ref, w_ref, b_ref, xw_ref, xh_ref, *, normalize):
    x = x_ref[...]
    if normalize:  # F.normalize(dim=1, eps=1e-12), fused (XLU reduce hides under DMA)
        nrm = jnp.sqrt(jnp.sum(x * x, axis=1, keepdims=True))
        x = x / jnp.maximum(nrm, 1e-12)
    fused = jnp.dot(x, w_ref[...], preferred_element_type=jnp.float32) + b_ref[...]
    d_conv = xw_ref.shape[1]
    xw_ref[...] = fused[:, :d_conv].astype(xw_ref.dtype)
    xh_ref[...] = fused[:, d_conv:]


def xside(x, w_fused, b_fused, d_conv, d_out, *, normalize, row_tile):
    n, d_in = x.shape
    d2 = w_fused.shape[1]
    assert n % row_tile == 0
    kernel = functools.partial(_xside_kernel, normalize=normalize)
    return pl.pallas_call(
        kernel,
        out_shape=(
            jax.ShapeDtypeStruct((n, d_conv), AGG_DTYPE),
            jax.ShapeDtypeStruct((n, d_out), jnp.float32),
        ),
        grid_spec=pltpu.PrefetchScalarGridSpec(
            num_scalar_prefetch=0,
            grid=(n // row_tile,),
            in_specs=[
                pl.BlockSpec((row_tile, d_in), lambda i: (i, 0)),
                pl.BlockSpec((d_in, d2), lambda i: (0, 0)),
                pl.BlockSpec((1, d2), lambda i: (0, 0)),
            ],
            out_specs=(
                pl.BlockSpec((row_tile, d_conv), lambda i: (i, 0)),
                pl.BlockSpec((row_tile, d_out), lambda i: (i, 0)),
            ),
        ),
        compiler_params=pltpu.CompilerParams(
            dimension_semantics=("parallel",),
            vmem_limit_bytes=VMEM_LIMIT,
        ),
    )(x, w_fused, b_fused)


# ----------------------------------------------------------------------------
# Kernel 3: tiled message passing + g-layer epilogue
#   acc  += A[i-tile, k-tile] @ xw[k-tile]      (reduction over k; A int8->bf16 upcast
#                                                in-kernel, bf16 MXU, f32 accumulation)
#   at k==last:
#     h     = leaky_relu(acc)
#     x_hat = leaky_relu(xhat_pre[i-tile]) + id[i-tile]
#     out   = leaky_relu(h @ Wg^T + bg + x_hat)
# ----------------------------------------------------------------------------
def _agg_kernel(a_ref, xw_ref, xh_ref, id_ref, wg_ref, bg_ref, o_ref, acc_ref,
                *, k_tile, xw_resident):
    k = pl.program_id(1)

    @pl.when(k == 0)
    def _():
        acc_ref[...] = jnp.zeros_like(acc_ref)

    # int8 -> bf16 upcast right before the dot: halves HBM traffic of the dominant
    # A stream; the VPU cast hides under the A-tile DMA.
    a = a_ref[...].astype(AGG_DTYPE)
    if xw_resident:
        start = pl.multiple_of(k * k_tile, k_tile)
        xw = xw_ref[pl.ds(start, k_tile), :]
    else:
        xw = xw_ref[...]
    acc_ref[...] += jnp.dot(a, xw, preferred_element_type=jnp.float32)

    @pl.when(k == pl.num_programs(1) - 1)
    def _():
        h = _leaky_relu(acc_ref[...])
        x_hat = _leaky_relu(xh_ref[...]) + id_ref[...]
        g = jnp.dot(h, wg_ref[...], preferred_element_type=jnp.float32) + bg_ref[...]
        o_ref[...] = _leaky_relu(g + x_hat)


def gcn_aggregate(a, xw, xh, id_emb, wg_t, bg_row, *, row_tile, k_tile):
    n = a.shape[0]
    d_h = xw.shape[1]
    d_out = wg_t.shape[1]
    assert n % row_tile == 0 and n % k_tile == 0

    # Keep xW fully VMEM-resident when small -> no xW re-stream across row tiles.
    xw_bytes = n * d_h * jnp.dtype(xw.dtype).itemsize
    xw_resident = xw_bytes <= XW_RESIDENT_MAX_BYTES
    if xw_resident:
        xw_spec = pl.BlockSpec((n, d_h), lambda i, k: (0, 0))
    else:
        xw_spec = pl.BlockSpec((k_tile, d_h), lambda i, k: (k, 0))

    kernel = functools.partial(_agg_kernel, k_tile=k_tile, xw_resident=xw_resident)
    return pl.pallas_call(
        kernel,
        out_shape=jax.ShapeDtypeStruct((n, d_out), jnp.float32),
        grid_spec=pltpu.PrefetchScalarGridSpec(
            num_scalar_prefetch=0,
            grid=(n // row_tile, n // k_tile),          # reduction axis last
            in_specs=[
                pl.BlockSpec((row_tile, k_tile), lambda i, k: (i, k)),   # A tile (int8)
                xw_spec,                                                 # xW
                pl.BlockSpec((row_tile, d_out), lambda i, k: (i, 0)),    # xhat_pre
                pl.BlockSpec((row_tile, d_out), lambda i, k: (i, 0)),    # id_embedding
                pl.BlockSpec((d_h, d_out), lambda i, k: (0, 0)),         # Wg^T
                pl.BlockSpec((1, d_out), lambda i, k: (0, 0)),           # bg
            ],
            out_specs=pl.BlockSpec((row_tile, d_out), lambda i, k: (i, 0)),
            scratch_shapes=[pltpu.VMEM((row_tile, d_h), jnp.float32)],
        ),
        compiler_params=pltpu.CompilerParams(
            dimension_semantics=("parallel", "arbitrary"),
            vmem_limit_bytes=VMEM_LIMIT,
        ),
    )(a, xw, xh, id_emb, wg_t, bg_row)


def gcn_layer(x, a_agg, lp, id_emb_p, *, normalize, row_tile, k_tile):
    # Shapes of traced arrays are concrete under jit -> safe for out_shape.
    d_conv = lp["wg_t"].shape[0]
    d_out = lp["wg_t"].shape[1]
    xw, xh = xside(x, lp["w_fused"], lp["b_fused"], d_conv, d_out,
                   normalize=normalize, row_tile=row_tile)
    return gcn_aggregate(a_agg, xw, xh, id_emb_p, lp["wg_t"], lp["bg"],
                         row_tile=row_tile, k_tile=k_tile)


# ----------------------------------------------------------------------------
# Parameters: raw torch-convention params + one-time prep (pad / transpose / fuse)
# ----------------------------------------------------------------------------
def _xavier(key, shape):
    fan_in, fan_out = shape[-1], shape[0]
    std = (2.0 / (fan_in + fan_out)) ** 0.5
    return std * jax.random.normal(key, shape, dtype=jnp.float32)


def make_params(key, num_user, dim_feat, dim_latent, dim_id):
    ks = jax.random.split(key, 16)
    p = {}
    p["preference"] = _xavier(ks[0], (num_user, dim_latent))
    p["mlp_w"] = _xavier(ks[1], (dim_latent, dim_feat))            # nn.Linear [out,in]
    p["mlp_b"] = 0.01 * jax.random.normal(ks[2], (dim_latent,), jnp.float32)
    p["conv1_w"] = _xavier(ks[3], (dim_latent, dim_latent))        # BaseModel: x @ W
    p["lin1_w"] = _xavier(ks[4], (dim_id, dim_latent))
    p["lin1_b"] = 0.01 * jax.random.normal(ks[5], (dim_id,), jnp.float32)
    p["g1_w"] = _xavier(ks[6], (dim_id, dim_latent))
    p["g1_b"] = 0.01 * jax.random.normal(ks[7], (dim_id,), jnp.float32)
    p["conv2_w"] = _xavier(ks[8], (dim_id, dim_id))
    p["lin2_w"] = _xavier(ks[9], (dim_id, dim_id))
    p["lin2_b"] = 0.01 * jax.random.normal(ks[10], (dim_id,), jnp.float32)
    p["g2_w"] = _xavier(ks[11], (dim_id, dim_id))
    p["g2_b"] = 0.01 * jax.random.normal(ks[12], (dim_id,), jnp.float32)
    return p


def prepare_params(p, num_user, dim_feat, dim_latent, dim_id):
    """One-time: transpose to [in,out], zero-pad to 128 lanes, fuse Wc with Wl^T."""
    dfp = _round_up(dim_feat, LANE)
    dlp = _round_up(dim_latent, LANE)
    dip = _round_up(dim_id, LANE)

    def pad_b(b, cols):
        return jnp.pad(b, (0, cols - b.shape[0])).reshape(1, cols)

    def layer_pack(wc, wl, bl, wg, bg, d_in_p, d_conv_p, d_out_p):
        w_conv = _pad2d(wc, d_in_p, d_conv_p)          # [in, conv_out]
        w_lin = _pad2d(wl.T, d_in_p, d_out_p)          # [in, out]
        return {
            "w_fused": jnp.concatenate([w_conv, w_lin], axis=1),
            "b_fused": jnp.concatenate(
                [jnp.zeros((1, d_conv_p), jnp.float32), pad_b(bl, d_out_p)], axis=1),
            "wg_t": _pad2d(wg.T, d_conv_p, d_out_p),   # shape carries (d_conv, d_out)
            "bg": pad_b(bg, d_out_p),
        }

    pp = {
        "preference": _pad2d(p["preference"], num_user, dlp),
        "mlp_wt": _pad2d(p["mlp_w"].T, dfp, dlp),
        "mlp_b": pad_b(p["mlp_b"], dlp),
        "layer1": layer_pack(p["conv1_w"], p["lin1_w"], p["lin1_b"],
                             p["g1_w"], p["g1_b"], dlp, dlp, dip),
        "layer2": layer_pack(p["conv2_w"], p["lin2_w"], p["lin2_b"],
                             p["g2_w"], p["g2_b"], dip, dip, dip),
    }
    return pp


# ----------------------------------------------------------------------------
# Full forward (num_layer=2, has_id=True, concate=False, dim_latent set)
# ----------------------------------------------------------------------------
@functools.partial(jax.jit,
                   static_argnames=("num_user", "num_item", "row_tile", "k_tile"))
def gcn_forward(features_p, id_emb_p, a_agg, pp, *, num_user, num_item,
                row_tile, k_tile):
    n_pad = a_agg.shape[0]
    temp = linear_tiled(features_p, pp["mlp_wt"], pp["mlp_b"], row_tile=row_tile)
    # TODO(synk): write `temp` straight into a pre-padded x buffer (offset out_spec +
    # input_output_aliases) to drop this XLA concat/pad round trip.
    x = jnp.concatenate([pp["preference"], temp[:num_item]], axis=0)
    x = jnp.pad(x, ((0, n_pad - x.shape[0]), (0, 0)))
    # layer 1 (F.normalize fused into the x-side prologue kernel)
    x = gcn_layer(x, a_agg, pp["layer1"], id_emb_p, normalize=True,
                  row_tile=row_tile, k_tile=k_tile)
    # layer 2
    x = gcn_layer(x, a_agg, pp["layer2"], id_emb_p, normalize=False,
                  row_tile=row_tile, k_tile=k_tile)
    return x


# Pure-JAX reference (same math; mirrors the bf16 cast of the aggregation operands
# so it checks kernel mechanics — set AGG_DTYPE=jnp.float32 for a pure-f32 check).
def gcn_forward_ref(features, id_embedding, a_dense, p):
    hp = jax.lax.Precision.HIGHEST
    temp = jnp.dot(features, p["mlp_w"].T, precision=hp) + p["mlp_b"]
    x = jnp.concatenate([p["preference"], temp], axis=0)
    x = x / jnp.maximum(jnp.linalg.norm(x, axis=1, keepdims=True), 1e-12)
    a_c = a_dense.astype(A_STORE_DTYPE).astype(AGG_DTYPE).astype(jnp.float32)

    def layer(x, wc, wl, bl, wg, bg):
        xw = jnp.dot(x, wc, precision=hp).astype(AGG_DTYPE).astype(jnp.float32)
        h = _leaky_relu(jnp.dot(a_c, xw, precision=hp))
        x_hat = _leaky_relu(jnp.dot(x, wl.T, precision=hp) + bl) + id_embedding
        return _leaky_relu(jnp.dot(h, wg.T, precision=hp) + bg + x_hat)

    x = layer(x, p["conv1_w"], p["lin1_w"], p["lin1_b"], p["g1_w"], p["g1_b"])
    x = layer(x, p["conv2_w"], p["lin2_w"], p["lin2_b"], p["g2_w"], p["g2_b"])
    return x


if __name__ == "__main__":
    num_user, num_item = 8, 8
    N = num_user + num_item
    dim_feat, dim_latent, dim_id = 64, 32, 32

    # Small-demo tiles so the aggregation grid is 2 row-tiles x 2 k-tiles (exercises the
    # accumulator init / epilogue paths).  Production sizing: row_tile >= 1024 and
    # k_tile 1024-2048 on v5e/v6e (raise VMEM_LIMIT toward ~100 MiB); cap around
    # row_tile=1024 / k_tile=2048 on v7x (64 MiB VMEM) and keep an even number of row
    # tiles so both v7x TensorCores get work along the "parallel" axis.
    ROW_TILE, K_TILE = 128, 128
    n_pad = max(_round_up(N, math.lcm(ROW_TILE, K_TILE)), 2 * ROW_TILE, 2 * K_TILE)

    key = jax.random.PRNGKey(0)
    k_par, k_feat, k_id = jax.random.split(key, 3)
    params = make_params(k_par, num_user, dim_feat, dim_latent, dim_id)
    pp = prepare_params(params, num_user, dim_feat, dim_latent, dim_id)

    features = jax.random.normal(k_feat, (num_item, dim_feat), jnp.float32)
    id_embedding = jax.random.normal(k_id, (N, dim_id), jnp.float32)

    # Deterministic bipartite user-item edge_index [2, E] (both directions).
    users = jnp.arange(num_user, dtype=jnp.int32)
    items = num_user + (jnp.arange(num_user, dtype=jnp.int32) % num_item)
    src = jnp.concatenate([users, items, users, (num_user + (users + 3) % num_item)])
    dst = jnp.concatenate([items, users, (num_user + (users + 3) % num_item), users])
    edge_index = jnp.stack([src, dst])

    # Dense adjacency for aggr='add': A[i, j] = #edges j -> i.
    A = jnp.zeros((N, N), jnp.float32).at[edge_index[1], edge_index[0]].add(1.0)
    assert float(jnp.max(A)) <= 127.0  # int8 storage stays exact

    # One-time padding / dtype prep of graph-level inputs (A stored as int8 in HBM).
    dfp = _round_up(dim_feat, LANE)
    dip = _round_up(dim_id, LANE)
    features_p = _pad2d(features, _round_up(num_item, ROW_TILE), dfp)
    id_emb_p = _pad2d(id_embedding, n_pad, dip)
    a_agg = _pad2d(A, n_pad, n_pad).astype(A_STORE_DTYPE)

    out_p = gcn_forward(features_p, id_emb_p, a_agg, pp,
                        num_user=num_user, num_item=num_item,
                        row_tile=ROW_TILE, k_tile=K_TILE)
    out_p = jax.block_until_ready(out_p)
    out = out_p[:N, :dim_id]

    ref = gcn_forward_ref(features, id_embedding, A, params)
    assert out.shape == (N, dim_id)
    assert jnp.allclose(out, ref, rtol=1e-2, atol=1e-2), float(
        jnp.max(jnp.abs(out - ref)))

    print("KERNEL_OK")
</pallas_src>

<mosaic_0001>
module attributes {stable_mosaic.version = 11 : i64} {
  func.func @_linear_kernel(%arg0: i32, %arg1: memref<128x128xf32, #tpu.memory_space<vmem>>, %arg2: memref<128x128xf32, #tpu.memory_space<vmem>>, %arg3: memref<1x128xf32, #tpu.memory_space<vmem>>, %arg4: memref<128x128xf32, #tpu.memory_space<vmem>>) attributes {dimension_semantics = [#tpu.dimension_semantics<parallel>], iteration_bounds = array<i64: 1>, scalar_prefetch = 0 : i64, scratch_operands = 0 : i64, tpu.core_type = #tpu.core_type<tc>, window_params = [{transform_indices = @transform_0, window_bounds = array<i64: 128, 128>}, {pipeline_mode = #tpu.pipeline_mode<synchronous>, transform_indices = @transform_1, window_bounds = array<i64: 128, 128>}, {pipeline_mode = #tpu.pipeline_mode<synchronous>, transform_indices = @transform_2, window_bounds = array<i64: 1, 128>}, {transform_indices = @transform_3, window_bounds = array<i64: 128, 128>}]} {
    %c0 = arith.constant 0 : index
    %c0_0 = arith.constant 0 : index
    %0 = vector.load %arg1[%c0, %c0_0] : memref<128x128xf32, #tpu.memory_space<vmem>>, vector<128x128xf32>
    %c0_1 = arith.constant 0 : index
    %c0_2 = arith.constant 0 : index
    %1 = vector.load %arg2[%c0_1, %c0_2] : memref<128x128xf32, #tpu.memory_space<vmem>>, vector<128x128xf32>
    %cst = arith.constant dense<0.000000e+00> : vector<128x128xf32>
    %2 = tpu.matmul %0, %1, %cst {dimension_numbers = #tpu.dot_dimension_numbers<[1], [0], [0], [1], [0, 0, 1, 1], [], []>} : vector<128x128xf32>, vector<128x128xf32>, vector<128x128xf32> -> vector<128x128xf32>
    %c0_3 = arith.constant 0 : index
    %c0_4 = arith.constant 0 : index
    %3 = vector.load %arg3[%c0_3, %c0_4] : memref<1x128xf32, #tpu.memory_space<vmem>>, vector<1x128xf32>
    %4 = vector.broadcast %3 : vector<1x128xf32> to vector<128x128xf32>
    %5 = arith.addf %2, %4 : vector<128x128xf32>
    %c0_5 = arith.constant 0 : index
    %c0_6 = arith.constant 0 : index
    %6 = vector.load %arg4[%c0_5, %c0_6] : memref<128x128xf32, #tpu.memory_space<vmem>>, vector<128x128xf32>
    tpu.vector_store %arg4[%c0_5, %c0_6], %5 {strides = array<i32>} : memref<128x128xf32, #tpu.memory_space<vmem>>, vector<128x128xf32>,
    return
  }
  func.func @transform_0(%arg0: i32) -> (i32, i32) {
    %c0_i32 = arith.constant 0 : i32
    %c0_i32_0 = arith.constant 0 : i32
    return %arg0, %c0_i32 : i32, i32
  }
  func.func @transform_1(%arg0: i32) -> (i32, i32) {
    %c0_i32 = arith.constant 0 : i32
    %c0_i32_0 = arith.constant 0 : i32
    %c0_i32_1 = arith.constant 0 : i32
    return %c0_i32, %c0_i32_0 : i32, i32
  }
  func.func @transform_2(%arg0: i32) -> (i32, i32) {
    %c0_i32 = arith.constant 0 : i32
    %c0_i32_0 = arith.constant 0 : i32
    %c0_i32_1 = arith.constant 0 : i32
    return %c0_i32, %c0_i32_0 : i32, i32
  }
  func.func @transform_3(%arg0: i32) -> (i32, i32) {
    %c0_i32 = arith.constant 0 : i32
    %c0_i32_0 = arith.constant 0 : i32
    return %arg0, %c0_i32 : i32, i32
  }
}

module attributes {stable_mosaic.version = 11 : i64} {
  func.func @_xside_kernel(%arg0: i32, %arg1: memref<128x128xf32, #tpu.memory_space<vmem>>, %arg2: memref<128x256xf32, #tpu.memory_space<vmem>>, %arg3: memref<1x256xf32, #tpu.memory_space<vmem>>, %arg4: memref<128x128xbf16, #tpu.memory_space<vmem>>, %arg5: memref<128x128xf32, #tpu.memory_space<vmem>>) attributes {dimension_semantics = [#tpu.dimension_semantics<parallel>], iteration_bounds = array<i64: 2>, scalar_prefetch = 0 : i64, scratch_operands = 0 : i64, tpu.core_type = #tpu.core_type<tc>, window_params = [{transform_indices = @transform_0, window_bounds = array<i64: 128, 128>}, {pipeline_mode = #tpu.pipeline_mode<synchronous>, transform_indices = @transform_1, window_bounds = array<i64: 128, 256>}, {pipeline_mode = #tpu.pipeline_mode<synchronous>, transform_indices = @transform_2, window_bounds = array<i64: 1, 256>}, {transform_indices = @transform_3, window_bounds = array<i64: 128, 128>}, {transform_indices = @transform_4, window_bounds = array<i64: 128, 128>}]} {
    %c0 = arith.constant 0 : index
    %c0_0 = arith.constant 0 : index
    %0 = vector.load %arg1[%c0, %c0_0] : memref<128x128xf32, #tpu.memory_space<vmem>>, vector<128x128xf32>
    %1 = arith.mulf %0, %0 : vector<128x128xf32>
    %cst = arith.constant dense<0.000000e+00> : vector<128xf32>
    %2 = vector.multi_reduction <add>, %1, %cst [1] : vector<128x128xf32> to vector<128xf32>
    %3 = vector.shape_cast %2 : vector<128xf32> to vector<128x1xf32>
    %4 = math.sqrt %3 : vector<128x1xf32>
    %cst_1 = arith.constant 9.99999996E-13 : f32
    %5 = vector.broadcast %cst_1 : f32 to vector<128x1xf32>
    %6 = arith.maximumf %4, %5 : vector<128x1xf32>
    %7 = vector.broadcast %6 : vector<128x1xf32> to vector<128x128xf32>
    %8 = arith.divf %0, %7 : vector<128x128xf32>
    %c0_2 = arith.constant 0 : index
    %c0_3 = arith.constant 0 : index
    %9 = vector.load %arg2[%c0_2, %c0_3] : memref<128x256xf32, #tpu.memory_space<vmem>>, vector<128x256xf32>
    %cst_4 = arith.constant dense<0.000000e+00> : vector<128x256xf32>
    %10 = tpu.matmul %8, %9, %cst_4 {dimension_numbers = #tpu.dot_dimension_numbers<[1], [0], [0], [1], [0, 0, 1, 1], [], []>} : vector<128x128xf32>, vector<128x256xf32>, vector<128x256xf32> -> vector<128x256xf32>
    %c0_5 = arith.constant 0 : index
    %c0_6 = arith.constant 0 : index
    %11 = vector.load %arg3[%c0_5, %c0_6] : memref<1x256xf32, #tpu.memory_space<vmem>>, vector<1x256xf32>
    %12 = vector.broadcast %11 : vector<1x256xf32> to vector<128x256xf32>
    %13 = arith.addf %10, %12 : vector<128x256xf32>
    %14 = vector.extract_strided_slice %13 {offsets = [0, 0], sizes = [128, 128], strides = [1, 1]} : vector<128x256xf32> to vector<128x128xf32>
    %15 = arith.truncf %14 : vector<128x128xf32> to vector<128x128xbf16>
    %c0_7 = arith.constant 0 : index
    %c0_8 = arith.constant 0 : index
    %16 = vector.load %arg4[%c0_7, %c0_8] : memref<128x128xbf16, #tpu.memory_space<vmem>>, vector<128x128xbf16>
    tpu.vector_store %arg4[%c0_7, %c0_8], %15 {strides = array<i32>} : memref<128x128xbf16, #tpu.memory_space<vmem>>, vector<128x128xbf16>,
    %17 = vector.extract_strided_slice %13 {offsets = [0, 128], sizes = [128, 128], strides = [1, 1]} : vector<128x256xf32> to vector<128x128xf32>
    %c0_9 = arith.constant 0 : index
    %c0_10 = arith.constant 0 : index
    %18 = vector.load %arg5[%c0_9, %c0_10] : memref<128x128xf32, #tpu.memory_space<vmem>>, vector<128x128xf32>
    tpu.vector_store %arg5[%c0_9, %c0_10], %17 {strides = array<i32>} : memref<128x128xf32, #tpu.memory_space<vmem>>, vector<128x128xf32>,
    return
  }
  func.func @transform_0(%arg0: i32) -> (i32, i32) {
    %c0_i32 = arith.constant 0 : i32
    %c0_i32_0 = arith.constant 0 : i32
    return %arg0, %c0_i32 : i32, i32
  }
  func.func @transform_1(%arg0: i32) -> (i32, i32) {
    %c0_i32 = arith.constant 0 : i32
    %c0_i32_0 = arith.constant 0 : i32
    %c0_i32_1 = arith.constant 0 : i32
    return %c0_i32, %c0_i32_0 : i32, i32
  }
  func.func @transform_2(%arg0: i32) -> (i32, i32) {
    %c0_i32 = arith.constant 0 : i32
    %c0_i32_0 = arith.constant 0 : i32
    %c0_i32_1 = arith.constant 0 : i32
    return %c0_i32, %c0_i32_0 : i32, i32
  }
  func.func @transform_3(%arg0: i32) -> (i32, i32) {
    %c0_i32 = arith.constant 0 : i32
    %c0_i32_0 = arith.constant 0 : i32
    return %arg0, %c0_i32 : i32, i32
  }
  func.func @transform_4(%arg0: i32) -> (i32, i32) {
    %c0_i32 = arith.constant 0 : i32
    %c0_i32_0 = arith.constant 0 : i32
    return %arg0, %c0_i32 : i32, i32
  }
}

module attributes {stable_mosaic.version = 11 : i64} {
  func.func @_xside_kernel(%arg0: i32, %arg1: memref<128x128xf32, #tpu.memory_space<vmem>>, %arg2: memref<128x256xf32, #tpu.memory_space<vmem>>, %arg3: memref<1x256xf32, #tpu.memory_space<vmem>>, %arg4: memref<128x128xbf16, #tpu.memory_space<vmem>>, %arg5: memref<128x128xf32, #tpu.memory_space<vmem>>) attributes {dimension_semantics = [#tpu.dimension_semantics<parallel>], iteration_bounds = array<i64: 2>, scalar_prefetch = 0 : i64, scratch_operands = 0 : i64, tpu.core_type = #tpu.core_type<tc>, window_params = [{transform_indices = @transform_0, window_bounds = array<i64: 128, 128>}, {pipeline_mode = #tpu.pipeline_mode<synchronous>, transform_indices = @transform_1, window_bounds = array<i64: 128, 256>}, {pipeline_mode = #tpu.pipeline_mode<synchronous>, transform_indices = @transform_2, window_bounds = array<i64: 1, 256>}, {transform_indices = @transform_3, window_bounds = array<i64: 128, 128>}, {transform_indices = @transform_4, window_bounds = array<i64: 128, 128>}]} {
    %c0 = arith.constant 0 : index
    %c0_0 = arith.constant 0 : index
    %0 = vector.load %arg1[%c0, %c0_0] : memref<128x128xf32, #tpu.memory_space<vmem>>, vector<128x128xf32>
    %c0_1 = arith.constant 0 : index
    %c0_2 = arith.constant 0 : index
    %1 = vector.load %arg2[%c0_1, %c0_2] : memref<128x256xf32, #tpu.memory_space<vmem>>, vector<128x256xf32>
    %cst = arith.constant dense<0.000000e+00> : vector<128x256xf32>
    %2 = tpu.matmul %0, %1, %cst {dimension_numbers = #tpu.dot_dimension_numbers<[1], [0], [0], [1], [0, 0, 1, 1], [], []>} : vector<128x128xf32>, vector<128x256xf32>, vector<128x256xf32> -> vector<128x256xf32>
    %c0_3 = arith.constant 0 : index
    %c0_4 = arith.constant 0 : index
    %3 = vector.load %arg3[%c0_3, %c0_4] : memref<1x256xf32, #tpu.memory_space<vmem>>, vector<1x256xf32>
    %4 = vector.broadcast %3 : vector<1x256xf32> to vector<128x256xf32>
    %5 = arith.addf %2, %4 : vector<128x256xf32>
    %6 = vector.extract_strided_slice %5 {offsets = [0, 0], sizes = [128, 128], strides = [1, 1]} : vector<128x256xf32> to vector<128x128xf32>
    %7 = arith.truncf %6 : vector<128x128xf32> to vector<128x128xbf16>
    %c0_5 = arith.constant 0 : index
    %c0_6 = arith.constant 0 : index
    %8 = vector.load %arg4[%c0_5, %c0_6] : memref<128x128xbf16, #tpu.memory_space<vmem>>, vector<128x128xbf16>
    tpu.vector_store %arg4[%c0_5, %c0_6], %7 {strides = array<i32>} : memref<128x128xbf16, #tpu.memory_space<vmem>>, vector<128x128xbf16>,
    %9 = vector.extract_strided_slice %5 {offsets = [0, 128], sizes = [128, 128], strides = [1, 1]} : vector<128x256xf32> to vector<128x128xf32>
    %c0_7 = arith.constant 0 : index
    %c0_8 = arith.constant 0 : index
    %10 = vector.load %arg5[%c0_7, %c0_8] : memref<128x128xf32, #tpu.memory_space<vmem>>, vector<128x128xf32>
    tpu.vector_store %arg5[%c0_7, %c0_8], %9 {strides = array<i32>} : memref<128x128xf32, #tpu.memory_space<vmem>>, vector<128x128xf32>,
    return
  }
  func.func @transform_0(%arg0: i32) -> (i32, i32) {
    %c0_i32 = arith.constant 0 : i32
    %c0_i32_0 = arith.constant 0 : i32
    return %arg0, %c0_i32 : i32, i32
  }
  func.func @transform_1(%arg0: i32) -> (i32, i32) {
    %c0_i32 = arith.constant 0 : i32
    %c0_i32_0 = arith.constant 0 : i32
    %c0_i32_1 = arith.constant 0 : i32
    return %c0_i32, %c0_i32_0 : i32, i32
  }
  func.func @transform_2(%arg0: i32) -> (i32, i32) {
    %c0_i32 = arith.constant 0 : i32
    %c0_i32_0 = arith.constant 0 : i32
    %c0_i32_1 = arith.constant 0 : i32
    return %c0_i32, %c0_i32_0 : i32, i32
  }
  func.func @transform_3(%arg0: i32) -> (i32, i32) {
    %c0_i32 = arith.constant 0 : i32
    %c0_i32_0 = arith.constant 0 : i32
    return %arg0, %c0_i32 : i32, i32
  }
  func.func @transform_4(%arg0: i32) -> (i32, i32) {
    %c0_i32 = arith.constant 0 : i32
    %c0_i32_0 = arith.constant 0 : i32
    return %arg0, %c0_i32 : i32, i32
  }
}

module attributes {stable_mosaic.version = 11 : i64} {
  func.func @_agg_kernel(%arg0: i32, %arg1: i32, %arg2: memref<128x128xi8, #tpu.memory_space<vmem>>, %arg3: memref<256x128xbf16, #tpu.memory_space<vmem>>, %arg4: memref<128x128xf32, #tpu.memory_space<vmem>>, %arg5: memref<128x128xf32, #tpu.memory_space<vmem>>, %arg6: memref<128x128xf32, #tpu.memory_space<vmem>>, %arg7: memref<1x128xf32, #tpu.memory_space<vmem>>, %arg8: memref<128x128xf32, #tpu.memory_space<vmem>>, %arg9: memref<128x128xf32, #tpu.memory_space<vmem>>) attributes {dimension_semantics = [#tpu.dimension_semantics<parallel>, #tpu.dimension_semantics<arbitrary>], iteration_bounds = array<i64: 2, 2>, scalar_prefetch = 0 : i64, scratch_operands = 1 : i64, tpu.core_type = #tpu.core_type<tc>, window_params = [{transform_indices = @transform_0, window_bounds = array<i64: 128, 128>}, {pipeline_mode = #tpu.pipeline_mode<synchronous>, transform_indices = @transform_1, window_bounds = array<i64: 256, 128>}, {transform_indices = @transform_2, window_bounds = array<i64: 128, 128>}, {transform_indices = @transform_3, window_bounds = array<i64: 128, 128>}, {pipeline_mode = #tpu.pipeline_mode<synchronous>, transform_indices = @transform_4, window_bounds = array<i64: 128, 128>}, {pipeline_mode = #tpu.pipeline_mode<synchronous>, transform_indices = @transform_5, window_bounds = array<i64: 1, 128>}, {transform_indices = @transform_6, window_bounds = array<i64: 128, 128>}]} {
    %c0_i32 = arith.constant 0 : i32
    %0 = arith.cmpi eq, %arg1, %c0_i32 : i32
    %1 = arith.extui %0 : i1 to i32
    %c0_i32_0 = arith.constant 0 : i32
    %2 = arith.cmpi ne, %1, %c0_i32_0 : i32
    scf.if %2 {
      %cst_8 = arith.constant 0.000000e+00 : f32
      %16 = vector.broadcast %cst_8 : f32 to vector<128x128xf32>
      %c0_9 = arith.constant 0 : index
      %c0_10 = arith.constant 0 : index
      %17 = vector.load %arg9[%c0_9, %c0_10] : memref<128x128xf32, #tpu.memory_space<vmem>>, vector<128x128xf32>
      tpu.vector_store %arg9[%c0_9, %c0_10], %16 {strides = array<i32>} : memref<128x128xf32, #tpu.memory_space<vmem>>, vector<128x128xf32>,
    } else {
    }
    %c0 = arith.constant 0 : index
    %c0_1 = arith.constant 0 : index
    %3 = vector.load %arg2[%c0, %c0_1] : memref<128x128xi8, #tpu.memory_space<vmem>>, vector<128x128xi8>
    %4 = arith.sitofp %3 : vector<128x128xi8> to vector<128x128xbf16>
    %c128_i32 = arith.constant 128 : i32
    %5 = arith.muli %arg1, %c128_i32 : i32
    %6 = tpu.assume_multiple %5, 128 : i32
    %7 = arith.index_cast %6 : i32 to index
    %c0_2 = arith.constant 0 : index
    %8 = vector.load %arg3[%7, %c0_2] : memref<256x128xbf16, #tpu.memory_space<vmem>>, vector<128x128xbf16>
    %c0_3 = arith.constant 0 : index
    %c0_4 = arith.constant 0 : index
    %9 = vector.load %arg9[%c0_3, %c0_4] : memref<128x128xf32, #tpu.memory_space<vmem>>, vector<128x128xf32>
    %cst = arith.constant dense<0.000000e+00> : vector<128x128xf32>
    %10 = tpu.matmul %4, %8, %cst {dimension_numbers = #tpu.dot_dimension_numbers<[1], [0], [0], [1], [0, 0, 1, 1], [], []>} : vector<128x128xbf16>, vector<128x128xbf16>, vector<128x128xf32> -> vector<128x128xf32>
    %11 = arith.addf %9, %10 : vector<128x128xf32>
    %c0_5 = arith.constant 0 : index
    %c0_6 = arith.constant 0 : index
    %12 = vector.load %arg9[%c0_5, %c0_6] : memref<128x128xf32, #tpu.memory_space<vmem>>, vector<128x128xf32>
    tpu.vector_store %arg9[%c0_5, %c0_6], %11 {strides = array<i32>} : memref<128x128xf32, #tpu.memory_space<vmem>>, vector<128x128xf32>,
    %c1_i32 = arith.constant 1 : i32
    %13 = arith.cmpi eq, %arg1, %c1_i32 : i32
    %14 = arith.extui %13 : i1 to i32
    %c0_i32_7 = arith.constant 0 : i32
    %15 = arith.cmpi ne, %14, %c0_i32_7 : i32
    scf.if %15 {
      %c0_8 = arith.constant 0 : index
      %c0_9 = arith.constant 0 : index
      %16 = vector.load %arg9[%c0_8, %c0_9] : memref<128x128xf32, #tpu.memory_space<vmem>>, vector<128x128xf32>
      %cst_10 = arith.constant 0.000000e+00 : f32
      %17 = vector.broadcast %cst_10 : f32 to vector<128x128xf32>
      %18 = arith.cmpf oge, %16, %17 : vector<128x128xf32>
      %cst_11 = arith.constant 0.00999999977 : f32
      %19 = vector.broadcast %cst_11 : f32 to vector<128x128xf32>
      %20 = arith.mulf %19, %16 : vector<128x128xf32>
      %21 = arith.select %18, %16, %20 : vector<128x128xi1>, vector<128x128xf32>
      %c0_12 = arith.constant 0 : index
      %c0_13 = arith.constant 0 : index
      %22 = vector.load %arg4[%c0_12, %c0_13] : memref<128x128xf32, #tpu.memory_space<vmem>>, vector<128x128xf32>
      %cst_14 = arith.constant 0.000000e+00 : f32
      %23 = vector.broadcast %cst_14 : f32 to vector<128x128xf32>
      %24 = arith.cmpf oge, %22, %23 : vector<128x128xf32>
      %cst_15 = arith.constant 0.00999999977 : f32
      %25 = vector.broadcast %cst_15 : f32 to vector<128x128xf32>
      %26 = arith.mulf %25, %22 : vector<128x128xf32>
      %27 = arith.select %24, %22, %26 : vector<128x128xi1>, vector<128x128xf32>
      %c0_16 = arith.constant 0 : index
      %c0_17 = arith.constant 0 : index
      %28 = vector.load %arg5[%c0_16, %c0_17] : memref<128x128xf32, #tpu.memory_space<vmem>>, vector<128x128xf32>
      %29 = arith.addf %27, %28 : vector<128x128xf32>
      %c0_18 = arith.constant 0 : index
      %c0_19 = arith.constant 0 : index
      %30 = vector.load %arg6[%c0_18, %c0_19] : memref<128x128xf32, #tpu.memory_space<vmem>>, vector<128x128xf32>
      %cst_20 = arith.constant dense<0.000000e+00> : vector<128x128xf32>
      %31 = tpu.matmul %21, %30, %cst_20 {dimension_numbers = #tpu.dot_dimension_numbers<[1], [0], [0], [1], [0, 0, 1, 1], [], []>} : vector<128x128xf32>, vector<128x128xf32>, vector<128x128xf32> -> vector<128x128xf32>
      %c0_21 = arith.constant 0 : index
      %c0_22 = arith.constant 0 : index
      %32 = vector.load %arg7[%c0_21, %c0_22] : memref<1x128xf32, #tpu.memory_space<vmem>>, vector<1x128xf32>
      %33 = vector.broadcast %32 : vector<1x128xf32> to vector<128x128xf32>
      %34 = arith.addf %31, %33 : vector<128x128xf32>
      %35 = arith.addf %34, %29 : vector<128x128xf32>
      %cst_23 = arith.constant 0.000000e+00 : f32
      %36 = vector.broadcast %cst_23 : f32 to vector<128x128xf32>
      %37 = arith.cmpf oge, %35, %36 : vector<128x128xf32>
      %cst_24 = arith.constant 0.00999999977 : f32
      %38 = vector.broadcast %cst_24 : f32 to vector<128x128xf32>
      %39 = arith.mulf %38, %35 : vector<128x128xf32>
      %40 = arith.select %37, %35, %39 : vector<128x128xi1>, vector<128x128xf32>
      %c0_25 = arith.constant 0 : index
      %c0_26 = arith.constant 0 : index
      %41 = vector.load %arg8[%c0_25, %c0_26] : memref<128x128xf32, #tpu.memory_space<vmem>>, vector<128x128xf32>
      tpu.vector_store %arg8[%c0_25, %c0_26], %40 {strides = array<i32>} : memref<128x128xf32, #tpu.memory_space<vmem>>, vector<128x128xf32>,
    } else {
    }
    return
  }
  func.func @transform_0(%arg0: i32, %arg1: i32) -> (i32, i32) {
    %c0_i32 = arith.constant 0 : i32
    return %arg0, %arg1 : i32, i32
  }
  func.func @transform_1(%arg0: i32, %arg1: i32) -> (i32, i32) {
    %c0_i32 = arith.constant 0 : i32
    %c0_i32_0 = arith.constant 0 : i32
    %c0_i32_1 = arith.constant 0 : i32
    return %c0_i32, %c0_i32_0 : i32, i32
  }
  func.func @transform_2(%arg0: i32, %arg1: i32) -> (i32, i32) {
    %c0_i32 = arith.constant 0 : i32
    %c0_i32_0 = arith.constant 0 : i32
    return %arg0, %c0_i32 : i32, i32
  }
  func.func @transform_3(%arg0: i32, %arg1: i32) -> (i32, i32) {
    %c0_i32 = arith.constant 0 : i32
    %c0_i32_0 = arith.constant 0 : i32
    return %arg0, %c0_i32 : i32, i32
  }
  func.func @transform_4(%arg0: i32, %arg1: i32) -> (i32, i32) {
    %c0_i32 = arith.constant 0 : i32
    %c0_i32_0 = arith.constant 0 : i32
    %c0_i32_1 = arith.constant 0 : i32
    return %c0_i32, %c0_i32_0 : i32, i32
  }
  func.func @transform_5(%arg0: i32, %arg1: i32) -> (i32, i32) {
    %c0_i32 = arith.constant 0 : i32
    %c0_i32_0 = arith.constant 0 : i32
    %c0_i32_1 = arith.constant 0 : i32
    return %c0_i32, %c0_i32_0 : i32, i32
  }
  func.func @transform_6(%arg0: i32, %arg1: i32) -> (i32, i32) {
    %c0_i32 = arith.constant 0 : i32
    %c0_i32_0 = arith.constant 0 : i32
    return %arg0, %c0_i32 : i32, i32
  }
}

module attributes {stable_mosaic.version = 11 : i64} {
  func.func @_agg_kernel(%arg0: i32, %arg1: i32, %arg2: memref<128x128xi8, #tpu.memory_space<vmem>>, %arg3: memref<256x128xbf16, #tpu.memory_space<vmem>>, %arg4: memref<128x128xf32, #tpu.memory_space<vmem>>, %arg5: memref<128x128xf32, #tpu.memory_space<vmem>>, %arg6: memref<128x128xf32, #tpu.memory_space<vmem>>, %arg7: memref<1x128xf32, #tpu.memory_space<vmem>>, %arg8: memref<128x128xf32, #tpu.memory_space<vmem>>, %arg9: memref<128x128xf32, #tpu.memory_space<vmem>>) attributes {dimension_semantics = [#tpu.dimension_semantics<parallel>, #tpu.dimension_semantics<arbitrary>], iteration_bounds = array<i64: 2, 2>, scalar_prefetch = 0 : i64, scratch_operands = 1 : i64, tpu.core_type = #tpu.core_type<tc>, window_params = [{transform_indices = @transform_0, window_bounds = array<i64: 128, 128>}, {pipeline_mode = #tpu.pipeline_mode<synchronous>, transform_indices = @transform_1, window_bounds = array<i64: 256, 128>}, {transform_indices = @transform_2, window_bounds = array<i64: 128, 128>}, {transform_indices = @transform_3, window_bounds = array<i64: 128, 128>}, {pipeline_mode = #tpu.pipeline_mode<synchronous>, transform_indices = @transform_4, window_bounds = array<i64: 128, 128>}, {pipeline_mode = #tpu.pipeline_mode<synchronous>, transform_indices = @transform_5, window_bounds = array<i64: 1, 128>}, {transform_indices = @transform_6, window_bounds = array<i64: 128, 128>}]} {
    %c0_i32 = arith.constant 0 : i32
    %0 = arith.cmpi eq, %arg1, %c0_i32 : i32
    %1 = arith.extui %0 : i1 to i32
    %c0_i32_0 = arith.constant 0 : i32
    %2 = arith.cmpi ne, %1, %c0_i32_0 : i32
    scf.if %2 {
      %cst_8 = arith.constant 0.000000e+00 : f32
      %16 = vector.broadcast %cst_8 : f32 to vector<128x128xf32>
      %c0_9 = arith.constant 0 : index
      %c0_10 = arith.constant 0 : index
      %17 = vector.load %arg9[%c0_9, %c0_10] : memref<128x128xf32, #tpu.memory_space<vmem>>, vector<128x128xf32>
      tpu.vector_store %arg9[%c0_9, %c0_10], %16 {strides = array<i32>} : memref<128x128xf32, #tpu.memory_space<vmem>>, vector<128x128xf32>,
    } else {
    }
    %c0 = arith.constant 0 : index
    %c0_1 = arith.constant 0 : index
    %3 = vector.load %arg2[%c0, %c0_1] : memref<128x128xi8, #tpu.memory_space<vmem>>, vector<128x128xi8>
    %4 = arith.sitofp %3 : vector<128x128xi8> to vector<128x128xbf16>
    %c128_i32 = arith.constant 128 : i32
    %5 = arith.muli %arg1, %c128_i32 : i32
    %6 = tpu.assume_multiple %5, 128 : i32
    %7 = arith.index_cast %6 : i32 to index
    %c0_2 = arith.constant 0 : index
    %8 = vector.load %arg3[%7, %c0_2] : memref<256x128xbf16, #tpu.memory_space<vmem>>, vector<128x128xbf16>
    %c0_3 = arith.constant 0 : index
    %c0_4 = arith.constant 0 : index
    %9 = vector.load %arg9[%c0_3, %c0_4] : memref<128x128xf32, #tpu.memory_space<vmem>>, vector<128x128xf32>
    %cst = arith.constant dense<0.000000e+00> : vector<128x128xf32>
    %10 = tpu.matmul %4, %8, %cst {dimension_numbers = #tpu.dot_dimension_numbers<[1], [0], [0], [1], [0, 0, 1, 1], [], []>} : vector<128x128xbf16>, vector<128x128xbf16>, vector<128x128xf32> -> vector<128x128xf32>
    %11 = arith.addf %9, %10 : vector<128x128xf32>
    %c0_5 = arith.constant 0 : index
    %c0_6 = arith.constant 0 : index
    %12 = vector.load %arg9[%c0_5, %c0_6] : memref<128x128xf32, #tpu.memory_space<vmem>>, vector<128x128xf32>
    tpu.vector_store %arg9[%c0_5, %c0_6], %11 {strides = array<i32>} : memref<128x128xf32, #tpu.memory_space<vmem>>, vector<128x128xf32>,
    %c1_i32 = arith.constant 1 : i32
    %13 = arith.cmpi eq, %arg1, %c1_i32 : i32
    %14 = arith.extui %13 : i1 to i32
    %c0_i32_7 = arith.constant 0 : i32
    %15 = arith.cmpi ne, %14, %c0_i32_7 : i32
    scf.if %15 {
      %c0_8 = arith.constant 0 : index
      %c0_9 = arith.constant 0 : index
      %16 = vector.load %arg9[%c0_8, %c0_9] : memref<128x128xf32, #tpu.memory_space<vmem>>, vector<128x128xf32>
      %cst_10 = arith.constant 0.000000e+00 : f32
      %17 = vector.broadcast %cst_10 : f32 to vector<128x128xf32>
      %18 = arith.cmpf oge, %16, %17 : vector<128x128xf32>
      %cst_11 = arith.constant 0.00999999977 : f32
      %19 = vector.broadcast %cst_11 : f32 to vector<128x128xf32>
      %20 = arith.mulf %19, %16 : vector<128x128xf32>
      %21 = arith.select %18, %16, %20 : vector<128x128xi1>, vector<128x128xf32>
      %c0_12 = arith.constant 0 : index
      %c0_13 = arith.constant 0 : index
      %22 = vector.load %arg4[%c0_12, %c0_13] : memref<128x128xf32, #tpu.memory_space<vmem>>, vector<128x128xf32>
      %cst_14 = arith.constant 0.000000e+00 : f32
      %23 = vector.broadcast %cst_14 : f32 to vector<128x128xf32>
      %24 = arith.cmpf oge, %22, %23 : vector<128x128xf32>
      %cst_15 = arith.constant 0.00999999977 : f32
      %25 = vector.broadcast %cst_15 : f32 to vector<128x128xf32>
      %26 = arith.mulf %25, %22 : vector<128x128xf32>
      %27 = arith.select %24, %22, %26 : vector<128x128xi1>, vector<128x128xf32>
      %c0_16 = arith.constant 0 : index
      %c0_17 = arith.constant 0 : index
      %28 = vector.load %arg5[%c0_16, %c0_17] : memref<128x128xf32, #tpu.memory_space<vmem>>, vector<128x128xf32>
      %29 = arith.addf %27, %28 : vector<128x128xf32>
      %c0_18 = arith.constant 0 : index
      %c0_19 = arith.constant 0 : index
      %30 = vector.load %arg6[%c0_18, %c0_19] : memref<128x128xf32, #tpu.memory_space<vmem>>, vector<128x128xf32>
      %cst_20 = arith.constant dense<0.000000e+00> : vector<128x128xf32>
      %31 = tpu.matmul %21, %30, %cst_20 {dimension_numbers = #tpu.dot_dimension_numbers<[1], [0], [0], [1], [0, 0, 1, 1], [], []>} : vector<128x128xf32>, vector<128x128xf32>, vector<128x128xf32> -> vector<128x128xf32>
      %c0_21 = arith.constant 0 : index
      %c0_22 = arith.constant 0 : index
      %32 = vector.load %arg7[%c0_21, %c0_22] : memref<1x128xf32, #tpu.memory_space<vmem>>, vector<1x128xf32>
      %33 = vector.broadcast %32 : vector<1x128xf32> to vector<128x128xf32>
      %34 = arith.addf %31, %33 : vector<128x128xf32>
      %35 = arith.addf %34, %29 : vector<128x128xf32>
      %cst_23 = arith.constant 0.000000e+00 : f32
      %36 = vector.broadcast %cst_23 : f32 to vector<128x128xf32>
      %37 = arith.cmpf oge, %35, %36 : vector<128x128xf32>
      %cst_24 = arith.constant 0.00999999977 : f32
      %38 = vector.broadcast %cst_24 : f32 to vector<128x128xf32>
      %39 = arith.mulf %38, %35 : vector<128x128xf32>
      %40 = arith.select %37, %35, %39 : vector<128x128xi1>, vector<128x128xf32>
      %c0_25 = arith.constant 0 : index
      %c0_26 = arith.constant 0 : index
      %41 = vector.load %arg8[%c0_25, %c0_26] : memref<128x128xf32, #tpu.memory_space<vmem>>, vector<128x128xf32>
      tpu.vector_store %arg8[%c0_25, %c0_26], %40 {strides = array<i32>} : memref<128x128xf32, #tpu.memory_space<vmem>>, vector<128x128xf32>,
    } else {
    }
    return
  }
  func.func @transform_0(%arg0: i32, %arg1: i32) -> (i32, i32) {
    %c0_i32 = arith.constant 0 : i32
    return %arg0, %arg1 : i32, i32
  }
  func.func @transform_1(%arg0: i32, %arg1: i32) -> (i32, i32) {
    %c0_i32 = arith.constant 0 : i32
    %c0_i32_0 = arith.constant 0 : i32
    %c0_i32_1 = arith.constant 0 : i32
    return %c0_i32, %c0_i32_0 : i32, i32
  }
  func.func @transform_2(%arg0: i32, %arg1: i32) -> (i32, i32) {
    %c0_i32 = arith.constant 0 : i32
    %c0_i32_0 = arith.constant 0 : i32
    return %arg0, %c0_i32 : i32, i32
  }
  func.func @transform_3(%arg0: i32, %arg1: i32) -> (i32, i32) {
    %c0_i32 = arith.constant 0 : i32
    %c0_i32_0 = arith.constant 0 : i32
    return %arg0, %c0_i32 : i32, i32
  }
  func.func @transform_4(%arg0: i32, %arg1: i32) -> (i32, i32) {
    %c0_i32 = arith.constant 0 : i32
    %c0_i32_0 = arith.constant 0 : i32
    %c0_i32_1 = arith.constant 0 : i32
    return %c0_i32, %c0_i32_0 : i32, i32
  }
  func.func @transform_5(%arg0: i32, %arg1: i32) -> (i32, i32) {
    %c0_i32 = arith.constant 0 : i32
    %c0_i32_0 = arith.constant 0 : i32
    %c0_i32_1 = arith.constant 0 : i32
    return %c0_i32, %c0_i32_0 : i32, i32
  }
  func.func @transform_6(%arg0: i32, %arg1: i32) -> (i32, i32) {
    %c0_i32 = arith.constant 0 : i32
    %c0_i32_0 = arith.constant 0 : i32
    return %arg0, %c0_i32 : i32, i32
  }
}

</mosaic_0001>

<llo_original>
// kernel: gcn_forward.5
$region0: #{gcn_forward.5}
  #allocation0 [shape = 'u32[]', space=smem, size = 0x4, offset = 0x4, fixed_abs, tag = 'smem constant byte address 0x4 - core index']
  #allocation1 [shape = 'u32[144,128]{1,0:T(1,128)}', space=vmem, size = 0x12000, scoped, tag = 'internal scratch']
  %s0 = inlined_call_operand.hbm [shape: f32[128,128], index: 0, kind: input, shape index: {}]
  %s1 = inlined_call_operand.hbm [shape: f32[128,128], index: 1, kind: input, shape index: {}]
  %s2 = inlined_call_operand.vmem [shape: f32[1,128], index: 2, kind: input, shape index: {}]
  %s3 = inlined_call_operand.vmem [shape: f32[128,128], index: 3, kind: output, shape index: {}]
  %s4 = sld [smem:[#allocation0]]
  $region30: #{gcn_forward.5} parent=0
    _
  %s6 = ssub.s32 1, %s4
  %s7 = scalar_select 0, %s6, %s4
  $region1: #{gcn_forward.5} parent=0
    #allocation2 [shape = 'u8[65536]{0}', space=vmem, size = 0x10000, scoped, tag = 'input window, operand 0, single buffered']
    #allocation3 [shape = 's32[1]{0}', space=sflag, size = 0x4, scoped, tag = 'scoped memory for gcn_forward.5']
    #allocation4 [shape = 'u8[65536]{0}', space=vmem, size = 0x10000, scoped, tag = 'input window, operand 1, single buffered']
    #allocation5 [shape = 's32[1]{0}', space=sflag, size = 0x4, scoped, tag = 'scoped memory for gcn_forward.5']
    %8 = vsyncpa [#allocation3], 0
    %9 = vsyncpa [#allocation5], 0
    // Predicated region
    $region2: #{gcn_forward.5} parent=1 // pred_check
      _
    $region3: #{gcn_forward.5} parent=1 // pred_check_branch
      %11 = sbr.rel (0) target = $region5
    $region4: #{gcn_forward.5} parent=1 // pred_region
      %s13 = ssub.s32 2048, 2048
      %14 = vsyncadd [#allocation3], %s13
      %s15 = sshll.u32 [#allocation2], 4
      %s16 = int_to_ptr.vmem [resolvable:$true] %s15
      %21 = dma.hbm_to_vmem [thread:$0]  %s0, 2048, %s16, [#allocation3], 128, 128, 8
    $region5: #{gcn_forward.5} parent=1 // pred_fallthru
      _
    // Predicated region
    $region6: #{gcn_forward.5} parent=1 // pred_check
      _
    $region7: #{gcn_forward.5} parent=1 // pred_check_branch
      %23 = sbr.rel (0) target = $region9
    $region8: #{gcn_forward.5} parent=1 // pred_region
      %s25 = ssub.s32 2048, 2048
      %26 = vsyncadd [#allocation5], %s25
      %s27 = sshll.u32 [#allocation4], 4
      %s28 = int_to_ptr.vmem [resolvable:$true] %s27
      %33 = dma.hbm_to_vmem [thread:$0]  %s1, 2048, %s28, [#allocation5], 128, 128, 8
    $region9: #{gcn_forward.5} parent=1 // pred_fallthru
      _
    // Predicated region
    $region10: #{gcn_forward.5} parent=1 // pred_check
      _
    $region11: #{gcn_forward.5} parent=1 // pred_check_branch
      %35 = sbr.rel (0) target = $region13
    $region12: #{gcn_forward.5} parent=1 // pred_region
      _
    $region13: #{gcn_forward.5} parent=1 // pred_fallthru
      _
    // Predicated region
    $region14: #{gcn_forward.5} parent=1 // pred_check
      _
    $region15: #{gcn_forward.5} parent=1 // pred_check_branch
      %37 = sbr.rel (0) target = $region17
    $region16: #{gcn_forward.5} parent=1 // pred_region
      %38 = dma.done [#allocation3], 2048
    $region17: #{gcn_forward.5} parent=1 // pred_fallthru
      _
    // Predicated region
    $region18: #{gcn_forward.5} parent=1 // pred_check
      _
    $region19: #{gcn_forward.5} parent=1 // pred_check_branch
      %40 = sbr.rel (0) target = $region21
    $region20: #{gcn_forward.5} parent=1 // pred_region
      %41 = dma.done [#allocation5], 2048
    $region21: #{gcn_forward.5} parent=1 // pred_fallthru
      _
    %v42 = vld [vmem:[#allocation2] sm:$0xff]
    %v43 = vld [vmem:[#allocation2 + $0x8] sm:$0xff]
    %v44 = vld [vmem:[#allocation2 + $0x10] sm:$0xff]
    %v45 = vld [vmem:[#allocation2 + $0x18] sm:$0xff]
    %v46 = vld [vmem:[#allocation2 + $0x20] sm:$0xff]
    %v47 = vld [vmem:[#allocation2 + $0x28] sm:$0xff]
    %v48 = vld [vmem:[#allocation2 + $0x30] sm:$0xff]
    %v49 = vld [vmem:[#allocation2 + $0x38] sm:$0xff]
    %v50 = vld [vmem:[#allocation2 + $0x40] sm:$0xff]
    %v51 = vld [vmem:[#allocation2 + $0x48] sm:$0xff]
    %v52 = vld [vmem:[#allocation2 + $0x50] sm:$0xff]
    %v53 = vld [vmem:[#allocation2 + $0x58] sm:$0xff]
    %v54 = vld [vmem:[#allocation2 + $0x60] sm:$0xff]
    %v55 = vld [vmem:[#allocation2 + $0x68] sm:$0xff]
    %v56 = vld [vmem:[#allocation2 + $0x70] sm:$0xff]
    %v57 = vld [vmem:[#allocation2 + $0x78] sm:$0xff]
    %v58 = vld [vmem:[#allocation4] sm:$0xff]
    %v59 = vld [vmem:[#allocation4 + $0x8] sm:$0xff]
    %v60 = vld [vmem:[#allocation4 + $0x10] sm:$0xff]
    %v61 = vld [vmem:[#allocation4 + $0x18] sm:$0xff]
    %v62 = vld [vmem:[#allocation4 + $0x20] sm:$0xff]
    %v63 = vld [vmem:[#allocation4 + $0x28] sm:$0xff]
    %v64 = vld [vmem:[#allocation4 + $0x30] sm:$0xff]
    %v65 = vld [vmem:[#allocation4 + $0x38] sm:$0xff]
    %v66 = vld [vmem:[#allocation4 + $0x40] sm:$0xff]
    %v67 = vld [vmem:[#allocation4 + $0x48] sm:$0xff]
    %v68 = vld [vmem:[#allocation4 + $0x50] sm:$0xff]
    %v69 = vld [vmem:[#allocation4 + $0x58] sm:$0xff]
    %v70 = vld [vmem:[#allocation4 + $0x60] sm:$0xff]
    %v71 = vld [vmem:[#allocation4 + $0x68] sm:$0xff]
    %v72 = vld [vmem:[#allocation4 + $0x70] sm:$0xff]
    %v73 = vld [vmem:[#allocation4 + $0x78] sm:$0xff]
    %v74 = vld [vmem:[%s2] sm:$0x1]
    %v76 = vlaneseq
    %v77 = vshrl.u32 %v76, 7
    %v78 = vsub.s32 0, %v77
    %v79 = vrot.slane %v74, %v78
    %81 = vmatprep.subr.mxu0 0.0
    %82 = vmatpush1.msra.mxu0 %v58
    %83 = vmatprep.subr.mxu0 0.0
    %84 = vmatpush1.msra.mxu0 %v59
    %85 = vmatprep.subr.mxu0 0.0
    %86 = vmatpush1.msra.mxu0 %v60
    %87 = vmatprep.subr.mxu0 0.0
    %88 = vmatpush1.msra.mxu0 %v61
    %89 = vmatprep.subr.mxu0 0.0
    %90 = vmatpush1.msra.mxu0 %v62
    %91 = vmatprep.subr.mxu0 0.0
    %92 = vmatpush1.msra.mxu0 %v63
    %93 = vmatprep.subr.mxu0 0.0
    %94 = vmatpush1.msra.mxu0 %v64
    %95 = vmatprep.subr.mxu0 0.0
    %96 = vmatpush1.msra.mxu0 %v65
    %97 = vmatprep.subr.mxu0 0.0
    %98 = vmatpush1.msra.mxu0 %v66
    %99 = vmatprep.subr.mxu0 0.0
    %100 = vmatpush1.msra.mxu0 %v67
    %101 = vmatprep.subr.mxu0 0.0
    %102 = vmatpush1.msra.mxu0 %v68
    %103 = vmatprep.subr.mxu0 0.0
    %104 = vmatpush1.msra.mxu0 %v69
    %105 = vmatprep.subr.mxu0 0.0
    %106 = vmatpush1.msra.mxu0 %v70
    %107 = vmatprep.subr.mxu0 0.0
    %108 = vmatpush1.msra.mxu0 %v71
    %109 = vmatprep.subr.mxu0 0.0
    %110 = vmatpush1.msra.mxu0 %v72
    %111 = vmatprep.subr.mxu0 0.0
    %112 = vmatpush1.msra.mxu0 %v73
    %113 = vmatprep.subr.mxu0 0.0
    %114 = vmatpush1.msra.mxu0 0.0
    %115 = vmatprep.subr.mxu0 0.0
    %116 = vmatpush1.msra.mxu0 0.0
    %117 = vmatprep.subr.mxu0 0.0
    %118 = vmatpush1.msra.mxu0 0.0
    %119 = vmatprep.subr.mxu0 0.0
    %120 = vmatpush1.msra.mxu0 0.0
    %121 = vmatprep.subr.mxu0 0.0
    %122 = vmatpush1.msra.mxu0 0.0
    %123 = vmatprep.subr.mxu0 0.0
    %124 = vmatpush1.msra.mxu0 0.0
    %125 = vmatprep.subr.mxu0 0.0
    %126 = vmatpush1.msra.mxu0 0.0
    %127 = vmatprep.subr.mxu0 0.0
    %128 = vmatpush1.msra.mxu0 0.0
    %129 = vmatprep.subr.mxu0 0.0
    %130 = vmatpush1.msra.mxu0 0.0
    %131 = vmatprep.subr.mxu0 0.0
    %132 = vmatpush1.msra.mxu0 0.0
    %133 = vmatprep.subr.mxu0 0.0
    %134 = vmatpush1.msra.mxu0 0.0
    %135 = vmatprep.subr.mxu0 0.0
    %136 = vmatpush1.msra.mxu0 0.0
    %137 = vmatprep.subr.mxu0 0.0
    %138 = vmatpush1.msra.mxu0 0.0
    %139 = vmatprep.subr.mxu0 0.0
    %140 = vmatpush1.msra.mxu0 0.0
    %141 = vmatprep.subr.mxu0 0.0
    %142 = vmatpush1.msra.mxu0 0.0
    %143 = vmatprep.subr.mxu0 0.0
    %144 = vmatpush1.msra.mxu0 0.0
    %145 = vmatprep.mubr.f32.mxu0 0.0
    %146 = vmatmul.mubr.f32.gmra.mrb[0].mxu0 %v42
    %v147 = vpop.f32.mrb[0].mxu0
    %v148 = vadd.f32 %v79, %v147
    %v149 = vpop.f32.mrb[0].mxu0
    %150 = vmatprep.mubr.f32.mxu0 0.0
    %151 = vmatmul.mubr.f32.gmra.mrb[0].mxu0 %v43
    %v152 = vpop.f32.mrb[0].mxu0
    %v153 = vadd.f32 %v79, %v152
    %v154 = vpop.f32.mrb[0].mxu0
    %155 = vmatprep.mubr.f32.mxu0 0.0
    %156 = vmatmul.mubr.f32.gmra.mrb[0].mxu0 %v44
    %v157 = vpop.f32.mrb[0].mxu0
    %v158 = vadd.f32 %v79, %v157
    %v159 = vpop.f32.mrb[0].mxu0
    %160 = vmatprep.mubr.f32.mxu0 0.0
    %161 = vmatmul.mubr.f32.gmra.mrb[0].mxu0 %v45
    %v162 = vpop.f32.mrb[0].mxu0
    %v163 = vadd.f32 %v79, %v162
    %v164 = vpop.f32.mrb[0].mxu0
    %165 = vmatprep.mubr.f32.mxu0 0.0
    %166 = vmatmul.mubr.f32.gmra.mrb[0].mxu0 %v46
    %v167 = vpop.f32.mrb[0].mxu0
    %v168 = vadd.f32 %v79, %v167
    %v169 = vpop.f32.mrb[0].mxu0
    %170 = vmatprep.mubr.f32.mxu0 0.0
    %171 = vmatmul.mubr.f32.gmra.mrb[0].mxu0 %v47
    %v172 = vpop.f32.mrb[0].mxu0
    %v173 = vadd.f32 %v79, %v172
    %v174 = vpop.f32.mrb[0].mxu0
    %175 = vmatprep.mubr.f32.mxu0 0.0
    %176 = vmatmul.mubr.f32.gmra.mrb[0].mxu0 %v48
    %v177 = vpop.f32.mrb[0].mxu0
    %v178 = vadd.f32 %v79, %v177
    %v179 = vpop.f32.mrb[0].mxu0
    %180 = vmatprep.mubr.f32.mxu0 0.0
    %181 = vmatmul.mubr.f32.gmra.mrb[0].mxu0 %v49
    %v182 = vpop.f32.mrb[0].mxu0
    %v183 = vadd.f32 %v79, %v182
    %v184 = vpop.f32.mrb[0].mxu0
    %185 = vmatprep.mubr.f32.mxu0 0.0
    %186 = vmatmul.mubr.f32.gmra.mrb[0].mxu0 %v50
    %v187 = vpop.f32.mrb[0].mxu0
    %v188 = vadd.f32 %v79, %v187
    %v189 = vpop.f32.mrb[0].mxu0
    %190 = vmatprep.mubr.f32.mxu0 0.0
    %191 = vmatmul.mubr.f32.gmra.mrb[0].mxu0 %v51
    %v192 = vpop.f32.mrb[0].mxu0
    %v193 = vadd.f32 %v79, %v192
    %v194 = vpop.f32.mrb[0].mxu0
    %195 = vmatprep.mubr.f32.mxu0 0.0
    %196 = vmatmul.mubr.f32.gmra.mrb[0].mxu0 %v52
    %v197 = vpop.f32.mrb[0].mxu0
    %v198 = vadd.f32 %v79, %v197
    %v199 = vpop.f32.mrb[0].mxu0
    %200 = vmatprep.mubr.f32.mxu0 0.0
    %201 = vmatmul.mubr.f32.gmra.mrb[0].mxu0 %v53
    %v202 = vpop.f32.mrb[0].mxu0
    %v203 = vadd.f32 %v79, %v202
    %v204 = vpop.f32.mrb[0].mxu0
    %205 = vmatprep.mubr.f32.mxu0 0.0
    %206 = vmatmul.mubr.f32.gmra.mrb[0].mxu0 %v54
    %v207 = vpop.f32.mrb[0].mxu0
    %v208 = vadd.f32 %v79, %v207
    %v209 = vpop.f32.mrb[0].mxu0
    %210 = vmatprep.mubr.f32.mxu0 0.0
    %211 = vmatmul.mubr.f32.gmra.mrb[0].mxu0 %v55
    %v212 = vpop.f32.mrb[0].mxu0
    %v213 = vadd.f32 %v79, %v212
    %v214 = vpop.f32.mrb[0].mxu0
    %215 = vmatprep.mubr.f32.mxu0 0.0
    %216 = vmatmul.mubr.f32.gmra.mrb[0].mxu0 %v56
    %v217 = vpop.f32.mrb[0].mxu0
    %v218 = vadd.f32 %v79, %v217
    %v219 = vpop.f32.mrb[0].mxu0
    %220 = vmatprep.mubr.f32.mxu0 0.0
    %221 = vmatmul.mubr.f32.gmra.mrb[0].mxu0 %v57
    %v222 = vpop.f32.mrb[0].mxu0
    %v223 = vadd.f32 %v79, %v222
    %v224 = vpop.f32.mrb[0].mxu0
    %225 = vdwg.mxu0
    %226 = vst [vmem:[%s3] sm:$0xff] %v148
    %227 = vst [vmem:[%s3 + $0x8] sm:$0xff] %v153
    %228 = vst [vmem:[%s3 + $0x10] sm:$0xff] %v158
    %229 = vst [vmem:[%s3 + $0x18] sm:$0xff] %v163
    %230 = vst [vmem:[%s3 + $0x20] sm:$0xff] %v168
    %231 = vst [vmem:[%s3 + $0x28] sm:$0xff] %v173
    %232 = vst [vmem:[%s3 + $0x30] sm:$0xff] %v178
    %233 = vst [vmem:[%s3 + $0x38] sm:$0xff] %v183
    %234 = vst [vmem:[%s3 + $0x40] sm:$0xff] %v188
    %235 = vst [vmem:[%s3 + $0x48] sm:$0xff] %v193
    %236 = vst [vmem:[%s3 + $0x50] sm:$0xff] %v198
    %237 = vst [vmem:[%s3 + $0x58] sm:$0xff] %v203
    %238 = vst [vmem:[%s3 + $0x60] sm:$0xff] %v208
    %239 = vst [vmem:[%s3 + $0x68] sm:$0xff] %v213
    %240 = vst [vmem:[%s3 + $0x70] sm:$0xff] %v218
    %241 = vst [vmem:[%s3 + $0x78] sm:$0xff] %v223
    // Predicated region
    $region22: #{gcn_forward.5} parent=1 // pred_check
      _
    $region23: #{gcn_forward.5} parent=1 // pred_check_branch
      %243 = sbr.rel (0) target = $region25
    $region24: #{gcn_forward.5} parent=1 // pred_region
      _
    $region25: #{gcn_forward.5} parent=1 // pred_fallthru
      _
    // Predicated region
    $region26: #{gcn_forward.5} parent=1 // pred_check
      _
    $region27: #{gcn_forward.5} parent=1 // pred_check_branch
      %245 = sbr.rel (0) target = $region29
    $region28: #{gcn_forward.5} parent=1 // pred_region
      _
    $region29: #{gcn_forward.5} parent=1 // pred_fallthru
      _
    %246 = vsyncpa [#allocation3], 1
    %247 = vsyncpa [#allocation5], 1

// kernel: gcn_forward.6
$region0: #{gcn_forward.6}
  #allocation0 [shape = 'u32[]', space=smem, size = 0x4, offset = 0x4, fixed_abs, tag = 'smem constant byte address 0x4 - core index']
  #allocation1 [shape = 'u32[144,128]{1,0:T(1,128)}', space=vmem, size = 0x12000, scoped, tag = 'internal scratch']
  %s0 = inlined_call_operand.vmem [shape: f32[256,128], index: 0, kind: input, shape index: {}]
  %s1 = inlined_call_operand.vmem [shape: f32[128,256], index: 1, kind: input, shape index: {}]
  %s2 = inlined_call_operand.vmem [shape: f32[1,256], index: 2, kind: input, shape index: {}]
  %s3 = inlined_call_operand.vmem [shape: bf16[256,128], index: 3, kind: output, shape index: {0}]
  %s4 = inlined_call_operand.vmem [shape: f32[256,128], index: 4, kind: output, shape index: {1}]
  %5 = xla_tuple %s3, %s4
  %s6 = sld [smem:[#allocation0]]
  $region53: #{gcn_forward.6} parent=0
    _
  %s8 = ssub.s32 1, %s6
  %s9 = scalar_select 0, %s8, %s6
  loop: start=0, step=1, limit=4
  $region2: #{gcn_forward.6} parent=0 // loop_pre_header
    _
  $region3: #{gcn_forward.6} parent=0 // loop_header
    %s11 = sphi 0, %s15
    %p12 = scmp.ge.s32.totalorder %s11, 4
    %s21 = sphi 0, %s23
    %s24 = sphi 0, %s21
    %s25 = sphi 0, %s24
    %s41 = sphi 0, %s25
    %s45 = sphi 0, %s45
    %s47 = sphi 0, %s45
    %s48 = sphi 0, %s47
    %s62 = sphi 0, %s48
    %s66 = sphi 0, %s66
    %s68 = sphi 0, %s66
    %s69 = sphi 0, %s68
    %s83 = sphi 0, %s69
    %s89 = sphi 0, %s91
    %s92 = sphi 0, %s89
    %s93 = sphi 0, %s92
    %s109 = sphi 0, %s93
    %s115 = sphi 0, %s117
    %s118 = sphi 0, %s115
    %s119 = sphi 0, %s118
    %s135 = sphi 0, %s119
  $region4: #{gcn_forward.6} parent=0 // loop_header_branch
    %14 = sbr.rel (%p12) target = $region8
  $region5: #{gcn_forward.6} parent=0 // loop_body
    %s16 = ssub.s32 %s11, 1
    %s17 = ssub.s32 %s11, 2
    %s18 = sadd.s32 %s11, 1
    %s19 = ssub.s32 %s11, %s18
    %p20 = scmp.eq.s32.totalorder %s19, 0
    %s22 = sadd.s32 %s21, 1
    %s23 = scalar_select %p20, %s21, %s22
    %p26 = pneg %p20
    %p27 = scmp.eq.s32.totalorder %s11, 1
    %p28 = por %p26, %p27
    %p29 = scmp.ne.s32.totalorder %s21, %s24
    %p30 = scmp.eq.s32.totalorder %s11, 0
    %p31 = por %p29, %p30
    %p32 = scmp.ne.s32.totalorder %s21, %s24
    %p33 = scmp.eq.s32.totalorder %s16, 1
    %p34 = por %p32, %p33
    %p35 = scmp.ne.s32.totalorder %s24, %s25
    %p36 = scmp.eq.s32.totalorder %s16, 0
    %p37 = por %p35, %p36
    %p38 = scmp.ne.s32.totalorder %s24, %s25
    %p39 = scmp.eq.s32.totalorder %s17, 1
    %p40 = por %p38, %p39
    %p42 = scmp.ne.s32.totalorder %s25, %s41
    %p43 = scmp.eq.s32.totalorder %s17, 0
    %p44 = por %p42, %p43
    %s46 = sadd.s32 %s45, 1
    %p49 = scmp.eq.s32.totalorder %s11, 1
    %p50 = scmp.ne.s32.totalorder %s45, %s47
    %p51 = scmp.eq.s32.totalorder %s11, 0
    %p52 = por %p50, %p51
    %p53 = scmp.ne.s32.totalorder %s45, %s47
    %p54 = scmp.eq.s32.totalorder %s16, 1
    %p55 = por %p53, %p54
    %p56 = scmp.ne.s32.totalorder %s47, %s48
    %p57 = scmp.eq.s32.totalorder %s16, 0
    %p58 = por %p56, %p57
    %p59 = scmp.ne.s32.totalorder %s47, %s48
    %p60 = scmp.eq.s32.totalorder %s17, 1
    %p61 = por %p59, %p60
    %p63 = scmp.ne.s32.totalorder %s48, %s62
    %p64 = scmp.eq.s32.totalorder %s17, 0
    %p65 = por %p63, %p64
    %s67 = sadd.s32 %s66, 1
    %p70 = scmp.eq.s32.totalorder %s11, 1
    %p71 = scmp.ne.s32.totalorder %s66, %s68
    %p72 = scmp.eq.s32.totalorder %s11, 0
    %p73 = por %p71, %p72
    %p74 = scmp.ne.s32.totalorder %s66, %s68
    %p75 = scmp.eq.s32.totalorder %s16, 1
    %p76 = por %p74, %p75
    %p77 = scmp.ne.s32.totalorder %s68, %s69
    %p78 = scmp.eq.s32.totalorder %s16, 0
    %p79 = por %p77, %p78
    %p80 = scmp.ne.s32.totalorder %s68, %s69
    %p81 = scmp.eq.s32.totalorder %s17, 1
    %p82 = por %p80, %p81
    %p84 = scmp.ne.s32.totalorder %s69, %s83
    %p85 = scmp.eq.s32.totalorder %s17, 0
    %p86 = por %p84, %p85
    %s87 = ssub.s32 %s11, %s18
    %p88 = scmp.eq.s32.totalorder %s87, 0
    %s90 = sadd.s32 %s89, 1
    %s91 = scalar_select %p88, %s89, %s90
    %p94 = pneg %p88
    %p95 = scmp.eq.s32.totalorder %s11, 1
    %p96 = por %p94, %p95
    %p97 = scmp.ne.s32.totalorder %s89, %s92
    %p98 = scmp.eq.s32.totalorder %s11, 0
    %p99 = por %p97, %p98
    %p100 = scmp.ne.s32.totalorder %s89, %s92
    %p101 = scmp.eq.s32.totalorder %s16, 1
    %p102 = por %p100, %p101
    %p103 = scmp.ne.s32.totalorder %s92, %s93
    %p104 = scmp.eq.s32.totalorder %s16, 0
    %p105 = por %p103, %p104
    %p106 = scmp.ne.s32.totalorder %s92, %s93
    %p107 = scmp.eq.s32.totalorder %s17, 1
    %p108 = por %p106, %p107
    %p110 = scmp.ne.s32.totalorder %s93, %s109
    %p111 = scmp.eq.s32.totalorder %s17, 0
    %p112 = por %p110, %p111
    %s113 = ssub.s32 %s11, %s18
    %p114 = scmp.eq.s32.totalorder %s113, 0
    %s116 = sadd.s32 %s115, 1
    %s117 = scalar_select %p114, %s115, %s116
    %p120 = pneg %p114
    %p121 = scmp.eq.s32.totalorder %s11, 1
    %p122 = por %p120, %p121
    %p123 = scmp.ne.s32.totalorder %s115, %s118
    %p124 = scmp.eq.s32.totalorder %s11, 0
    %p125 = por %p123, %p124
    %p126 = scmp.ne.s32.totalorder %s115, %s118
    %p127 = scmp.eq.s32.totalorder %s16, 1
    %p128 = por %p126, %p127
    %p129 = scmp.ne.s32.totalorder %s118, %s119
    %p130 = scmp.eq.s32.totalorder %s16, 0
    %p131 = por %p129, %p130
    %p132 = scmp.ne.s32.totalorder %s118, %s119
    %p133 = scmp.eq.s32.totalorder %s17, 1
    %p134 = por %p132, %p133
    %p136 = scmp.ne.s32.totalorder %s119, %s135
    %p137 = scmp.eq.s32.totalorder %s17, 0
    %p138 = por %p136, %p137
    %p139 = scmp.le.s32.totalorder 1, %s11
    %p140 = scmp.lt.s32.totalorder %s11, 3
    %p141 = pnand %p139, %p140
    %p142 = pneg %p141
    // Predicated region
    $region9: #{gcn_forward.6} parent=5 // pred_check
      _
    $region10: #{gcn_forward.6} parent=5 // pred_check_branch
      %144 = sbr.rel (%p141) target = $region12
    $region11: #{gcn_forward.6} parent=5 // pred_region
      %s145 = ssub.s32 %s11, 1
      // Predicated region
      $region13: #{gcn_forward.6} parent=11 // pred_check
        %p146 = pneg %p58
      $region14: #{gcn_forward.6} parent=11 // pred_check_branch
        %148 = sbr.rel (%p146) target = $region16
      $region15: #{gcn_forward.6} parent=11 // pred_region
        _
      $region16: #{gcn_forward.6} parent=11 // pred_fallthru
        _
      // Predicated region
      $region17: #{gcn_forward.6} parent=11 // pred_check
        %p149 = pneg %p79
      $region18: #{gcn_forward.6} parent=11 // pred_check_branch
        %151 = sbr.rel (%p149) target = $region20
      $region19: #{gcn_forward.6} parent=11 // pred_region
        _
      $region20: #{gcn_forward.6} parent=11 // pred_fallthru
        _
    $region12: #{gcn_forward.6} parent=5 // pred_fallthru
      _
    %p152 = scmp.lt.s32.totalorder %s11, 2
    // Predicated region
    $region21: #{gcn_forward.6} parent=5 // pred_check
      %p153 = pneg %p152
    $region22: #{gcn_forward.6} parent=5 // pred_check_branch
      %155 = sbr.rel (%p153) target = $region24
    $region23: #{gcn_forward.6} parent=5 // pred_region
      // Predicated region
      $region25: #{gcn_forward.6} parent=23 // pred_check
        %p156 = pneg %p31
      $region26: #{gcn_forward.6} parent=23 // pred_check_branch
        %158 = sbr.rel (%p156) target = $region28
      $region27: #{gcn_forward.6} parent=23 // pred_region
        %s159 = smul.u32 16, %s11
        %p160 = scmp.lt.s32.totalorder %s159, 31
        %s161 = scalar_select %p160, %s159, 31
        %s162 = smul.addr %s161, 8
        %s163 = scalar_lea.vmem %s0, %s162
        %s164 = smul.u32 16, %s11
      $region28: #{gcn_forward.6} parent=23 // pred_fallthru
        _
    $region24: #{gcn_forward.6} parent=5 // pred_fallthru
      _
    %p165 = scmp.le.s32.totalorder 1, %s11
    %p166 = scmp.lt.s32.totalorder %s11, 3
    %p167 = pnand %p165, %p166
    %p168 = pneg %p167
    // Predicated region
    $region29: #{gcn_forward.6} parent=5 // pred_check
      _
    $region30: #{gcn_forward.6} parent=5 // pred_check_branch
      %170 = sbr.rel (%p167) target = $region32
    $region31: #{gcn_forward.6} parent=5 // pred_region
      %s171 = ssub.s32 %s11, 1
      %s172 = smul.u32 16, %s16
      %p173 = scmp.lt.s32.totalorder %s172, 31
      %s174 = scalar_select %p173, %s172, 31
      %s175 = smul.addr %s174, 8
      %s176 = scalar_lea.vmem %s0, %s175
      %p177 = pneg %p37
      %p178 = pneg %p34
      %p179 = pneg %p58
      %p180 = pneg %p55
      %p181 = pneg %p79
      %p182 = pneg %p76
      %p183 = pneg %p105
      %p184 = pneg %p102
      %s185 = smul.u32 16, %s16
      %p186 = scmp.lt.s32.totalorder %s185, 31
      %s187 = scalar_select %p186, %s185, 31
      %s188 = smul.addr %s187, 4
      %s189 = scalar_lea.vmem %s3, %s188
      %p190 = pneg %p131
      %p191 = pneg %p128
      %s192 = smul.u32 16, %s16
      %p193 = scmp.lt.s32.totalorder %s192, 31
      %s194 = scalar_select %p193, %s192, 31
      %s195 = smul.addr %s194, 8
      %s196 = scalar_lea.vmem %s4, %s195
      %s197 = smul.u32 16, %s16
      %p198 = scmp.lt.s32.totalorder %s197, 31
      %s199 = scalar_select %p198, %s197, 31
      %s200 = smul.addr %s199, 8
      %s201 = scalar_lea.vmem %s0, %s200
      %s202 = smul.u32 16, %s16
      %s203 = smul.u32 16, %s16
      %p204 = scmp.lt.s32.totalorder %s203, 31
      %s205 = scalar_select %p204, %s203, 31
      %s206 = smul.addr %s205, 4
      %s207 = scalar_lea.vmem %s3, %s206
      %s208 = smul.u32 16, %s16
      %s209 = smul.u32 16, %s16
      %p210 = scmp.lt.s32.totalorder %s209, 31
      %s211 = scalar_select %p210, %s209, 31
      %s212 = smul.addr %s211, 8
      %s213 = scalar_lea.vmem %s4, %s212
      %s214 = smul.u32 16, %s16
      %v215 = vld [vmem:[%s201] sm:$0xff]
      %v216 = vld [vmem:[%s201 + $0x8] sm:$0xff]
      %v217 = vld [vmem:[%s201 + $0x10] sm:$0xff]
      %v218 = vld [vmem:[%s201 + $0x18] sm:$0xff]
      %v219 = vld [vmem:[%s201 + $0x20] sm:$0xff]
      %v220 = vld [vmem:[%s201 + $0x28] sm:$0xff]
      %v221 = vld [vmem:[%s201 + $0x30] sm:$0xff]
      %v222 = vld [vmem:[%s201 + $0x38] sm:$0xff]
      %v223 = vld [vmem:[%s201 + $0x40] sm:$0xff]
      %v224 = vld [vmem:[%s201 + $0x48] sm:$0xff]
      %v225 = vld [vmem:[%s201 + $0x50] sm:$0xff]
      %v226 = vld [vmem:[%s201 + $0x58] sm:$0xff]
      %v227 = vld [vmem:[%s201 + $0x60] sm:$0xff]
      %v228 = vld [vmem:[%s201 + $0x68] sm:$0xff]
      %v229 = vld [vmem:[%s201 + $0x70] sm:$0xff]
      %v230 = vld [vmem:[%s201 + $0x78] sm:$0xff]
      %v231 = vmul.f32 %v215, %v215
      %v232 = vmul.f32 %v216, %v216
      %v233 = vmul.f32 %v217, %v217
      %v234 = vmul.f32 %v218, %v218
      %v235 = vmul.f32 %v219, %v219
      %v236 = vmul.f32 %v220, %v220
      %v237 = vmul.f32 %v221, %v221
      %v238 = vmul.f32 %v222, %v222
      %v239 = vmul.f32 %v223, %v223
      %v240 = vmul.f32 %v224, %v224
      %v241 = vmul.f32 %v225, %v225
      %v242 = vmul.f32 %v226, %v226
      %v243 = vmul.f32 %v227, %v227
      %v244 = vmul.f32 %v228, %v228
      %v245 = vmul.f32 %v229, %v229
      %v246 = vmul.f32 %v230, %v230
      %247 = vadd.xlane.f32.xlu0 %v231
      %v248 = vpop.xlane.xlu0 %247
      %249 = vadd.xlane.f32.xlu0 %v232
      %v250 = vpop.xlane.xlu0 %249
      %251 = vadd.xlane.f32.xlu0 %v233
      %v252 = vpop.xlane.xlu0 %251
      %253 = vadd.xlane.f32.xlu0 %v234
      %v254 = vpop.xlane.xlu0 %253
      %255 = vadd.xlane.f32.xlu0 %v235
      %v256 = vpop.xlane.xlu0 %255
      %257 = vadd.xlane.f32.xlu0 %v236
      %v258 = vpop.xlane.xlu0 %257
      %259 = vadd.xlane.f32.xlu0 %v237
      %v260 = vpop.xlane.xlu0 %259
      %261 = vadd.xlane.f32.xlu0 %v238
      %v262 = vpop.xlane.xlu0 %261
      %263 = vadd.xlane.f32.xlu0 %v239
      %v264 = vpop.xlane.xlu0 %263
      %265 = vadd.xlane.f32.xlu0 %v240
      %v266 = vpop.xlane.xlu0 %265
      %267 = vadd.xlane.f32.xlu0 %v241
      %v268 = vpop.xlane.xlu0 %267
      %269 = vadd.xlane.f32.xlu0 %v242
      %v270 = vpop.xlane.xlu0 %269
      %271 = vadd.xlane.f32.xlu0 %v243
      %v272 = vpop.xlane.xlu0 %271
      %273 = vadd.xlane.f32.xlu0 %v244
      %v274 = vpop.xlane.xlu0 %273
      %275 = vadd.xlane.f32.xlu0 %v245
      %v276 = vpop.xlane.xlu0 %275
      %277 = vadd.xlane.f32.xlu0 %v246
      %v278 = vpop.xlane.xlu0 %277
      %v279 = vrsqrt.pop %v248
      %v280 = vmul.f32 %v248, %v279
      %vm281 = vcmp.eq.f32.partialorder %v248, inf
      %v282 = vsel %vm281, %v248, %v280
      %vm283 = vcmp.eq.f32.partialorder %v248, 0.0
      %v284 = vand.u32 %v248, 2147483648
      %v285 = vsel %vm283, %v284, %v282
      %v286 = vrsqrt.pop %v250
      %v287 = vmul.f32 %v250, %v286
      %vm288 = vcmp.eq.f32.partialorder %v250, inf
      %v289 = vsel %vm288, %v250, %v287
      %vm290 = vcmp.eq.f32.partialorder %v250, 0.0
      %v291 = vand.u32 %v250, 2147483648
      %v292 = vsel %vm290, %v291, %v289
      %v293 = vrsqrt.pop %v252
      %v294 = vmul.f32 %v252, %v293
      %vm295 = vcmp.eq.f32.partialorder %v252, inf
      %v296 = vsel %vm295, %v252, %v294
      %vm297 = vcmp.eq.f32.partialorder %v252, 0.0
      %v298 = vand.u32 %v252, 2147483648
      %v299 = vsel %vm297, %v298, %v296
      %v300 = vrsqrt.pop %v254
      %v301 = vmul.f32 %v254, %v300
      %vm302 = vcmp.eq.f32.partialorder %v254, inf
      %v303 = vsel %vm302, %v254, %v301
      %vm304 = vcmp.eq.f32.partialorder %v254, 0.0
      %v305 = vand.u32 %v254, 2147483648
      %v306 = vsel %vm304, %v305, %v303
      %v307 = vrsqrt.pop %v256
      %v308 = vmul.f32 %v256, %v307
      %vm309 = vcmp.eq.f32.partialorder %v256, inf
      %v310 = vsel %vm309, %v256, %v308
      %vm311 = vcmp.eq.f32.partialorder %v256, 0.0
      %v312 = vand.u32 %v256, 2147483648
      %v313 = vsel %vm311, %v312, %v310
      %v314 = vrsqrt.pop %v258
      %v315 = vmul.f32 %v258, %v314
      %vm316 = vcmp.eq.f32.partialorder %v258, inf
      %v317 = vsel %vm316, %v258, %v315
      %vm318 = vcmp.eq.f32.partialorder %v258, 0.0
      %v319 = vand.u32 %v258, 2147483648
      %v320 = vsel %vm318, %v319, %v317
      %v321 = vrsqrt.pop %v260
      %v322 = vmul.f32 %v260, %v321
      %vm323 = vcmp.eq.f32.partialorder %v260, inf
      %v324 = vsel %vm323, %v260, %v322
      %vm325 = vcmp.eq.f32.partialorder %v260, 0.0
      %v326 = vand.u32 %v260, 2147483648
      %v327 = vsel %vm325, %v326, %v324
      %v328 = vrsqrt.pop %v262
      %v329 = vmul.f32 %v262, %v328
      %vm330 = vcmp.eq.f32.partialorder %v262, inf
      %v331 = vsel %vm330, %v262, %v329
      %vm332 = vcmp.eq.f32.partialorder %v262, 0.0
      %v333 = vand.u32 %v262, 2147483648
      %v334 = vsel %vm332, %v333, %v331
      %v335 = vrsqrt.pop %v264
      %v336 = vmul.f32 %v264, %v335
      %vm337 = vcmp.eq.f32.partialorder %v264, inf
      %v338 = vsel %vm337, %v264, %v336
      %vm339 = vcmp.eq.f32.partialorder %v264, 0.0
      %v340 = vand.u32 %v264, 2147483648
      %v341 = vsel %vm339, %v340, %v338
      %v342 = vrsqrt.pop %v266
      %v343 = vmul.f32 %v266, %v342
      %vm344 = vcmp.eq.f32.partialorder %v266, inf
      %v345 = vsel %vm344, %v266, %v343
      %vm346 = vcmp.eq.f32.partialorder %v266, 0.0
      %v347 = vand.u32 %v266, 2147483648
      %v348 = vsel %vm346, %v347, %v345
      %v349 = vrsqrt.pop %v268
      %v350 = vmul.f32 %v268, %v349
      %vm351 = vcmp.eq.f32.partialorder %v268, inf
      %v352 = vsel %vm351, %v268, %v350
      %vm353 = vcmp.eq.f32.partialorder %v268, 0.0
      %v354 = vand.u32 %v268, 2147483648
      %v355 = vsel %vm353, %v354, %v352
      %v356 = vrsqrt.pop %v270
      %v357 = vmul.f32 %v270, %v356
      %vm358 = vcmp.eq.f32.partialorder %v270, inf
      %v359 = vsel %vm358, %v270, %v357
      %vm360 = vcmp.eq.f32.partialorder %v270, 0.0
      %v361 = vand.u32 %v270, 2147483648
      %v362 = vsel %vm360, %v361, %v359
      %v363 = vrsqrt.pop %v272
      %v364 = vmul.f32 %v272, %v363
      %vm365 = vcmp.eq.f32.partialorder %v272, inf
      %v366 = vsel %vm365, %v272, %v364
      %vm367 = vcmp.eq.f32.partialorder %v272, 0.0
      %v368 = vand.u32 %v272, 2147483648
      %v369 = vsel %vm367, %v368, %v366
      %v370 = vrsqrt.pop %v274
      %v371 = vmul.f32 %v274, %v370
      %vm372 = vcmp.eq.f32.partialorder %v274, inf
      %v373 = vsel %vm372, %v274, %v371
      %vm374 = vcmp.eq.f32.partialorder %v274, 0.0
      %v375 = vand.u32 %v274, 2147483648
      %v376 = vsel %vm374, %v375, %v373
      %v377 = vrsqrt.pop %v276
      %v378 = vmul.f32 %v276, %v377
      %vm379 = vcmp.eq.f32.partialorder %v276, inf
      %v380 = vsel %vm379, %v276, %v378
      %vm381 = vcmp.eq.f32.partialorder %v276, 0.0
      %v382 = vand.u32 %v276, 2147483648
      %v383 = vsel %vm381, %v382, %v380
      %v384 = vrsqrt.pop %v278
      %v385 = vmul.f32 %v278, %v384
      %vm386 = vcmp.eq.f32.partialorder %v278, inf
      %v387 = vsel %vm386, %v278, %v385
      %vm388 = vcmp.eq.f32.partialorder %v278, 0.0
      %v389 = vand.u32 %v278, 2147483648
      %v390 = vsel %vm388, %v389, %v387
      %v391 = vmax.f32 %v285, 1e-12
      %v392 = vmax.f32 %v292, 1e-12
      %v393 = vmax.f32 %v299, 1e-12
      %v394 = vmax.f32 %v306, 1e-12
      %v395 = vmax.f32 %v313, 1e-12
      %v396 = vmax.f32 %v320, 1e-12
      %v397 = vmax.f32 %v327, 1e-12
      %v398 = vmax.f32 %v334, 1e-12
      %v399 = vmax.f32 %v341, 1e-12
      %v400 = vmax.f32 %v348, 1e-12
      %v401 = vmax.f32 %v355, 1e-12
      %v402 = vmax.f32 %v362, 1e-12
      %v403 = vmax.f32 %v369, 1e-12
      %v404 = vmax.f32 %v376, 1e-12
      %v405 = vmax.f32 %v383, 1e-12
      %v406 = vmax.f32 %v390, 1e-12
      %v407 = vrcp.pop %v391
      %v408 = vmul.f32 %v215, %v407
      %v409 = vrcp.pop %v392
      %v410 = vmul.f32 %v216, %v409
      %v411 = vrcp.pop %v393
      %v412 = vmul.f32 %v217, %v411
      %v413 = vrcp.pop %v394
      %v414 = vmul.f32 %v218, %v413
      %v415 = vrcp.pop %v395
      %v416 = vmul.f32 %v219, %v415
      %v417 = vrcp.pop %v396
      %v418 = vmul.f32 %v220, %v417
      %v419 = vrcp.pop %v397
      %v420 = vmul.f32 %v221, %v419
      %v421 = vrcp.pop %v398
      %v422 = vmul.f32 %v222, %v421
      %v423 = vrcp.pop %v399
      %v424 = vmul.f32 %v223, %v423
      %v425 = vrcp.pop %v400
      %v426 = vmul.f32 %v224, %v425
      %v427 = vrcp.pop %v401
      %v428 = vmul.f32 %v225, %v427
      %v429 = vrcp.pop %v402
      %v430 = vmul.f32 %v226, %v429
      %v431 = vrcp.pop %v403
      %v432 = vmul.f32 %v227, %v431
      %v433 = vrcp.pop %v404
      %v434 = vmul.f32 %v228, %v433
      %v435 = vrcp.pop %v405
      %v436 = vmul.f32 %v229, %v435
      %v437 = vrcp.pop %v406
      %v438 = vmul.f32 %v230, %v437
      %v439 = vld [vmem:[%s1] sm:$0xff]
      %v440 = vld [vmem:[%s1 + $0x8] sm:$0xff]
      %v441 = vld [vmem:[%s1 + $0x10] sm:$0xff]
      %v442 = vld [vmem:[%s1 + $0x18] sm:$0xff]
      %v443 = vld [vmem:[%s1 + $0x20] sm:$0xff]
      %v444 = vld [vmem:[%s1 + $0x28] sm:$0xff]
      %v445 = vld [vmem:[%s1 + $0x30] sm:$0xff]
      %v446 = vld [vmem:[%s1 + $0x38] sm:$0xff]
      %v447 = vld [vmem:[%s1 + $0x40] sm:$0xff]
      %v448 = vld [vmem:[%s1 + $0x48] sm:$0xff]
      %v449 = vld [vmem:[%s1 + $0x50] sm:$0xff]
      %v450 = vld [vmem:[%s1 + $0x58] sm:$0xff]
      %v451 = vld [vmem:[%s1 + $0x60] sm:$0xff]
      %v452 = vld [vmem:[%s1 + $0x68] sm:$0xff]
      %v453 = vld [vmem:[%s1 + $0x70] sm:$0xff]
      %v454 = vld [vmem:[%s1 + $0x78] sm:$0xff]
      %v455 = vld [vmem:[%s1 + $0x80] sm:$0xff]
      %v456 = vld [vmem:[%s1 + $0x88] sm:$0xff]
      %v457 = vld [vmem:[%s1 + $0x90] sm:$0xff]
      %v458 = vld [vmem:[%s1 + $0x98] sm:$0xff]
      %v459 = vld [vmem:[%s1 + $0xa0] sm:$0xff]
      %v460 = vld [vmem:[%s1 + $0xa8] sm:$0xff]
      %v461 = vld [vmem:[%s1 + $0xb0] sm:$0xff]
      %v462 = vld [vmem:[%s1 + $0xb8] sm:$0xff]
      %v463 = vld [vmem:[%s1 + $0xc0] sm:$0xff]
      %v464 = vld [vmem:[%s1 + $0xc8] sm:$0xff]
      %v465 = vld [vmem:[%s1 + $0xd0] sm:$0xff]
      %v466 = vld [vmem:[%s1 + $0xd8] sm:$0xff]
      %v467 = vld [vmem:[%s1 + $0xe0] sm:$0xff]
      %v468 = vld [vmem:[%s1 + $0xe8] sm:$0xff]
      %v469 = vld [vmem:[%s1 + $0xf0] sm:$0xff]
      %v470 = vld [vmem:[%s1 + $0xf8] sm:$0xff]
      %v471 = vld [vmem:[%s2] sm:$0x3]
      %v473 = vlaneseq
      %v474 = vshrl.u32 %v473, 7
      %v475 = vsub.s32 0, %v474
      %v476 = vrot.slane %v471, %v475
      %v477 = vlaneseq
      %v478 = vshrl.u32 %v477, 7
      %v479 = vsub.s32 1, %v478
      %v480 = vrot.slane %v471, %v479
      %483 = vmatprep.subr.mxu0 %v440
      %484 = vmatpush1.msra.mxu0 %v439
      %485 = vmatprep.subr.mxu0 %v442
      %486 = vmatpush1.msra.mxu0 %v441
      %487 = vmatprep.subr.mxu0 %v444
      %488 = vmatpush1.msra.mxu0 %v443
      %489 = vmatprep.subr.mxu0 %v446
      %490 = vmatpush1.msra.mxu0 %v445
      %491 = vmatprep.subr.mxu0 %v448
      %492 = vmatpush1.msra.mxu0 %v447
      %493 = vmatprep.subr.mxu0 %v450
      %494 = vmatpush1.msra.mxu0 %v449
      %495 = vmatprep.subr.mxu0 %v452
      %496 = vmatpush1.msra.mxu0 %v451
      %497 = vmatprep.subr.mxu0 %v454
      %498 = vmatpush1.msra.mxu0 %v453
      %499 = vmatprep.subr.mxu0 %v456
      %500 = vmatpush1.msra.mxu0 %v455
      %501 = vmatprep.subr.mxu0 %v458
      %502 = vmatpush1.msra.mxu0 %v457
      %503 = vmatprep.subr.mxu0 %v460
      %504 = vmatpush1.msra.mxu0 %v459
      %505 = vmatprep.subr.mxu0 %v462
      %506 = vmatpush1.msra.mxu0 %v461
      %507 = vmatprep.subr.mxu0 %v464
      %508 = vmatpush1.msra.mxu0 %v463
      %509 = vmatprep.subr.mxu0 %v466
      %510 = vmatpush1.msra.mxu0 %v465
      %511 = vmatprep.subr.mxu0 %v468
      %512 = vmatpush1.msra.mxu0 %v467
      %513 = vmatprep.subr.mxu0 %v470
      %514 = vmatpush1.msra.mxu0 %v469
      %515 = vmatprep.subr.mxu0 0.0
      %516 = vmatpush1.msra.mxu0 0.0
      %517 = vmatprep.subr.mxu0 0.0
      %518 = vmatpush1.msra.mxu0 0.0
      %519 = vmatprep.subr.mxu0 0.0
      %520 = vmatpush1.msra.mxu0 0.0
      %521 = vmatprep.subr.mxu0 0.0
      %522 = vmatpush1.msra.mxu0 0.0
      %523 = vmatprep.subr.mxu0 0.0
      %524 = vmatpush1.msra.mxu0 0.0
      %525 = vmatprep.subr.mxu0 0.0
      %526 = vmatpush1.msra.mxu0 0.0
      %527 = vmatprep.subr.mxu0 0.0
      %528 = vmatpush1.msra.mxu0 0.0
      %529 = vmatprep.subr.mxu0 0.0
      %530 = vmatpush1.msra.mxu0 0.0
      %531 = vmatprep.subr.mxu0 0.0
      %532 = vmatpush1.msra.mxu0 0.0
      %533 = vmatprep.subr.mxu0 0.0
      %534 = vmatpush1.msra.mxu0 0.0
      %535 = vmatprep.subr.mxu0 0.0
      %536 = vmatpush1.msra.mxu0 0.0
      %537 = vmatprep.subr.mxu0 0.0
      %538 = vmatpush1.msra.mxu0 0.0
      %539 = vmatprep.subr.mxu0 0.0
      %540 = vmatpush1.msra.mxu0 0.0
      %541 = vmatprep.subr.mxu0 0.0
      %542 = vmatpush1.msra.mxu0 0.0
      %543 = vmatprep.subr.mxu0 0.0
      %544 = vmatpush1.msra.mxu0 0.0
      %545 = vmatprep.subr.mxu0 0.0
      %546 = vmatpush1.msra.mxu0 0.0
      %547 = vmatprep.mubr.f32.mxu0 0.0
      %548 = vmatmul.mubr.f32.gmra.mrb[0].mxu0 %v408
      %v549 = vpop.f32.mrb[0].mxu0
      %v550 = vadd.f32 %v476, %v549
      %v551 = vpop.f32.mrb[0].mxu0
      %v552 = vadd.f32 %v480, %v551
      %553 = vmatprep.mubr.f32.mxu0 0.0
      %554 = vmatmul.mubr.f32.gmra.mrb[0].mxu0 %v410
      %v555 = vpop.f32.mrb[0].mxu0
      %v556 = vadd.f32 %v476, %v555
      %v557 = vpop.f32.mrb[0].mxu0
      %v558 = vadd.f32 %v480, %v557
      %559 = vmatprep.mubr.f32.mxu0 0.0
      %560 = vmatmul.mubr.f32.gmra.mrb[0].mxu0 %v412
      %v561 = vpop.f32.mrb[0].mxu0
      %v562 = vadd.f32 %v476, %v561
      %v563 = vpop.f32.mrb[0].mxu0
      %v564 = vadd.f32 %v480, %v563
      %565 = vmatprep.mubr.f32.mxu0 0.0
      %566 = vmatmul.mubr.f32.gmra.mrb[0].mxu0 %v414
      %v567 = vpop.f32.mrb[0].mxu0
      %v568 = vadd.f32 %v476, %v567
      %v569 = vpop.f32.mrb[0].mxu0
      %v570 = vadd.f32 %v480, %v569
      %571 = vmatprep.mubr.f32.mxu0 0.0
      %572 = vmatmul.mubr.f32.gmra.mrb[0].mxu0 %v416
      %v573 = vpop.f32.mrb[0].mxu0
      %v574 = vadd.f32 %v476, %v573
      %v575 = vpop.f32.mrb[0].mxu0
      %v576 = vadd.f32 %v480, %v575
      %577 = vmatprep.mubr.f32.mxu0 0.0
      %578 = vmatmul.mubr.f32.gmra.mrb[0].mxu0 %v418
      %v579 = vpop.f32.mrb[0].mxu0
      %v580 = vadd.f32 %v476, %v579
      %v581 = vpop.f32.mrb[0].mxu0
      %v582 = vadd.f32 %v480, %v581
      %583 = vmatprep.mubr.f32.mxu0 0.0
      %584 = vmatmul.mubr.f32.gmra.mrb[0].mxu0 %v420
      %v585 = vpop.f32.mrb[0].mxu0
      %v586 = vadd.f32 %v476, %v585
      %v587 = vpop.f32.mrb[0].mxu0
      %v588 = vadd.f32 %v480, %v587
      %589 = vmatprep.mubr.f32.mxu0 0.0
      %590 = vmatmul.mubr.f32.gmra.mrb[0].mxu0 %v422
      %v591 = vpop.f32.mrb[0].mxu0
      %v592 = vadd.f32 %v476, %v591
      %v593 = vpop.f32.mrb[0].mxu0
      %v594 = vadd.f32 %v480, %v593
      %595 = vmatprep.mubr.f32.mxu0 0.0
      %596 = vmatmul.mubr.f32.gmra.mrb[0].mxu0 %v424
      %v597 = vpop.f32.mrb[0].mxu0
      %v598 = vadd.f32 %v476, %v597
      %v599 = vpop.f32.mrb[0].mxu0
      %v600 = vadd.f32 %v480, %v599
      %601 = vmatprep.mubr.f32.mxu0 0.0
      %602 = vmatmul.mubr.f32.gmra.mrb[0].mxu0 %v426
      %v603 = vpop.f32.mrb[0].mxu0
      %v604 = vadd.f32 %v476, %v603
      %v605 = vpop.f32.mrb[0].mxu0
      %v606 = vadd.f32 %v480, %v605
      %607 = vmatprep.mubr.f32.mxu0 0.0
      %608 = vmatmul.mubr.f32.gmra.mrb[0].mxu0 %v428
      %v609 = vpop.f32.mrb[0].mxu0
      %v610 = vadd.f32 %v476, %v609
      %v611 = vpop.f32.mrb[0].mxu0
      %v612 = vadd.f32 %v480, %v611
      %613 = vmatprep.mubr.f32.mxu0 0.0
      %614 = vmatmul.mubr.f32.gmra.mrb[0].mxu0 %v430
      %v615 = vpop.f32.mrb[0].mxu0
      %v616 = vadd.f32 %v476, %v615
      %v617 = vpop.f32.mrb[0].mxu0
      %v618 = vadd.f32 %v480, %v617
      %619 = vmatprep.mubr.f32.mxu0 0.0
      %620 = vmatmul.mubr.f32.gmra.mrb[0].mxu0 %v432
      %v621 = vpop.f32.mrb[0].mxu0
      %v622 = vadd.f32 %v476, %v621
      %v623 = vpop.f32.mrb[0].mxu0
      %v624 = vadd.f32 %v480, %v623
      %625 = vmatprep.mubr.f32.mxu0 0.0
      %626 = vmatmul.mubr.f32.gmra.mrb[0].mxu0 %v434
      %v627 = vpop.f32.mrb[0].mxu0
      %v628 = vadd.f32 %v476, %v627
      %v629 = vpop.f32.mrb[0].mxu0
      %v630 = vadd.f32 %v480, %v629
      %631 = vmatprep.mubr.f32.mxu0 0.0
      %632 = vmatmul.mubr.f32.gmra.mrb[0].mxu0 %v436
      %v633 = vpop.f32.mrb[0].mxu0
      %v634 = vadd.f32 %v476, %v633
      %v635 = vpop.f32.mrb[0].mxu0
      %v636 = vadd.f32 %v480, %v635
      %637 = vmatprep.mubr.f32.mxu0 0.0
      %638 = vmatmul.mubr.f32.gmra.mrb[0].mxu0 %v438
      %v639 = vpop.f32.mrb[0].mxu0
      %v640 = vadd.f32 %v476, %v639
      %v641 = vpop.f32.mrb[0].mxu0
      %v642 = vadd.f32 %v480, %v641
      %643 = vdwg.mxu0
      %v644 = vpack.c.bf16 %v556, %v550
      %v645 = vpack.c.bf16 %v568, %v562
      %v646 = vpack.c.bf16 %v580, %v574
      %v647 = vpack.c.bf16 %v592, %v586
      %v648 = vpack.c.bf16 %v604, %v598
      %v649 = vpack.c.bf16 %v616, %v610
      %v650 = vpack.c.bf16 %v628, %v622
      %v651 = vpack.c.bf16 %v640, %v634
      %v660 = vunpack.c.l.b16 %v644
      %v661 = vunpack.c.h.b16 %v644
      %v662 = vunpack.c.l.b16 %v645
      %v663 = vunpack.c.h.b16 %v645
      %v664 = vunpack.c.l.b16 %v646
      %v665 = vunpack.c.h.b16 %v646
      %v666 = vunpack.c.l.b16 %v647
      %v667 = vunpack.c.h.b16 %v647
      %v668 = vunpack.c.l.b16 %v648
      %v669 = vunpack.c.h.b16 %v648
      %v670 = vunpack.c.l.b16 %v649
      %v671 = vunpack.c.h.b16 %v649
      %v672 = vunpack.c.l.b16 %v650
      %v673 = vunpack.c.h.b16 %v650
      %v674 = vunpack.c.l.b16 %v651
      %v675 = vunpack.c.h.b16 %v651
      %v676 = vpack.c.b16 %v660, %v660
      %v677 = vpack.c.b16 %v661, %v661
      %v678 = vpack.c.b16 %v662, %v662
      %v679 = vpack.c.b16 %v663, %v663
      %v680 = vpack.c.b16 %v664, %v664
      %v681 = vpack.c.b16 %v665, %v665
      %v682 = vpack.c.b16 %v666, %v666
      %v683 = vpack.c.b16 %v667, %v667
      %v684 = vpack.c.b16 %v668, %v668
      %v685 = vpack.c.b16 %v669, %v669
      %v686 = vpack.c.b16 %v670, %v670
      %v687 = vpack.c.b16 %v671, %v671
      %v688 = vpack.c.b16 %v672, %v672
      %v689 = vpack.c.b16 %v673, %v673
      %v690 = vpack.c.b16 %v674, %v674
      %v691 = vpack.c.b16 %v675, %v675
      %708 = vst [vmem:[%s207] sm:$0xf] %v676
      %709 = vst [vmem:[%s207 + $0x4] sm:$0xf] %v677
      %710 = vst [vmem:[%s207 + $0x8] sm:$0xf] %v678
      %711 = vst [vmem:[%s207 + $0xc] sm:$0xf] %v679
      %712 = vst [vmem:[%s207 + $0x10] sm:$0xf] %v680
      %713 = vst [vmem:[%s207 + $0x14] sm:$0xf] %v681
      %714 = vst [vmem:[%s207 + $0x18] sm:$0xf] %v682
      %715 = vst [vmem:[%s207 + $0x1c] sm:$0xf] %v683
      %716 = vst [vmem:[%s207 + $0x20] sm:$0xf] %v684
      %717 = vst [vmem:[%s207 + $0x24] sm:$0xf] %v685
      %718 = vst [vmem:[%s207 + $0x28] sm:$0xf] %v686
      %719 = vst [vmem:[%s207 + $0x2c] sm:$0xf] %v687
      %720 = vst [vmem:[%s207 + $0x30] sm:$0xf] %v688
      %721 = vst [vmem:[%s207 + $0x34] sm:$0xf] %v689
      %722 = vst [vmem:[%s207 + $0x38] sm:$0xf] %v690
      %723 = vst [vmem:[%s207 + $0x3c] sm:$0xf] %v691
      %724 = vst [vmem:[%s213] sm:$0xff] %v552
      %725 = vst [vmem:[%s213 + $0x8] sm:$0xff] %v558
      %726 = vst [vmem:[%s213 + $0x10] sm:$0xff] %v564
      %727 = vst [vmem:[%s213 + $0x18] sm:$0xff] %v570
      %728 = vst [vmem:[%s213 + $0x20] sm:$0xff] %v576
      %729 = vst [vmem:[%s213 + $0x28] sm:$0xff] %v582
      %730 = vst [vmem:[%s213 + $0x30] sm:$0xff] %v588
      %731 = vst [vmem:[%s213 + $0x38] sm:$0xff] %v594
      %732 = vst [vmem:[%s213 + $0x40] sm:$0xff] %v600
      %733 = vst [vmem:[%s213 + $0x48] sm:$0xff] %v606
      %734 = vst [vmem:[%s213 + $0x50] sm:$0xff] %v612
      %735 = vst [vmem:[%s213 + $0x58] sm:$0xff] %v618
      %736 = vst [vmem:[%s213 + $0x60] sm:$0xff] %v624
      %737 = vst [vmem:[%s213 + $0x68] sm:$0xff] %v630
      %738 = vst [vmem:[%s213 + $0x70] sm:$0xff] %v636
      %739 = vst [vmem:[%s213 + $0x78] sm:$0xff] %v642
      %s740 = smul.u32 16, %s16
      %p741 = scmp.lt.s32.totalorder %s740, 31
      %s742 = scalar_select %p741, %s740, 31
      %s743 = smul.addr %s742, 4
      %s744 = scalar_lea.vmem %s3, %s743
      %s745 = smul.u32 16, %s16
      %p746 = scmp.lt.s32.totalorder %s745, 31
      %s747 = scalar_select %p746, %s745, 31
      %s748 = smul.addr %s747, 8
      %s749 = scalar_lea.vmem %s4, %s748
      // Predicated region
      $region33: #{gcn_forward.6} parent=31 // pred_check
        %p750 = pneg %p102
      $region34: #{gcn_forward.6} parent=31 // pred_check_branch
        %752 = sbr.rel (%p750) target = $region36
      $region35: #{gcn_forward.6} parent=31 // pred_region
        %s753 = smul.u32 16, %s16
      $region36: #{gcn_forward.6} parent=31 // pred_fallthru
        _
      // Predicated region
      $region37: #{gcn_forward.6} parent=31 // pred_check
        %p754 = pneg %p128
      $region38: #{gcn_forward.6} parent=31 // pred_check_branch
        %756 = sbr.rel (%p754) target = $region40
      $region39: #{gcn_forward.6} parent=31 // pred_region
        %s757 = smul.u32 16, %s16
      $region40: #{gcn_forward.6} parent=31 // pred_fallthru
        _
    $region32: #{gcn_forward.6} parent=5 // pred_fallthru
      _
    %p758 = scmp.le.s32.totalorder 2, %s11
    // Predicated region
    $region41: #{gcn_forward.6} parent=5 // pred_check
      %p759 = pneg %p758
    $region42: #{gcn_forward.6} parent=5 // pred_check_branch
      %761 = sbr.rel (%p759) target = $region44
    $region43: #{gcn_forward.6} parent=5 // pred_region
      %s762 = ssub.s32 %s11, 2
      // Predicated region
      $region45: #{gcn_forward.6} parent=43 // pred_check
        %p763 = pneg %p108
      $region46: #{gcn_forward.6} parent=43 // pred_check_branch
        %765 = sbr.rel (%p763) target = $region48
      $region47: #{gcn_forward.6} parent=43 // pred_region
        %s766 = smul.u32 16, %s17
        %p767 = scmp.lt.s32.totalorder %s766, 31
        %s768 = scalar_select %p767, %s766, 31
        %s769 = smul.addr %s768, 4
        %s770 = scalar_lea.vmem %s3, %s769
      $region48: #{gcn_forward.6} parent=43 // pred_fallthru
        _
      // Predicated region
      $region49: #{gcn_forward.6} parent=43 // pred_check
        %p771 = pneg %p134
      $region50: #{gcn_forward.6} parent=43 // pred_check_branch
        %773 = sbr.rel (%p771) target = $region52
      $region51: #{gcn_forward.6} parent=43 // pred_region
        %s774 = smul.u32 16, %s17
        %p775 = scmp.lt.s32.totalorder %s774, 31
        %s776 = scalar_select %p775, %s774, 31
        %s777 = smul.addr %s776, 8
        %s778 = scalar_lea.vmem %s4, %s777
      $region52: #{gcn_forward.6} parent=43 // pred_fallthru
        _
    $region44: #{gcn_forward.6} parent=5 // pred_fallthru
      _
  $region6: #{gcn_forward.6} parent=0 // loop_footer
    %s15 = sadd.s32 1, %s11
  $region7: #{gcn_forward.6} parent=0 // loop_footer_branch
    %10 = sbr.rel target = $region3
  $region8: #{gcn_forward.6} parent=0 // loop_exit
    _

// kernel: gcn_forward.8
$region0: #{gcn_forward.8}
  #allocation0 [shape = 'u32[]', space=smem, size = 0x4, offset = 0x4, fixed_abs, tag = 'smem constant byte address 0x4 - core index']
  #allocation1 [shape = 'u32[144,128]{1,0:T(1,128)}', space=vmem, size = 0x12000, scoped, tag = 'internal scratch']
  %s0 = inlined_call_operand.vmem [shape: f32[256,128], index: 0, kind: input, shape index: {}]
  %s1 = inlined_call_operand.vmem [shape: f32[128,256], index: 1, kind: input, shape index: {}]
  %s2 = inlined_call_operand.vmem [shape: f32[1,256], index: 2, kind: input, shape index: {}]
  %s3 = inlined_call_operand.vmem [shape: bf16[256,128], index: 3, kind: output, shape index: {0}]
  %s4 = inlined_call_operand.vmem [shape: f32[256,128], index: 4, kind: output, shape index: {1}]
  %5 = xla_tuple %s3, %s4
  %s6 = sld [smem:[#allocation0]]
  $region53: #{gcn_forward.8} parent=0
    _
  %s8 = ssub.s32 1, %s6
  %s9 = scalar_select 0, %s8, %s6
  loop: start=0, step=1, limit=4
  $region2: #{gcn_forward.8} parent=0 // loop_pre_header
    _
  $region3: #{gcn_forward.8} parent=0 // loop_header
    %s11 = sphi 0, %s15
    %p12 = scmp.ge.s32.totalorder %s11, 4
    %s21 = sphi 0, %s23
    %s24 = sphi 0, %s21
    %s25 = sphi 0, %s24
    %s41 = sphi 0, %s25
    %s45 = sphi 0, %s45
    %s47 = sphi 0, %s45
    %s48 = sphi 0, %s47
    %s62 = sphi 0, %s48
    %s66 = sphi 0, %s66
    %s68 = sphi 0, %s66
    %s69 = sphi 0, %s68
    %s83 = sphi 0, %s69
    %s89 = sphi 0, %s91
    %s92 = sphi 0, %s89
    %s93 = sphi 0, %s92
    %s109 = sphi 0, %s93
    %s115 = sphi 0, %s117
    %s118 = sphi 0, %s115
    %s119 = sphi 0, %s118
    %s135 = sphi 0, %s119
  $region4: #{gcn_forward.8} parent=0 // loop_header_branch
    %14 = sbr.rel (%p12) target = $region8
  $region5: #{gcn_forward.8} parent=0 // loop_body
    %s16 = ssub.s32 %s11, 1
    %s17 = ssub.s32 %s11, 2
    %s18 = sadd.s32 %s11, 1
    %s19 = ssub.s32 %s11, %s18
    %p20 = scmp.eq.s32.totalorder %s19, 0
    %s22 = sadd.s32 %s21, 1
    %s23 = scalar_select %p20, %s21, %s22
    %p26 = pneg %p20
    %p27 = scmp.eq.s32.totalorder %s11, 1
    %p28 = por %p26, %p27
    %p29 = scmp.ne.s32.totalorder %s21, %s24
    %p30 = scmp.eq.s32.totalorder %s11, 0
    %p31 = por %p29, %p30
    %p32 = scmp.ne.s32.totalorder %s21, %s24
    %p33 = scmp.eq.s32.totalorder %s16, 1
    %p34 = por %p32, %p33
    %p35 = scmp.ne.s32.totalorder %s24, %s25
    %p36 = scmp.eq.s32.totalorder %s16, 0
    %p37 = por %p35, %p36
    %p38 = scmp.ne.s32.totalorder %s24, %s25
    %p39 = scmp.eq.s32.totalorder %s17, 1
    %p40 = por %p38, %p39
    %p42 = scmp.ne.s32.totalorder %s25, %s41
    %p43 = scmp.eq.s32.totalorder %s17, 0
    %p44 = por %p42, %p43
    %s46 = sadd.s32 %s45, 1
    %p49 = scmp.eq.s32.totalorder %s11, 1
    %p50 = scmp.ne.s32.totalorder %s45, %s47
    %p51 = scmp.eq.s32.totalorder %s11, 0
    %p52 = por %p50, %p51
    %p53 = scmp.ne.s32.totalorder %s45, %s47
    %p54 = scmp.eq.s32.totalorder %s16, 1
    %p55 = por %p53, %p54
    %p56 = scmp.ne.s32.totalorder %s47, %s48
    %p57 = scmp.eq.s32.totalorder %s16, 0
    %p58 = por %p56, %p57
    %p59 = scmp.ne.s32.totalorder %s47, %s48
    %p60 = scmp.eq.s32.totalorder %s17, 1
    %p61 = por %p59, %p60
    %p63 = scmp.ne.s32.totalorder %s48, %s62
    %p64 = scmp.eq.s32.totalorder %s17, 0
    %p65 = por %p63, %p64
    %s67 = sadd.s32 %s66, 1
    %p70 = scmp.eq.s32.totalorder %s11, 1
    %p71 = scmp.ne.s32.totalorder %s66, %s68
    %p72 = scmp.eq.s32.totalorder %s11, 0
    %p73 = por %p71, %p72
    %p74 = scmp.ne.s32.totalorder %s66, %s68
    %p75 = scmp.eq.s32.totalorder %s16, 1
    %p76 = por %p74, %p75
    %p77 = scmp.ne.s32.totalorder %s68, %s69
    %p78 = scmp.eq.s32.totalorder %s16, 0
    %p79 = por %p77, %p78
    %p80 = scmp.ne.s32.totalorder %s68, %s69
    %p81 = scmp.eq.s32.totalorder %s17, 1
    %p82 = por %p80, %p81
    %p84 = scmp.ne.s32.totalorder %s69, %s83
    %p85 = scmp.eq.s32.totalorder %s17, 0
    %p86 = por %p84, %p85
    %s87 = ssub.s32 %s11, %s18
    %p88 = scmp.eq.s32.totalorder %s87, 0
    %s90 = sadd.s32 %s89, 1
    %s91 = scalar_select %p88, %s89, %s90
    %p94 = pneg %p88
    %p95 = scmp.eq.s32.totalorder %s11, 1
    %p96 = por %p94, %p95
    %p97 = scmp.ne.s32.totalorder %s89, %s92
    %p98 = scmp.eq.s32.totalorder %s11, 0
    %p99 = por %p97, %p98
    %p100 = scmp.ne.s32.totalorder %s89, %s92
    %p101 = scmp.eq.s32.totalorder %s16, 1
    %p102 = por %p100, %p101
    %p103 = scmp.ne.s32.totalorder %s92, %s93
    %p104 = scmp.eq.s32.totalorder %s16, 0
    %p105 = por %p103, %p104
    %p106 = scmp.ne.s32.totalorder %s92, %s93
    %p107 = scmp.eq.s32.totalorder %s17, 1
    %p108 = por %p106, %p107
    %p110 = scmp.ne.s32.totalorder %s93, %s109
    %p111 = scmp.eq.s32.totalorder %s17, 0
    %p112 = por %p110, %p111
    %s113 = ssub.s32 %s11, %s18
    %p114 = scmp.eq.s32.totalorder %s113, 0
    %s116 = sadd.s32 %s115, 1
    %s117 = scalar_select %p114, %s115, %s116
    %p120 = pneg %p114
    %p121 = scmp.eq.s32.totalorder %s11, 1
    %p122 = por %p120, %p121
    %p123 = scmp.ne.s32.totalorder %s115, %s118
    %p124 = scmp.eq.s32.totalorder %s11, 0
    %p125 = por %p123, %p124
    %p126 = scmp.ne.s32.totalorder %s115, %s118
    %p127 = scmp.eq.s32.totalorder %s16, 1
    %p128 = por %p126, %p127
    %p129 = scmp.ne.s32.totalorder %s118, %s119
    %p130 = scmp.eq.s32.totalorder %s16, 0
    %p131 = por %p129, %p130
    %p132 = scmp.ne.s32.totalorder %s118, %s119
    %p133 = scmp.eq.s32.totalorder %s17, 1
    %p134 = por %p132, %p133
    %p136 = scmp.ne.s32.totalorder %s119, %s135
    %p137 = scmp.eq.s32.totalorder %s17, 0
    %p138 = por %p136, %p137
    %p139 = scmp.le.s32.totalorder 1, %s11
    %p140 = scmp.lt.s32.totalorder %s11, 3
    %p141 = pnand %p139, %p140
    %p142 = pneg %p141
    // Predicated region
    $region9: #{gcn_forward.8} parent=5 // pred_check
      _
    $region10: #{gcn_forward.8} parent=5 // pred_check_branch
      %144 = sbr.rel (%p141) target = $region12
    $region11: #{gcn_forward.8} parent=5 // pred_region
      %s145 = ssub.s32 %s11, 1
      // Predicated region
      $region13: #{gcn_forward.8} parent=11 // pred_check
        %p146 = pneg %p58
      $region14: #{gcn_forward.8} parent=11 // pred_check_branch
        %148 = sbr.rel (%p146) target = $region16
      $region15: #{gcn_forward.8} parent=11 // pred_region
        _
      $region16: #{gcn_forward.8} parent=11 // pred_fallthru
        _
      // Predicated region
      $region17: #{gcn_forward.8} parent=11 // pred_check
        %p149 = pneg %p79
      $region18: #{gcn_forward.8} parent=11 // pred_check_branch
        %151 = sbr.rel (%p149) target = $region20
      $region19: #{gcn_forward.8} parent=11 // pred_region
        _
      $region20: #{gcn_forward.8} parent=11 // pred_fallthru
        _
    $region12: #{gcn_forward.8} parent=5 // pred_fallthru
      _
    %p152 = scmp.lt.s32.totalorder %s11, 2
    // Predicated region
    $region21: #{gcn_forward.8} parent=5 // pred_check
      %p153 = pneg %p152
    $region22: #{gcn_forward.8} parent=5 // pred_check_branch
      %155 = sbr.rel (%p153) target = $region24
    $region23: #{gcn_forward.8} parent=5 // pred_region
      // Predicated region
      $region25: #{gcn_forward.8} parent=23 // pred_check
        %p156 = pneg %p31
      $region26: #{gcn_forward.8} parent=23 // pred_check_branch
        %158 = sbr.rel (%p156) target = $region28
      $region27: #{gcn_forward.8} parent=23 // pred_region
        %s159 = smul.u32 16, %s11
        %p160 = scmp.lt.s32.totalorder %s159, 31
        %s161 = scalar_select %p160, %s159, 31
        %s162 = smul.addr %s161, 8
        %s163 = scalar_lea.vmem %s0, %s162
        %s164 = smul.u32 16, %s11
      $region28: #{gcn_forward.8} parent=23 // pred_fallthru
        _
    $region24: #{gcn_forward.8} parent=5 // pred_fallthru
      _
    %p165 = scmp.le.s32.totalorder 1, %s11
    %p166 = scmp.lt.s32.totalorder %s11, 3
    %p167 = pnand %p165, %p166
    %p168 = pneg %p167
    // Predicated region
    $region29: #{gcn_forward.8} parent=5 // pred_check
      _
    $region30: #{gcn_forward.8} parent=5 // pred_check_branch
      %170 = sbr.rel (%p167) target = $region32
    $region31: #{gcn_forward.8} parent=5 // pred_region
      %s171 = ssub.s32 %s11, 1
      %s172 = smul.u32 16, %s16
      %p173 = scmp.lt.s32.totalorder %s172, 31
      %s174 = scalar_select %p173, %s172, 31
      %s175 = smul.addr %s174, 8
      %s176 = scalar_lea.vmem %s0, %s175
      %p177 = pneg %p37
      %p178 = pneg %p34
      %p179 = pneg %p58
      %p180 = pneg %p55
      %p181 = pneg %p79
      %p182 = pneg %p76
      %p183 = pneg %p105
      %p184 = pneg %p102
      %s185 = smul.u32 16, %s16
      %p186 = scmp.lt.s32.totalorder %s185, 31
      %s187 = scalar_select %p186, %s185, 31
      %s188 = smul.addr %s187, 4
      %s189 = scalar_lea.vmem %s3, %s188
      %p190 = pneg %p131
      %p191 = pneg %p128
      %s192 = smul.u32 16, %s16
      %p193 = scmp.lt.s32.totalorder %s192, 31
      %s194 = scalar_select %p193, %s192, 31
      %s195 = smul.addr %s194, 8
      %s196 = scalar_lea.vmem %s4, %s195
      %s197 = smul.u32 16, %s16
      %p198 = scmp.lt.s32.totalorder %s197, 31
      %s199 = scalar_select %p198, %s197, 31
      %s200 = smul.addr %s199, 8
      %s201 = scalar_lea.vmem %s0, %s200
      %s202 = smul.u32 16, %s16
      %s203 = smul.u32 16, %s16
      %p204 = scmp.lt.s32.totalorder %s203, 31
      %s205 = scalar_select %p204, %s203, 31
      %s206 = smul.addr %s205, 4
      %s207 = scalar_lea.vmem %s3, %s206
      %s208 = smul.u32 16, %s16
      %s209 = smul.u32 16, %s16
      %p210 = scmp.lt.s32.totalorder %s209, 31
      %s211 = scalar_select %p210, %s209, 31
      %s212 = smul.addr %s211, 8
      %s213 = scalar_lea.vmem %s4, %s212
      %s214 = smul.u32 16, %s16
      %v215 = vld [vmem:[%s201] sm:$0xff]
      %v216 = vld [vmem:[%s201 + $0x8] sm:$0xff]
      %v217 = vld [vmem:[%s201 + $0x10] sm:$0xff]
      %v218 = vld [vmem:[%s201 + $0x18] sm:$0xff]
      %v219 = vld [vmem:[%s201 + $0x20] sm:$0xff]
      %v220 = vld [vmem:[%s201 + $0x28] sm:$0xff]
      %v221 = vld [vmem:[%s201 + $0x30] sm:$0xff]
      %v222 = vld [vmem:[%s201 + $0x38] sm:$0xff]
      %v223 = vld [vmem:[%s201 + $0x40] sm:$0xff]
      %v224 = vld [vmem:[%s201 + $0x48] sm:$0xff]
      %v225 = vld [vmem:[%s201 + $0x50] sm:$0xff]
      %v226 = vld [vmem:[%s201 + $0x58] sm:$0xff]
      %v227 = vld [vmem:[%s201 + $0x60] sm:$0xff]
      %v228 = vld [vmem:[%s201 + $0x68] sm:$0xff]
      %v229 = vld [vmem:[%s201 + $0x70] sm:$0xff]
      %v230 = vld [vmem:[%s201 + $0x78] sm:$0xff]
      %v231 = vld [vmem:[%s1] sm:$0xff]
      %v232 = vld [vmem:[%s1 + $0x8] sm:$0xff]
      %v233 = vld [vmem:[%s1 + $0x10] sm:$0xff]
      %v234 = vld [vmem:[%s1 + $0x18] sm:$0xff]
      %v235 = vld [vmem:[%s1 + $0x20] sm:$0xff]
      %v236 = vld [vmem:[%s1 + $0x28] sm:$0xff]
      %v237 = vld [vmem:[%s1 + $0x30] sm:$0xff]
      %v238 = vld [vmem:[%s1 + $0x38] sm:$0xff]
      %v239 = vld [vmem:[%s1 + $0x40] sm:$0xff]
      %v240 = vld [vmem:[%s1 + $0x48] sm:$0xff]
      %v241 = vld [vmem:[%s1 + $0x50] sm:$0xff]
      %v242 = vld [vmem:[%s1 + $0x58] sm:$0xff]
      %v243 = vld [vmem:[%s1 + $0x60] sm:$0xff]
      %v244 = vld [vmem:[%s1 + $0x68] sm:$0xff]
      %v245 = vld [vmem:[%s1 + $0x70] sm:$0xff]
      %v246 = vld [vmem:[%s1 + $0x78] sm:$0xff]
      %v247 = vld [vmem:[%s1 + $0x80] sm:$0xff]
      %v248 = vld [vmem:[%s1 + $0x88] sm:$0xff]
      %v249 = vld [vmem:[%s1 + $0x90] sm:$0xff]
      %v250 = vld [vmem:[%s1 + $0x98] sm:$0xff]
      %v251 = vld [vmem:[%s1 + $0xa0] sm:$0xff]
      %v252 = vld [vmem:[%s1 + $0xa8] sm:$0xff]
      %v253 = vld [vmem:[%s1 + $0xb0] sm:$0xff]
      %v254 = vld [vmem:[%s1 + $0xb8] sm:$0xff]
      %v255 = vld [vmem:[%s1 + $0xc0] sm:$0xff]
      %v256 = vld [vmem:[%s1 + $0xc8] sm:$0xff]
      %v257 = vld [vmem:[%s1 + $0xd0] sm:$0xff]
      %v258 = vld [vmem:[%s1 + $0xd8] sm:$0xff]
      %v259 = vld [vmem:[%s1 + $0xe0] sm:$0xff]
      %v260 = vld [vmem:[%s1 + $0xe8] sm:$0xff]
      %v261 = vld [vmem:[%s1 + $0xf0] sm:$0xff]
      %v262 = vld [vmem:[%s1 + $0xf8] sm:$0xff]
      %v263 = vld [vmem:[%s2] sm:$0x3]
      %v265 = vlaneseq
      %v266 = vshrl.u32 %v265, 7
      %v267 = vsub.s32 0, %v266
      %v268 = vrot.slane %v263, %v267
      %v269 = vlaneseq
      %v270 = vshrl.u32 %v269, 7
      %v271 = vsub.s32 1, %v270
      %v272 = vrot.slane %v263, %v271
      %275 = vmatprep.subr.mxu0 %v232
      %276 = vmatpush1.msra.mxu0 %v231
      %277 = vmatprep.subr.mxu0 %v234
      %278 = vmatpush1.msra.mxu0 %v233
      %279 = vmatprep.subr.mxu0 %v236
      %280 = vmatpush1.msra.mxu0 %v235
      %281 = vmatprep.subr.mxu0 %v238
      %282 = vmatpush1.msra.mxu0 %v237
      %283 = vmatprep.subr.mxu0 %v240
      %284 = vmatpush1.msra.mxu0 %v239
      %285 = vmatprep.subr.mxu0 %v242
      %286 = vmatpush1.msra.mxu0 %v241
      %287 = vmatprep.subr.mxu0 %v244
      %288 = vmatpush1.msra.mxu0 %v243
      %289 = vmatprep.subr.mxu0 %v246
      %290 = vmatpush1.msra.mxu0 %v245
      %291 = vmatprep.subr.mxu0 %v248
      %292 = vmatpush1.msra.mxu0 %v247
      %293 = vmatprep.subr.mxu0 %v250
      %294 = vmatpush1.msra.mxu0 %v249
      %295 = vmatprep.subr.mxu0 %v252
      %296 = vmatpush1.msra.mxu0 %v251
      %297 = vmatprep.subr.mxu0 %v254
      %298 = vmatpush1.msra.mxu0 %v253
      %299 = vmatprep.subr.mxu0 %v256
      %300 = vmatpush1.msra.mxu0 %v255
      %301 = vmatprep.subr.mxu0 %v258
      %302 = vmatpush1.msra.mxu0 %v257
      %303 = vmatprep.subr.mxu0 %v260
      %304 = vmatpush1.msra.mxu0 %v259
      %305 = vmatprep.subr.mxu0 %v262
      %306 = vmatpush1.msra.mxu0 %v261
      %307 = vmatprep.subr.mxu0 0.0
      %308 = vmatpush1.msra.mxu0 0.0
      %309 = vmatprep.subr.mxu0 0.0
      %310 = vmatpush1.msra.mxu0 0.0
      %311 = vmatprep.subr.mxu0 0.0
      %312 = vmatpush1.msra.mxu0 0.0
      %313 = vmatprep.subr.mxu0 0.0
      %314 = vmatpush1.msra.mxu0 0.0
      %315 = vmatprep.subr.mxu0 0.0
      %316 = vmatpush1.msra.mxu0 0.0
      %317 = vmatprep.subr.mxu0 0.0
      %318 = vmatpush1.msra.mxu0 0.0
      %319 = vmatprep.subr.mxu0 0.0
      %320 = vmatpush1.msra.mxu0 0.0
      %321 = vmatprep.subr.mxu0 0.0
      %322 = vmatpush1.msra.mxu0 0.0
      %323 = vmatprep.subr.mxu0 0.0
      %324 = vmatpush1.msra.mxu0 0.0
      %325 = vmatprep.subr.mxu0 0.0
      %326 = vmatpush1.msra.mxu0 0.0
      %327 = vmatprep.subr.mxu0 0.0
      %328 = vmatpush1.msra.mxu0 0.0
      %329 = vmatprep.subr.mxu0 0.0
      %330 = vmatpush1.msra.mxu0 0.0
      %331 = vmatprep.subr.mxu0 0.0
      %332 = vmatpush1.msra.mxu0 0.0
      %333 = vmatprep.subr.mxu0 0.0
      %334 = vmatpush1.msra.mxu0 0.0
      %335 = vmatprep.subr.mxu0 0.0
      %336 = vmatpush1.msra.mxu0 0.0
      %337 = vmatprep.subr.mxu0 0.0
      %338 = vmatpush1.msra.mxu0 0.0
      %339 = vmatprep.mubr.f32.mxu0 0.0
      %340 = vmatmul.mubr.f32.gmra.mrb[0].mxu0 %v215
      %v341 = vpop.f32.mrb[0].mxu0
      %v342 = vadd.f32 %v268, %v341
      %v343 = vpop.f32.mrb[0].mxu0
      %v344 = vadd.f32 %v272, %v343
      %345 = vmatprep.mubr.f32.mxu0 0.0
      %346 = vmatmul.mubr.f32.gmra.mrb[0].mxu0 %v216
      %v347 = vpop.f32.mrb[0].mxu0
      %v348 = vadd.f32 %v268, %v347
      %v349 = vpop.f32.mrb[0].mxu0
      %v350 = vadd.f32 %v272, %v349
      %351 = vmatprep.mubr.f32.mxu0 0.0
      %352 = vmatmul.mubr.f32.gmra.mrb[0].mxu0 %v217
      %v353 = vpop.f32.mrb[0].mxu0
      %v354 = vadd.f32 %v268, %v353
      %v355 = vpop.f32.mrb[0].mxu0
      %v356 = vadd.f32 %v272, %v355
      %357 = vmatprep.mubr.f32.mxu0 0.0
      %358 = vmatmul.mubr.f32.gmra.mrb[0].mxu0 %v218
      %v359 = vpop.f32.mrb[0].mxu0
      %v360 = vadd.f32 %v268, %v359
      %v361 = vpop.f32.mrb[0].mxu0
      %v362 = vadd.f32 %v272, %v361
      %363 = vmatprep.mubr.f32.mxu0 0.0
      %364 = vmatmul.mubr.f32.gmra.mrb[0].mxu0 %v219
      %v365 = vpop.f32.mrb[0].mxu0
      %v366 = vadd.f32 %v268, %v365
      %v367 = vpop.f32.mrb[0].mxu0
      %v368 = vadd.f32 %v272, %v367
      %369 = vmatprep.mubr.f32.mxu0 0.0
      %370 = vmatmul.mubr.f32.gmra.mrb[0].mxu0 %v220
      %v371 = vpop.f32.mrb[0].mxu0
      %v372 = vadd.f32 %v268, %v371
      %v373 = vpop.f32.mrb[0].mxu0
      %v374 = vadd.f32 %v272, %v373
      %375 = vmatprep.mubr.f32.mxu0 0.0
      %376 = vmatmul.mubr.f32.gmra.mrb[0].mxu0 %v221
      %v377 = vpop.f32.mrb[0].mxu0
      %v378 = vadd.f32 %v268, %v377
      %v379 = vpop.f32.mrb[0].mxu0
      %v380 = vadd.f32 %v272, %v379
      %381 = vmatprep.mubr.f32.mxu0 0.0
      %382 = vmatmul.mubr.f32.gmra.mrb[0].mxu0 %v222
      %v383 = vpop.f32.mrb[0].mxu0
      %v384 = vadd.f32 %v268, %v383
      %v385 = vpop.f32.mrb[0].mxu0
      %v386 = vadd.f32 %v272, %v385
      %387 = vmatprep.mubr.f32.mxu0 0.0
      %388 = vmatmul.mubr.f32.gmra.mrb[0].mxu0 %v223
      %v389 = vpop.f32.mrb[0].mxu0
      %v390 = vadd.f32 %v268, %v389
      %v391 = vpop.f32.mrb[0].mxu0
      %v392 = vadd.f32 %v272, %v391
      %393 = vmatprep.mubr.f32.mxu0 0.0
      %394 = vmatmul.mubr.f32.gmra.mrb[0].mxu0 %v224
      %v395 = vpop.f32.mrb[0].mxu0
      %v396 = vadd.f32 %v268, %v395
      %v397 = vpop.f32.mrb[0].mxu0
      %v398 = vadd.f32 %v272, %v397
      %399 = vmatprep.mubr.f32.mxu0 0.0
      %400 = vmatmul.mubr.f32.gmra.mrb[0].mxu0 %v225
      %v401 = vpop.f32.mrb[0].mxu0
      %v402 = vadd.f32 %v268, %v401
      %v403 = vpop.f32.mrb[0].mxu0
      %v404 = vadd.f32 %v272, %v403
      %405 = vmatprep.mubr.f32.mxu0 0.0
      %406 = vmatmul.mubr.f32.gmra.mrb[0].mxu0 %v226
      %v407 = vpop.f32.mrb[0].mxu0
      %v408 = vadd.f32 %v268, %v407
      %v409 = vpop.f32.mrb[0].mxu0
      %v410 = vadd.f32 %v272, %v409
      %411 = vmatprep.mubr.f32.mxu0 0.0
      %412 = vmatmul.mubr.f32.gmra.mrb[0].mxu0 %v227
      %v413 = vpop.f32.mrb[0].mxu0
      %v414 = vadd.f32 %v268, %v413
      %v415 = vpop.f32.mrb[0].mxu0
      %v416 = vadd.f32 %v272, %v415
      %417 = vmatprep.mubr.f32.mxu0 0.0
      %418 = vmatmul.mubr.f32.gmra.mrb[0].mxu0 %v228
      %v419 = vpop.f32.mrb[0].mxu0
      %v420 = vadd.f32 %v268, %v419
      %v421 = vpop.f32.mrb[0].mxu0
      %v422 = vadd.f32 %v272, %v421
      %423 = vmatprep.mubr.f32.mxu0 0.0
      %424 = vmatmul.mubr.f32.gmra.mrb[0].mxu0 %v229
      %v425 = vpop.f32.mrb[0].mxu0
      %v426 = vadd.f32 %v268, %v425
      %v427 = vpop.f32.mrb[0].mxu0
      %v428 = vadd.f32 %v272, %v427
      %429 = vmatprep.mubr.f32.mxu0 0.0
      %430 = vmatmul.mubr.f32.gmra.mrb[0].mxu0 %v230
      %v431 = vpop.f32.mrb[0].mxu0
      %v432 = vadd.f32 %v268, %v431
      %v433 = vpop.f32.mrb[0].mxu0
      %v434 = vadd.f32 %v272, %v433
      %435 = vdwg.mxu0
      %v436 = vpack.c.bf16 %v348, %v342
      %v437 = vpack.c.bf16 %v360, %v354
      %v438 = vpack.c.bf16 %v372, %v366
      %v439 = vpack.c.bf16 %v384, %v378
      %v440 = vpack.c.bf16 %v396, %v390
      %v441 = vpack.c.bf16 %v408, %v402
      %v442 = vpack.c.bf16 %v420, %v414
      %v443 = vpack.c.bf16 %v432, %v426
      %v452 = vunpack.c.l.b16 %v436
      %v453 = vunpack.c.h.b16 %v436
      %v454 = vunpack.c.l.b16 %v437
      %v455 = vunpack.c.h.b16 %v437
      %v456 = vunpack.c.l.b16 %v438
      %v457 = vunpack.c.h.b16 %v438
      %v458 = vunpack.c.l.b16 %v439
      %v459 = vunpack.c.h.b16 %v439
      %v460 = vunpack.c.l.b16 %v440
      %v461 = vunpack.c.h.b16 %v440
      %v462 = vunpack.c.l.b16 %v441
      %v463 = vunpack.c.h.b16 %v441
      %v464 = vunpack.c.l.b16 %v442
      %v465 = vunpack.c.h.b16 %v442
      %v466 = vunpack.c.l.b16 %v443
      %v467 = vunpack.c.h.b16 %v443
      %v468 = vpack.c.b16 %v452, %v452
      %v469 = vpack.c.b16 %v453, %v453
      %v470 = vpack.c.b16 %v454, %v454
      %v471 = vpack.c.b16 %v455, %v455
      %v472 = vpack.c.b16 %v456, %v456
      %v473 = vpack.c.b16 %v457, %v457
      %v474 = vpack.c.b16 %v458, %v458
      %v475 = vpack.c.b16 %v459, %v459
      %v476 = vpack.c.b16 %v460, %v460
      %v477 = vpack.c.b16 %v461, %v461
      %v478 = vpack.c.b16 %v462, %v462
      %v479 = vpack.c.b16 %v463, %v463
      %v480 = vpack.c.b16 %v464, %v464
      %v481 = vpack.c.b16 %v465, %v465
      %v482 = vpack.c.b16 %v466, %v466
      %v483 = vpack.c.b16 %v467, %v467
      %500 = vst [vmem:[%s207] sm:$0xf] %v468
      %501 = vst [vmem:[%s207 + $0x4] sm:$0xf] %v469
      %502 = vst [vmem:[%s207 + $0x8] sm:$0xf] %v470
      %503 = vst [vmem:[%s207 + $0xc] sm:$0xf] %v471
      %504 = vst [vmem:[%s207 + $0x10] sm:$0xf] %v472
      %505 = vst [vmem:[%s207 + $0x14] sm:$0xf] %v473
      %506 = vst [vmem:[%s207 + $0x18] sm:$0xf] %v474
      %507 = vst [vmem:[%s207 + $0x1c] sm:$0xf] %v475
      %508 = vst [vmem:[%s207 + $0x20] sm:$0xf] %v476
      %509 = vst [vmem:[%s207 + $0x24] sm:$0xf] %v477
      %510 = vst [vmem:[%s207 + $0x28] sm:$0xf] %v478
      %511 = vst [vmem:[%s207 + $0x2c] sm:$0xf] %v479
      %512 = vst [vmem:[%s207 + $0x30] sm:$0xf] %v480
      %513 = vst [vmem:[%s207 + $0x34] sm:$0xf] %v481
      %514 = vst [vmem:[%s207 + $0x38] sm:$0xf] %v482
      %515 = vst [vmem:[%s207 + $0x3c] sm:$0xf] %v483
      %516 = vst [vmem:[%s213] sm:$0xff] %v344
      %517 = vst [vmem:[%s213 + $0x8] sm:$0xff] %v350
      %518 = vst [vmem:[%s213 + $0x10] sm:$0xff] %v356
      %519 = vst [vmem:[%s213 + $0x18] sm:$0xff] %v362
      %520 = vst [vmem:[%s213 + $0x20] sm:$0xff] %v368
      %521 = vst [vmem:[%s213 + $0x28] sm:$0xff] %v374
      %522 = vst [vmem:[%s213 + $0x30] sm:$0xff] %v380
      %523 = vst [vmem:[%s213 + $0x38] sm:$0xff] %v386
      %524 = vst [vmem:[%s213 + $0x40] sm:$0xff] %v392
      %525 = vst [vmem:[%s213 + $0x48] sm:$0xff] %v398
      %526 = vst [vmem:[%s213 + $0x50] sm:$0xff] %v404
      %527 = vst [vmem:[%s213 + $0x58] sm:$0xff] %v410
      %528 = vst [vmem:[%s213 + $0x60] sm:$0xff] %v416
      %529 = vst [vmem:[%s213 + $0x68] sm:$0xff] %v422
      %530 = vst [vmem:[%s213 + $0x70] sm:$0xff] %v428
      %531 = vst [vmem:[%s213 + $0x78] sm:$0xff] %v434
      %s532 = smul.u32 16, %s16
      %p533 = scmp.lt.s32.totalorder %s532, 31
      %s534 = scalar_select %p533, %s532, 31
      %s535 = smul.addr %s534, 4
      %s536 = scalar_lea.vmem %s3, %s535
      %s537 = smul.u32 16, %s16
      %p538 = scmp.lt.s32.totalorder %s537, 31
      %s539 = scalar_select %p538, %s537, 31
      %s540 = smul.addr %s539, 8
      %s541 = scalar_lea.vmem %s4, %s540
      // Predicated region
      $region33: #{gcn_forward.8} parent=31 // pred_check
        %p542 = pneg %p102
      $region34: #{gcn_forward.8} parent=31 // pred_check_branch
        %544 = sbr.rel (%p542) target = $region36
      $region35: #{gcn_forward.8} parent=31 // pred_region
        %s545 = smul.u32 16, %s16
      $region36: #{gcn_forward.8} parent=31 // pred_fallthru
        _
      // Predicated region
      $region37: #{gcn_forward.8} parent=31 // pred_check
        %p546 = pneg %p128
      $region38: #{gcn_forward.8} parent=31 // pred_check_branch
        %548 = sbr.rel (%p546) target = $region40
      $region39: #{gcn_forward.8} parent=31 // pred_region
        %s549 = smul.u32 16, %s16
      $region40: #{gcn_forward.8} parent=31 // pred_fallthru
        _
    $region32: #{gcn_forward.8} parent=5 // pred_fallthru
      _
    %p550 = scmp.le.s32.totalorder 2, %s11
    // Predicated region
    $region41: #{gcn_forward.8} parent=5 // pred_check
      %p551 = pneg %p550
    $region42: #{gcn_forward.8} parent=5 // pred_check_branch
      %553 = sbr.rel (%p551) target = $region44
    $region43: #{gcn_forward.8} parent=5 // pred_region
      %s554 = ssub.s32 %s11, 2
      // Predicated region
      $region45: #{gcn_forward.8} parent=43 // pred_check
        %p555 = pneg %p108
      $region46: #{gcn_forward.8} parent=43 // pred_check_branch
        %557 = sbr.rel (%p555) target = $region48
      $region47: #{gcn_forward.8} parent=43 // pred_region
        %s558 = smul.u32 16, %s17
        %p559 = scmp.lt.s32.totalorder %s558, 31
        %s560 = scalar_select %p559, %s558, 31
        %s561 = smul.addr %s560, 4
        %s562 = scalar_lea.vmem %s3, %s561
      $region48: #{gcn_forward.8} parent=43 // pred_fallthru
        _
      // Predicated region
      $region49: #{gcn_forward.8} parent=43 // pred_check
        %p563 = pneg %p134
      $region50: #{gcn_forward.8} parent=43 // pred_check_branch
        %565 = sbr.rel (%p563) target = $region52
      $region51: #{gcn_forward.8} parent=43 // pred_region
        %s566 = smul.u32 16, %s17
        %p567 = scmp.lt.s32.totalorder %s566, 31
        %s568 = scalar_select %p567, %s566, 31
        %s569 = smul.addr %s568, 8
        %s570 = scalar_lea.vmem %s4, %s569
      $region52: #{gcn_forward.8} parent=43 // pred_fallthru
        _
    $region44: #{gcn_forward.8} parent=5 // pred_fallthru
      _
  $region6: #{gcn_forward.8} parent=0 // loop_footer
    %s15 = sadd.s32 1, %s11
  $region7: #{gcn_forward.8} parent=0 // loop_footer_branch
    %10 = sbr.rel target = $region3
  $region8: #{gcn_forward.8} parent=0 // loop_exit
    _

// kernel: gcn_forward.7
$region0: #{gcn_forward.7}
  #allocation0 [shape = 'u32[]', space=smem, size = 0x4, offset = 0x4, fixed_abs, tag = 'smem constant byte address 0x4 - core index']
  #allocation1 [shape = 'u32[144,128]{1,0:T(1,128)}', space=vmem, size = 0x12000, scoped, tag = 'internal scratch']
  #allocation2 [shape = 'f32[128,128]{1,0:T(8,128)}', space=vmem, size = 0x10000, scoped, tag = 'scratch operand']
  %s0 = inlined_call_operand.vmem [shape: s8[256,256], index: 0, kind: input, shape index: {}]
  %s1 = inlined_call_operand.vmem [shape: bf16[256,128], index: 1, kind: input, shape index: {}]
  %s2 = inlined_call_operand.vmem [shape: f32[256,128], index: 2, kind: input, shape index: {}]
  %s3 = inlined_call_operand.vmem [shape: f32[256,128], index: 3, kind: input, shape index: {}]
  %s4 = inlined_call_operand.vmem [shape: f32[128,128], index: 4, kind: input, shape index: {}]
  %s5 = inlined_call_operand.vmem [shape: f32[1,128], index: 5, kind: input, shape index: {}]
  %s6 = inlined_call_operand.vmem [shape: f32[256,128], index: 6, kind: output, shape index: {}]
  %s7 = sld [smem:[#allocation0]]
  $region103: #{gcn_forward.7} parent=0
    _
  %s9 = ssub.s32 1, %s7
  %s10 = scalar_select 0, %s9, %s7
  $region1: #{gcn_forward.7} parent=0
    #allocation3 [shape = 'u8[32768]{0}', space=vmem, size = 0x8000, scoped, tag = 'input window, operand 0']
    loop: start=0, step=1, limit=6
    $region2: #{gcn_forward.7} parent=1 // loop_pre_header
      _
    $region3: #{gcn_forward.7} parent=1 // loop_header
      %s12 = sphi 0, %s16
      %p13 = scmp.ge.s32.totalorder %s12, 6
      %s19 = sphi 0, %s31
      %s20 = sphi 0, %s27
      %s21 = sphi 0, %s19
      %s22 = sphi 0, %s20
      %s23 = sphi 0, %s21
      %s24 = sphi 0, %s22
      %s36 = sphi 0, %s38
      %s39 = sphi 0, %s36
      %s40 = sphi 0, %s39
      %s56 = sphi 0, %s40
      %s60 = sphi 0, %s60
      %s62 = sphi 0, %s60
      %s63 = sphi 0, %s62
      %s77 = sphi 0, %s63
      %s83 = sphi 0, %s85
      %s86 = sphi 0, %s83
      %s87 = sphi 0, %s86
      %s103 = sphi 0, %s87
      %s109 = sphi 0, %s111
      %s112 = sphi 0, %s109
      %s113 = sphi 0, %s112
      %s129 = sphi 0, %s113
      %s133 = sphi 0, %s133
      %s135 = sphi 0, %s133
      %s136 = sphi 0, %s135
      %s150 = sphi 0, %s136
      %s154 = sphi 0, %s154
      %s156 = sphi 0, %s154
      %s157 = sphi 0, %s156
      %s171 = sphi 0, %s157
      %s177 = sphi 0, %s179
      %s180 = sphi 0, %s177
      %s181 = sphi 0, %s180
      %s197 = sphi 0, %s181
    $region4: #{gcn_forward.7} parent=1 // loop_header_branch
      %15 = sbr.rel (%p13) target = $region8
    $region5: #{gcn_forward.7} parent=1 // loop_body
      %s17 = ssub.s32 %s12, 1
      %s18 = ssub.s32 %s12, 2
      %s25 = sadd.s32 1, %s20
      %p26 = scmp.ge.s32.totalorder %s25, 2
      %s27 = scalar_select %p26, 0, %s25
      %s28 = sadd.s32 1, %s19
      %s29 = scalar_select %p26, %s28, %s19
      %p30 = scmp.ge.s32.totalorder %s29, 2
      %s31 = scalar_select %p30, 0, %s29
      %s32 = ssub.s32 %s19, %s31
      %s33 = ssub.s32 %s20, %s27
      %s34 = sor.u32 %s32, %s33
      %p35 = scmp.eq.s32.totalorder %s34, 0
      %s37 = sadd.s32 %s36, 1
      %s38 = scalar_select %p35, %s36, %s37
      %p41 = pneg %p35
      %p42 = scmp.eq.s32.totalorder %s12, 3
      %p43 = por %p41, %p42
      %p44 = scmp.ne.s32.totalorder %s36, %s39
      %p45 = scmp.eq.s32.totalorder %s12, 0
      %p46 = por %p44, %p45
      %p47 = scmp.ne.s32.totalorder %s36, %s39
      %p48 = scmp.eq.s32.totalorder %s17, 3
      %p49 = por %p47, %p48
      %p50 = scmp.ne.s32.totalorder %s39, %s40
      %p51 = scmp.eq.s32.totalorder %s17, 0
      %p52 = por %p50, %p51
      %p53 = scmp.ne.s32.totalorder %s39, %s40
      %p54 = scmp.eq.s32.totalorder %s18, 3
      %p55 = por %p53, %p54
      %p57 = scmp.ne.s32.totalorder %s40, %s56
      %p58 = scmp.eq.s32.totalorder %s18, 0
      %p59 = por %p57, %p58
      %s61 = sadd.s32 %s60, 1
      %p64 = scmp.eq.s32.totalorder %s12, 3
      %p65 = scmp.ne.s32.totalorder %s60, %s62
      %p66 = scmp.eq.s32.totalorder %s12, 0
      %p67 = por %p65, %p66
      %p68 = scmp.ne.s32.totalorder %s60, %s62
      %p69 = scmp.eq.s32.totalorder %s17, 3
      %p70 = por %p68, %p69
      %p71 = scmp.ne.s32.totalorder %s62, %s63
      %p72 = scmp.eq.s32.totalorder %s17, 0
      %p73 = por %p71, %p72
      %p74 = scmp.ne.s32.totalorder %s62, %s63
      %p75 = scmp.eq.s32.totalorder %s18, 3
      %p76 = por %p74, %p75
      %p78 = scmp.ne.s32.totalorder %s63, %s77
      %p79 = scmp.eq.s32.totalorder %s18, 0
      %p80 = por %p78, %p79
      %s81 = ssub.s32 %s19, %s31
      %p82 = scmp.eq.s32.totalorder %s81, 0
      %s84 = sadd.s32 %s83, 1
      %s85 = scalar_select %p82, %s83, %s84
      %p88 = pneg %p82
      %p89 = scmp.eq.s32.totalorder %s12, 3
      %p90 = por %p88, %p89
      %p91 = scmp.ne.s32.totalorder %s83, %s86
      %p92 = scmp.eq.s32.totalorder %s12, 0
      %p93 = por %p91, %p92
      %p94 = scmp.ne.s32.totalorder %s83, %s86
      %p95 = scmp.eq.s32.totalorder %s17, 3
      %p96 = por %p94, %p95
      %p97 = scmp.ne.s32.totalorder %s86, %s87
      %p98 = scmp.eq.s32.totalorder %s17, 0
      %p99 = por %p97, %p98
      %p100 = scmp.ne.s32.totalorder %s86, %s87
      %p101 = scmp.eq.s32.totalorder %s18, 3
      %p102 = por %p100, %p101
      %p104 = scmp.ne.s32.totalorder %s87, %s103
      %p105 = scmp.eq.s32.totalorder %s18, 0
      %p106 = por %p104, %p105
      %s107 = ssub.s32 %s19, %s31
      %p108 = scmp.eq.s32.totalorder %s107, 0
      %s110 = sadd.s32 %s109, 1
      %s111 = scalar_select %p108, %s109, %s110
      %p114 = pneg %p108
      %p115 = scmp.eq.s32.totalorder %s12, 3
      %p116 = por %p114, %p115
      %p117 = scmp.ne.s32.totalorder %s109, %s112
      %p118 = scmp.eq.s32.totalorder %s12, 0
      %p119 = por %p117, %p118
      %p120 = scmp.ne.s32.totalorder %s109, %s112
      %p121 = scmp.eq.s32.totalorder %s17, 3
      %p122 = por %p120, %p121
      %p123 = scmp.ne.s32.totalorder %s112, %s113
      %p124 = scmp.eq.s32.totalorder %s17, 0
      %p125 = por %p123, %p124
      %p126 = scmp.ne.s32.totalorder %s112, %s113
      %p127 = scmp.eq.s32.totalorder %s18, 3
      %p128 = por %p126, %p127
      %p130 = scmp.ne.s32.totalorder %s113, %s129
      %p131 = scmp.eq.s32.totalorder %s18, 0
      %p132 = por %p130, %p131
      %s134 = sadd.s32 %s133, 1
      %p137 = scmp.eq.s32.totalorder %s12, 3
      %p138 = scmp.ne.s32.totalorder %s133, %s135
      %p139 = scmp.eq.s32.totalorder %s12, 0
      %p140 = por %p138, %p139
      %p141 = scmp.ne.s32.totalorder %s133, %s135
      %p142 = scmp.eq.s32.totalorder %s17, 3
      %p143 = por %p141, %p142
      %p144 = scmp.ne.s32.totalorder %s135, %s136
      %p145 = scmp.eq.s32.totalorder %s17, 0
      %p146 = por %p144, %p145
      %p147 = scmp.ne.s32.totalorder %s135, %s136
      %p148 = scmp.eq.s32.totalorder %s18, 3
      %p149 = por %p147, %p148
      %p151 = scmp.ne.s32.totalorder %s136, %s150
      %p152 = scmp.eq.s32.totalorder %s18, 0
      %p153 = por %p151, %p152
      %s155 = sadd.s32 %s154, 1
      %p158 = scmp.eq.s32.totalorder %s12, 3
      %p159 = scmp.ne.s32.totalorder %s154, %s156
      %p160 = scmp.eq.s32.totalorder %s12, 0
      %p161 = por %p159, %p160
      %p162 = scmp.ne.s32.totalorder %s154, %s156
      %p163 = scmp.eq.s32.totalorder %s17, 3
      %p164 = por %p162, %p163
      %p165 = scmp.ne.s32.totalorder %s156, %s157
      %p166 = scmp.eq.s32.totalorder %s17, 0
      %p167 = por %p165, %p166
      %p168 = scmp.ne.s32.totalorder %s156, %s157
      %p169 = scmp.eq.s32.totalorder %s18, 3
      %p170 = por %p168, %p169
      %p172 = scmp.ne.s32.totalorder %s157, %s171
      %p173 = scmp.eq.s32.totalorder %s18, 0
      %p174 = por %p172, %p173
      %s175 = ssub.s32 %s19, %s31
      %p176 = scmp.eq.s32.totalorder %s175, 0
      %s178 = sadd.s32 %s177, 1
      %s179 = scalar_select %p176, %s177, %s178
      %p182 = pneg %p176
      %p183 = scmp.eq.s32.totalorder %s12, 3
      %p184 = por %p182, %p183
      %p185 = scmp.ne.s32.totalorder %s177, %s180
      %p186 = scmp.eq.s32.totalorder %s12, 0
      %p187 = por %p185, %p186
      %p188 = scmp.ne.s32.totalorder %s177, %s180
      %p189 = scmp.eq.s32.totalorder %s17, 3
      %p190 = por %p188, %p189
      %p191 = scmp.ne.s32.totalorder %s180, %s181
      %p192 = scmp.eq.s32.totalorder %s17, 0
      %p193 = por %p191, %p192
      %p194 = scmp.ne.s32.totalorder %s180, %s181
      %p195 = scmp.eq.s32.totalorder %s18, 3
      %p196 = por %p194, %p195
      %p198 = scmp.ne.s32.totalorder %s181, %s197
      %p199 = scmp.eq.s32.totalorder %s18, 0
      %p200 = por %p198, %p199
      %p201 = scmp.le.s32.totalorder 1, %s12
      %p202 = scmp.lt.s32.totalorder %s12, 5
      %p203 = pnand %p201, %p202
      %p204 = pneg %p203
      // Predicated region
      $region9: #{gcn_forward.7} parent=5 // pred_check
        _
      $region10: #{gcn_forward.7} parent=5 // pred_check_branch
        %206 = sbr.rel (%p203) target = $region12
      $region11: #{gcn_forward.7} parent=5 // pred_region
        %s207 = ssub.s32 %s12, 1
        // Predicated region
        $region13: #{gcn_forward.7} parent=11 // pred_check
          %p208 = pneg %p73
        $region14: #{gcn_forward.7} parent=11 // pred_check_branch
          %210 = sbr.rel (%p208) target = $region16
        $region15: #{gcn_forward.7} parent=11 // pred_region
          _
        $region16: #{gcn_forward.7} parent=11 // pred_fallthru
          _
        // Predicated region
        $region17: #{gcn_forward.7} parent=11 // pred_check
          %p211 = pneg %p146
        $region18: #{gcn_forward.7} parent=11 // pred_check_branch
          %213 = sbr.rel (%p211) target = $region20
        $region19: #{gcn_forward.7} parent=11 // pred_region
          _
        $region20: #{gcn_forward.7} parent=11 // pred_fallthru
          _
        // Predicated region
        $region21: #{gcn_forward.7} parent=11 // pred_check
          %p214 = pneg %p167
        $region22: #{gcn_forward.7} parent=11 // pred_check_branch
          %216 = sbr.rel (%p214) target = $region24
        $region23: #{gcn_forward.7} parent=11 // pred_region
          _
        $region24: #{gcn_forward.7} parent=11 // pred_fallthru
          _
      $region12: #{gcn_forward.7} parent=5 // pred_fallthru
        _
      %p217 = scmp.lt.s32.totalorder %s12, 4
      // Predicated region
      $region25: #{gcn_forward.7} parent=5 // pred_check
        %p218 = pneg %p217
      $region26: #{gcn_forward.7} parent=5 // pred_check_branch
        %220 = sbr.rel (%p218) target = $region28
      $region27: #{gcn_forward.7} parent=5 // pred_region
        // Predicated region
        $region29: #{gcn_forward.7} parent=27 // pred_check
          %p221 = pneg %p46
        $region30: #{gcn_forward.7} parent=27 // pred_check_branch
          %223 = sbr.rel (%p221) target = $region32
        $region31: #{gcn_forward.7} parent=27 // pred_region
          %s224 = sand.u32 %s36, 1
          %s225 = sand.u32 %s36, 1
          %s226 = smul.addr %s225, 32
          %s227 = scalar_lea.vmem [#allocation3], %s226
          %s228 = smul.u32 4, %s19
          %s229 = smul.addr %s228, 2
          %s230 = sadd.s32 %s20, %s229
          %s231 = smul.addr %s230, 8
          %s232 = scalar_lea.vmem %s0, %s231
          // Predicated region
          $region33: #{gcn_forward.7} parent=31 // pred_check
            _
          $region34: #{gcn_forward.7} parent=31 // pred_check_branch
            %234 = sbr.rel (0) target = $region36
          $region35: #{gcn_forward.7} parent=31 // pred_region
            // Predicated region
            $region37: #{gcn_forward.7} parent=35 // pred_check
              _
            $region38: #{gcn_forward.7} parent=35 // pred_check_branch
              %236 = sbr.rel (0) target = $region40
            $region39: #{gcn_forward.7} parent=35 // pred_region
              // Predicated region
              $region52: #{gcn_forward.7} parent=39 // pred_check
                _
              $region53: #{gcn_forward.7} parent=39 // pred_check_branch
                %257 = sbr.rel (0) target = $region55
              $region54: #{gcn_forward.7} parent=39 // pred_region
                loop: start=0, step=1, limit=1
                $region56: #{gcn_forward.7} parent=54 // loop_pre_header
                  _
                $region57: #{gcn_forward.7} parent=54 // loop_header
                  %s259 = sphi 0, %s263
                  %p260 = scmp.ge.s32.totalorder %s259, 1
                  %s264 = sphi %s232, %s232
                  %s265 = sphi %s227, %s227
                $region58: #{gcn_forward.7} parent=54 // loop_header_branch
                  %262 = sbr.rel (%p260) target = $region62
                $region59: #{gcn_forward.7} parent=54 // loop_body
                  %v266 = vld [vmem:[%s264] sm:$0xff]
                  %267 = vst [vmem:[%s265] sm:$0xff] %v266
                  %v268 = vld [vmem:[%s264 + $0x10] sm:$0xff]
                  %269 = vst [vmem:[%s265 + $0x8] sm:$0xff] %v268
                  %v270 = vld [vmem:[%s264 + $0x20] sm:$0xff]
                  %271 = vst [vmem:[%s265 + $0x10] sm:$0xff] %v270
                  %v272 = vld [vmem:[%s264 + $0x30] sm:$0xff]
                  %273 = vst [vmem:[%s265 + $0x18] sm:$0xff] %v272
                $region60: #{gcn_forward.7} parent=54 // loop_footer
                  %s263 = sadd.s32 1, %s259
                $region61: #{gcn_forward.7} parent=54 // loop_footer_branch
                  %258 = sbr.rel target = $region57
                $region62: #{gcn_forward.7} parent=54 // loop_exit
                  _
              $region55: #{gcn_forward.7} parent=39 // pred_fallthru
                _
              // Predicated region
              $region63: #{gcn_forward.7} parent=39 // pred_check
                _
              $region64: #{gcn_forward.7} parent=39 // pred_check_branch
                %275 = sbr.rel target = $region66
              $region65: #{gcn_forward.7} parent=39 // pred_region
                _
              $region66: #{gcn_forward.7} parent=39 // pred_fallthru
                _
            $region40: #{gcn_forward.7} parent=35 // pred_fallthru
              _
            // Predicated region
            $region41: #{gcn_forward.7} parent=35 // pred_check
              _
            $region42: #{gcn_forward.7} parent=35 // pred_check_branch
              %238 = sbr.rel target = $region44
            $region43: #{gcn_forward.7} parent=35 // pred_region
              loop: start=0, step=1, limit=1
              $region45: #{gcn_forward.7} parent=43 // loop_pre_header
                _
              $region46: #{gcn_forward.7} parent=43 // loop_header
                %s241 = sphi 0, %s245
                %p242 = scmp.ge.s32.totalorder %s241, 1
                %s246 = sphi %s232, %s232
                %s247 = sphi %s227, %s227
              $region47: #{gcn_forward.7} parent=43 // loop_header_branch
                %244 = sbr.rel (%p242) target = $region51
              $region48: #{gcn_forward.7} parent=43 // loop_body
                %v248 = vld [vmem:[%s246] sm:$0xff]
                %249 = vst [vmem:[%s247] sm:$0xff] %v248
                %v250 = vld [vmem:[%s246 + $0x10] sm:$0xff]
                %251 = vst [vmem:[%s247 + $0x8] sm:$0xff] %v250
                %v252 = vld [vmem:[%s246 + $0x20] sm:$0xff]
                %253 = vst [vmem:[%s247 + $0x10] sm:$0xff] %v252
                %v254 = vld [vmem:[%s246 + $0x30] sm:$0xff]
                %255 = vst [vmem:[%s247 + $0x18] sm:$0xff] %v254
              $region49: #{gcn_forward.7} parent=43 // loop_footer
                %s245 = sadd.s32 1, %s241
              $region50: #{gcn_forward.7} parent=43 // loop_footer_branch
                %240 = sbr.rel target = $region46
              $region51: #{gcn_forward.7} parent=43 // loop_exit
                _
            $region44: #{gcn_forward.7} parent=35 // pred_fallthru
              _
          $region36: #{gcn_forward.7} parent=31 // pred_fallthru
            _
          %276 = vnop
        $region32: #{gcn_forward.7} parent=27 // pred_fallthru
          _
        // Predicated region
        $region67: #{gcn_forward.7} parent=27 // pred_check
          %p277 = pneg %p93
        $region68: #{gcn_forward.7} parent=27 // pred_check_branch
          %279 = sbr.rel (%p277) target = $region70
        $region69: #{gcn_forward.7} parent=27 // pred_region
          %s280 = smul.u32 16, %s19
          %p281 = scmp.lt.s32.totalorder %s280, 31
          %s282 = scalar_select %p281, %s280, 31
          %s283 = smul.addr %s282, 8
          %s284 = scalar_lea.vmem %s2, %s283
          %s285 = smul.u32 16, %s19
        $region70: #{gcn_forward.7} parent=27 // pred_fallthru
          _
        // Predicated region
        $region71: #{gcn_forward.7} parent=27 // pred_check
          %p286 = pneg %p119
        $region72: #{gcn_forward.7} parent=27 // pred_check_branch
          %288 = sbr.rel (%p286) target = $region74
        $region73: #{gcn_forward.7} parent=27 // pred_region
          %s289 = smul.u32 16, %s19
          %p290 = scmp.lt.s32.totalorder %s289, 31
          %s291 = scalar_select %p290, %s289, 31
          %s292 = smul.addr %s291, 8
          %s293 = scalar_lea.vmem %s3, %s292
          %s294 = smul.u32 16, %s19
        $region74: #{gcn_forward.7} parent=27 // pred_fallthru
          _
      $region28: #{gcn_forward.7} parent=5 // pred_fallthru
        _
      %p295 = scmp.le.s32.totalorder 1, %s12
      %p296 = scmp.lt.s32.totalorder %s12, 5
      %p297 = pnand %p295, %p296
      %p298 = pneg %p297
      // Predicated region
      $region75: #{gcn_forward.7} parent=5 // pred_check
        _
      $region76: #{gcn_forward.7} parent=5 // pred_check_branch
        %300 = sbr.rel (%p297) target = $region78
      $region77: #{gcn_forward.7} parent=5 // pred_region
        %s301 = ssub.s32 %s12, 1
        %s302 = sand.u32 %s39, 1
        %s303 = sand.u32 %s39, 1
        %s304 = smul.addr %s303, 32
        %s305 = scalar_lea.vmem [#allocation3], %s304
        // Predicated region
        $region79: #{gcn_forward.7} parent=77 // pred_check
          %p306 = pneg %p52
        $region80: #{gcn_forward.7} parent=77 // pred_check_branch
          %308 = sbr.rel (%p306) target = $region82
        $region81: #{gcn_forward.7} parent=77 // pred_region
          _
        $region82: #{gcn_forward.7} parent=77 // pred_fallthru
          _
        %s309 = sand.u32 %s39, 1
        %s310 = sand.u32 %s39, 1
        %s311 = smul.addr %s310, 32
        %s312 = scalar_lea.vmem [#allocation3], %s311
        %p313 = pneg %p52
        %p314 = pneg %p49
        %p315 = pneg %p73
        %p316 = pneg %p70
        %s317 = smul.u32 16, %s21
        %p318 = scmp.lt.s32.totalorder %s317, 31
        %s319 = scalar_select %p318, %s317, 31
        %s320 = smul.addr %s319, 8
        %s321 = scalar_lea.vmem %s2, %s320
        %p322 = pneg %p99
        %p323 = pneg %p96
        %s324 = smul.u32 16, %s21
        %p325 = scmp.lt.s32.totalorder %s324, 31
        %s326 = scalar_select %p325, %s324, 31
        %s327 = smul.addr %s326, 8
        %s328 = scalar_lea.vmem %s3, %s327
        %p329 = pneg %p125
        %p330 = pneg %p122
        %p331 = pneg %p146
        %p332 = pneg %p143
        %p333 = pneg %p167
        %p334 = pneg %p164
        %p335 = pneg %p193
        %p336 = pneg %p190
        %s337 = smul.u32 16, %s21
        %p338 = scmp.lt.s32.totalorder %s337, 31
        %s339 = scalar_select %p338, %s337, 31
        %s340 = smul.addr %s339, 8
        %s341 = scalar_lea.vmem %s6, %s340
        %s342 = smul.u32 4, %s21
        %s343 = smul.u32 16, %s21
        %p344 = scmp.lt.s32.totalorder %s343, 31
        %s345 = scalar_select %p344, %s343, 31
        %s346 = smul.addr %s345, 8
        %s347 = scalar_lea.vmem %s2, %s346
        %s348 = smul.u32 16, %s21
        %s349 = smul.u32 16, %s21
        %p350 = scmp.lt.s32.totalorder %s349, 31
        %s351 = scalar_select %p350, %s349, 31
        %s352 = smul.addr %s351, 8
        %s353 = scalar_lea.vmem %s3, %s352
        %s354 = smul.u32 16, %s21
        %s355 = smul.u32 16, %s21
        %p356 = scmp.lt.s32.totalorder %s355, 31
        %s357 = scalar_select %p356, %s355, 31
        %s358 = smul.addr %s357, 8
        %s359 = scalar_lea.vmem %s6, %s358
        %s360 = smul.u32 16, %s21
        %p362 = scmp.eq.s32.totalorder %s22, 0
        // Predicated region
        $region83: #{gcn_forward.7} parent=77 // pred_check
          %p363 = pneg %p362
        $region84: #{gcn_forward.7} parent=77 // pred_check_branch
          %365 = sbr.rel (%p363) target = $region86
        $region85: #{gcn_forward.7} parent=77 // pred_region
          %366 = vst [vmem:[#allocation2] sm:$0xff] 0.0
          %367 = vst [vmem:[#allocation2 + $0x8] sm:$0xff] 0.0
          %368 = vst [vmem:[#allocation2 + $0x10] sm:$0xff] 0.0
          %369 = vst [vmem:[#allocation2 + $0x18] sm:$0xff] 0.0
          %370 = vst [vmem:[#allocation2 + $0x20] sm:$0xff] 0.0
          %371 = vst [vmem:[#allocation2 + $0x28] sm:$0xff] 0.0
          %372 = vst [vmem:[#allocation2 + $0x30] sm:$0xff] 0.0
          %373 = vst [vmem:[#allocation2 + $0x38] sm:$0xff] 0.0
          %374 = vst [vmem:[#allocation2 + $0x40] sm:$0xff] 0.0
          %375 = vst [vmem:[#allocation2 + $0x48] sm:$0xff] 0.0
          %376 = vst [vmem:[#allocation2 + $0x50] sm:$0xff] 0.0
          %377 = vst [vmem:[#allocation2 + $0x58] sm:$0xff] 0.0
          %378 = vst [vmem:[#allocation2 + $0x60] sm:$0xff] 0.0
          %379 = vst [vmem:[#allocation2 + $0x68] sm:$0xff] 0.0
          %380 = vst [vmem:[#allocation2 + $0x70] sm:$0xff] 0.0
          %381 = vst [vmem:[#allocation2 + $0x78] sm:$0xff] 0.0
        $region86: #{gcn_forward.7} parent=77 // pred_fallthru
          _
        %v382 = vld [vmem:[%s305] sm:$0xff]
        %v383 = vld [vmem:[%s305 + $0x8] sm:$0xff]
        %v384 = vld [vmem:[%s305 + $0x10] sm:$0xff]
        %v385 = vld [vmem:[%s305 + $0x18] sm:$0xff]
        %v386 = vunpack.c.l.s8.bf16 %v382
        %v387 = vunpack.c.h.s8.bf16 %v382
        %v388 = vunpack.c.l.s8.bf16 %v383
        %v389 = vunpack.c.h.s8.bf16 %v383
        %v390 = vunpack.c.l.s8.bf16 %v384
        %v391 = vunpack.c.h.s8.bf16 %v384
        %v392 = vunpack.c.l.s8.bf16 %v385
        %v393 = vunpack.c.h.s8.bf16 %v385
        %s394 = smul.u32 %s22, 128
        %s395 = sshra.s32 %s394, 3
        %s396 = sand.u32 %s394, 7
        %s397 = smul.addr %s395, 4
        %s398 = scalar_lea.vmem %s1, %s397
        %v399 = vld [vmem:[%s398] sm:$0xf]
        %v400 = vld [vmem:[%s398 + $0x4] sm:$0xf]
        %v401 = vld [vmem:[%s398 + $0x8] sm:$0xf]
        %v402 = vld [vmem:[%s398 + $0xc] sm:$0xf]
        %v403 = vld [vmem:[%s398 + $0x10] sm:$0xf]
        %v404 = vld [vmem:[%s398 + $0x14] sm:$0xf]
        %v405 = vld [vmem:[%s398 + $0x18] sm:$0xf]
        %v406 = vld [vmem:[%s398 + $0x1c] sm:$0xf]
        %v407 = vld [vmem:[%s398 + $0x20] sm:$0xf]
        %v408 = vld [vmem:[%s398 + $0x24] sm:$0xf]
        %v409 = vld [vmem:[%s398 + $0x28] sm:$0xf]
        %v410 = vld [vmem:[%s398 + $0x2c] sm:$0xf]
        %v411 = vld [vmem:[%s398 + $0x30] sm:$0xf]
        %v412 = vld [vmem:[%s398 + $0x34] sm:$0xf]
        %v413 = vld [vmem:[%s398 + $0x38] sm:$0xf]
        %v414 = vld [vmem:[%s398 + $0x3c] sm:$0xf]
        %v415 = vld [vmem:[#allocation2] sm:$0xff]
        %v416 = vld [vmem:[#allocation2 + $0x8] sm:$0xff]
        %v417 = vld [vmem:[#allocation2 + $0x10] sm:$0xff]
        %v418 = vld [vmem:[#allocation2 + $0x18] sm:$0xff]
        %v419 = vld [vmem:[#allocation2 + $0x20] sm:$0xff]
        %v420 = vld [vmem:[#allocation2 + $0x28] sm:$0xff]
        %v421 = vld [vmem:[#allocation2 + $0x30] sm:$0xff]
        %v422 = vld [vmem:[#allocation2 + $0x38] sm:$0xff]
        %v423 = vld [vmem:[#allocation2 + $0x40] sm:$0xff]
        %v424 = vld [vmem:[#allocation2 + $0x48] sm:$0xff]
        %v425 = vld [vmem:[#allocation2 + $0x50] sm:$0xff]
        %v426 = vld [vmem:[#allocation2 + $0x58] sm:$0xff]
        %v427 = vld [vmem:[#allocation2 + $0x60] sm:$0xff]
        %v428 = vld [vmem:[#allocation2 + $0x68] sm:$0xff]
        %v429 = vld [vmem:[#allocation2 + $0x70] sm:$0xff]
        %v430 = vld [vmem:[#allocation2 + $0x78] sm:$0xff]
        %v447 = vunpack.c.l.b16 %v399
        %v448 = vunpack.c.l.b16 %v400
        %v449 = vunpack.c.l.b16 %v401
        %v450 = vunpack.c.l.b16 %v402
        %v451 = vunpack.c.l.b16 %v403
        %v452 = vunpack.c.l.b16 %v404
        %v453 = vunpack.c.l.b16 %v405
        %v454 = vunpack.c.l.b16 %v406
        %v455 = vunpack.c.l.b16 %v407
        %v456 = vunpack.c.l.b16 %v408
        %v457 = vunpack.c.l.b16 %v409
        %v458 = vunpack.c.l.b16 %v410
        %v459 = vunpack.c.l.b16 %v411
        %v460 = vunpack.c.l.b16 %v412
        %v461 = vunpack.c.l.b16 %v413
        %v462 = vunpack.c.l.b16 %v414
        %v463 = vpack.c.b16 %v448, %v447
        %v464 = vpack.c.b16 %v450, %v449
        %v465 = vpack.c.b16 %v452, %v451
        %v466 = vpack.c.b16 %v454, %v453
        %v467 = vpack.c.b16 %v456, %v455
        %v468 = vpack.c.b16 %v458, %v457
        %v469 = vpack.c.b16 %v460, %v459
        %v470 = vpack.c.b16 %v462, %v461
        %479 = vmatprep.subr.bf16.mxu0 0
        %480 = vmatpush1.bf16.msra.mxu0 %v463
        %481 = vmatprep.subr.bf16.mxu0 0
        %482 = vmatpush1.bf16.msra.mxu0 %v464
        %483 = vmatprep.subr.bf16.mxu0 0
        %484 = vmatpush1.bf16.msra.mxu0 %v465
        %485 = vmatprep.subr.bf16.mxu0 0
        %486 = vmatpush1.bf16.msra.mxu0 %v466
        %487 = vmatprep.subr.bf16.mxu0 0
        %488 = vmatpush1.bf16.msra.mxu0 %v467
        %489 = vmatprep.subr.bf16.mxu0 0
        %490 = vmatpush1.bf16.msra.mxu0 %v468
        %491 = vmatprep.subr.bf16.mxu0 0
        %492 = vmatpush1.bf16.msra.mxu0 %v469
        %493 = vmatprep.subr.bf16.mxu0 0
        %494 = vmatpush1.bf16.msra.mxu0 %v470
        %495 = vmatprep.subr.bf16.mxu0 0
        %496 = vmatpush1.bf16.msra.mxu0 0
        %497 = vmatprep.subr.bf16.mxu0 0
        %498 = vmatpush1.bf16.msra.mxu0 0
        %499 = vmatprep.subr.bf16.mxu0 0
        %500 = vmatpush1.bf16.msra.mxu0 0
        %501 = vmatprep.subr.bf16.mxu0 0
        %502 = vmatpush1.bf16.msra.mxu0 0
        %503 = vmatprep.subr.bf16.mxu0 0
        %504 = vmatpush1.bf16.msra.mxu0 0
        %505 = vmatprep.subr.bf16.mxu0 0
        %506 = vmatpush1.bf16.msra.mxu0 0
        %507 = vmatprep.subr.bf16.mxu0 0
        %508 = vmatpush1.bf16.msra.mxu0 0
        %509 = vmatprep.subr.bf16.mxu0 0
        %510 = vmatpush1.bf16.msra.mxu0 0
        %511 = vmatprep.mubr.bf16.mxu0 0
        %512 = vmatmul.mubr.bf16.gmra.mrb[0].mxu0 %v386
        %v513 = vpop.f32.mrb[0].mxu0
        %v514 = vadd.f32 0.0, %v513
        %v515 = vpop.f32.mrb[0].mxu0
        %v516 = vpop.f32.mrb[0].mxu0
        %v517 = vadd.f32 0.0, %v516
        %v518 = vpop.f32.mrb[0].mxu0
        %519 = vmatprep.mubr.bf16.mxu0 0
        %520 = vmatmul.mubr.bf16.gmra.mrb[0].mxu0 %v387
        %v521 = vpop.f32.mrb[0].mxu0
        %v522 = vadd.f32 0.0, %v521
        %v523 = vpop.f32.mrb[0].mxu0
        %v524 = vpop.f32.mrb[0].mxu0
        %v525 = vadd.f32 0.0, %v524
        %v526 = vpop.f32.mrb[0].mxu0
        %527 = vmatprep.mubr.bf16.mxu0 0
        %528 = vmatmul.mubr.bf16.gmra.mrb[0].mxu0 %v388
        %v529 = vpop.f32.mrb[0].mxu0
        %v530 = vadd.f32 0.0, %v529
        %v531 = vpop.f32.mrb[0].mxu0
        %v532 = vpop.f32.mrb[0].mxu0
        %v533 = vadd.f32 0.0, %v532
        %v534 = vpop.f32.mrb[0].mxu0
        %535 = vmatprep.mubr.bf16.mxu0 0
        %536 = vmatmul.mubr.bf16.gmra.mrb[0].mxu0 %v389
        %v537 = vpop.f32.mrb[0].mxu0
        %v538 = vadd.f32 0.0, %v537
        %v539 = vpop.f32.mrb[0].mxu0
        %v540 = vpop.f32.mrb[0].mxu0
        %v541 = vadd.f32 0.0, %v540
        %v542 = vpop.f32.mrb[0].mxu0
        %543 = vmatprep.mubr.bf16.mxu0 0
        %544 = vmatmul.mubr.bf16.gmra.mrb[0].mxu0 %v390
        %v545 = vpop.f32.mrb[0].mxu0
        %v546 = vadd.f32 0.0, %v545
        %v547 = vpop.f32.mrb[0].mxu0
        %v548 = vpop.f32.mrb[0].mxu0
        %v549 = vadd.f32 0.0, %v548
        %v550 = vpop.f32.mrb[0].mxu0
        %551 = vmatprep.mubr.bf16.mxu0 0
        %552 = vmatmul.mubr.bf16.gmra.mrb[0].mxu0 %v391
        %v553 = vpop.f32.mrb[0].mxu0
        %v554 = vadd.f32 0.0, %v553
        %v555 = vpop.f32.mrb[0].mxu0
        %v556 = vpop.f32.mrb[0].mxu0
        %v557 = vadd.f32 0.0, %v556
        %v558 = vpop.f32.mrb[0].mxu0
        %559 = vmatprep.mubr.bf16.mxu0 0
        %560 = vmatmul.mubr.bf16.gmra.mrb[0].mxu0 %v392
        %v561 = vpop.f32.mrb[0].mxu0
        %v562 = vadd.f32 0.0, %v561
        %v563 = vpop.f32.mrb[0].mxu0
        %v564 = vpop.f32.mrb[0].mxu0
        %v565 = vadd.f32 0.0, %v564
        %v566 = vpop.f32.mrb[0].mxu0
        %567 = vmatprep.mubr.bf16.mxu0 0
        %568 = vmatmul.mubr.bf16.gmra.mrb[0].mxu0 %v393
        %v569 = vpop.f32.mrb[0].mxu0
        %v570 = vadd.f32 0.0, %v569
        %v571 = vpop.f32.mrb[0].mxu0
        %v572 = vpop.f32.mrb[0].mxu0
        %v573 = vadd.f32 0.0, %v572
        %v574 = vpop.f32.mrb[0].mxu0
        %575 = vdwg.mxu0
        %v576 = vadd.f32 %v415, %v514
        %v577 = vadd.f32 %v416, %v517
        %v578 = vadd.f32 %v417, %v522
        %v579 = vadd.f32 %v418, %v525
        %v580 = vadd.f32 %v419, %v530
        %v581 = vadd.f32 %v420, %v533
        %v582 = vadd.f32 %v421, %v538
        %v583 = vadd.f32 %v422, %v541
        %v584 = vadd.f32 %v423, %v546
        %v585 = vadd.f32 %v424, %v549
        %v586 = vadd.f32 %v425, %v554
        %v587 = vadd.f32 %v426, %v557
        %v588 = vadd.f32 %v427, %v562
        %v589 = vadd.f32 %v428, %v565
        %v590 = vadd.f32 %v429, %v570
        %v591 = vadd.f32 %v430, %v573
        %592 = vst [vmem:[#allocation2] sm:$0xff] %v576
        %593 = vst [vmem:[#allocation2 + $0x8] sm:$0xff] %v577
        %594 = vst [vmem:[#allocation2 + $0x10] sm:$0xff] %v578
        %595 = vst [vmem:[#allocation2 + $0x18] sm:$0xff] %v579
        %596 = vst [vmem:[#allocation2 + $0x20] sm:$0xff] %v580
        %597 = vst [vmem:[#allocation2 + $0x28] sm:$0xff] %v581
        %598 = vst [vmem:[#allocation2 + $0x30] sm:$0xff] %v582
        %599 = vst [vmem:[#allocation2 + $0x38] sm:$0xff] %v583
        %600 = vst [vmem:[#allocation2 + $0x40] sm:$0xff] %v584
        %601 = vst [vmem:[#allocation2 + $0x48] sm:$0xff] %v585
        %602 = vst [vmem:[#allocation2 + $0x50] sm:$0xff] %v586
        %603 = vst [vmem:[#allocation2 + $0x58] sm:$0xff] %v587
        %604 = vst [vmem:[#allocation2 + $0x60] sm:$0xff] %v588
        %605 = vst [vmem:[#allocation2 + $0x68] sm:$0xff] %v589
        %606 = vst [vmem:[#allocation2 + $0x70] sm:$0xff] %v590
        %607 = vst [vmem:[#allocation2 + $0x78] sm:$0xff] %v591
        %p608 = scmp.eq.s32.totalorder %s22, 1
        // Predicated region
        $region87: #{gcn_forward.7} parent=77 // pred_check
          %p609 = pneg %p608
        $region88: #{gcn_forward.7} parent=77 // pred_check_branch
          %611 = sbr.rel (%p609) target = $region90
        $region89: #{gcn_forward.7} parent=77 // pred_region
          %v612 = vld [vmem:[#allocation2] sm:$0xff]
          %v613 = vld [vmem:[#allocation2 + $0x8] sm:$0xff]
          %v614 = vld [vmem:[#allocation2 + $0x10] sm:$0xff]
          %v615 = vld [vmem:[#allocation2 + $0x18] sm:$0xff]
          %v616 = vld [vmem:[#allocation2 + $0x20] sm:$0xff]
          %v617 = vld [vmem:[#allocation2 + $0x28] sm:$0xff]
          %v618 = vld [vmem:[#allocation2 + $0x30] sm:$0xff]
          %v619 = vld [vmem:[#allocation2 + $0x38] sm:$0xff]
          %v620 = vld [vmem:[#allocation2 + $0x40] sm:$0xff]
          %v621 = vld [vmem:[#allocation2 + $0x48] sm:$0xff]
          %v622 = vld [vmem:[#allocation2 + $0x50] sm:$0xff]
          %v623 = vld [vmem:[#allocation2 + $0x58] sm:$0xff]
          %v624 = vld [vmem:[#allocation2 + $0x60] sm:$0xff]
          %v625 = vld [vmem:[#allocation2 + $0x68] sm:$0xff]
          %v626 = vld [vmem:[#allocation2 + $0x70] sm:$0xff]
          %v627 = vld [vmem:[#allocation2 + $0x78] sm:$0xff]
          %vm628 = vcmp.ge.f32.partialorder %v612, 0.0
          %vm629 = vcmp.ge.f32.partialorder %v613, 0.0
          %vm630 = vcmp.ge.f32.partialorder %v614, 0.0
          %vm631 = vcmp.ge.f32.partialorder %v615, 0.0
          %vm632 = vcmp.ge.f32.partialorder %v616, 0.0
          %vm633 = vcmp.ge.f32.partialorder %v617, 0.0
          %vm634 = vcmp.ge.f32.partialorder %v618, 0.0
          %vm635 = vcmp.ge.f32.partialorder %v619, 0.0
          %vm636 = vcmp.ge.f32.partialorder %v620, 0.0
          %vm637 = vcmp.ge.f32.partialorder %v621, 0.0
          %vm638 = vcmp.ge.f32.partialorder %v622, 0.0
          %vm639 = vcmp.ge.f32.partialorder %v623, 0.0
          %vm640 = vcmp.ge.f32.partialorder %v624, 0.0
          %vm641 = vcmp.ge.f32.partialorder %v625, 0.0
          %vm642 = vcmp.ge.f32.partialorder %v626, 0.0
          %vm643 = vcmp.ge.f32.partialorder %v627, 0.0
          %v644 = vmul.f32 %v612, 0.01
          %v645 = vmul.f32 %v613, 0.01
          %v646 = vmul.f32 %v614, 0.01
          %v647 = vmul.f32 %v615, 0.01
          %v648 = vmul.f32 %v616, 0.01
          %v649 = vmul.f32 %v617, 0.01
          %v650 = vmul.f32 %v618, 0.01
          %v651 = vmul.f32 %v619, 0.01
          %v652 = vmul.f32 %v620, 0.01
          %v653 = vmul.f32 %v621, 0.01
          %v654 = vmul.f32 %v622, 0.01
          %v655 = vmul.f32 %v623, 0.01
          %v656 = vmul.f32 %v624, 0.01
          %v657 = vmul.f32 %v625, 0.01
          %v658 = vmul.f32 %v626, 0.01
          %v659 = vmul.f32 %v627, 0.01
          %v660 = vsel %vm628, %v612, %v644
          %v661 = vsel %vm629, %v613, %v645
          %v662 = vsel %vm630, %v614, %v646
          %v663 = vsel %vm631, %v615, %v647
          %v664 = vsel %vm632, %v616, %v648
          %v665 = vsel %vm633, %v617, %v649
          %v666 = vsel %vm634, %v618, %v650
          %v667 = vsel %vm635, %v619, %v651
          %v668 = vsel %vm636, %v620, %v652
          %v669 = vsel %vm637, %v621, %v653
          %v670 = vsel %vm638, %v622, %v654
          %v671 = vsel %vm639, %v623, %v655
          %v672 = vsel %vm640, %v624, %v656
          %v673 = vsel %vm641, %v625, %v657
          %v674 = vsel %vm642, %v626, %v658
          %v675 = vsel %vm643, %v627, %v659
          %v676 = vld [vmem:[%s347] sm:$0xff]
          %v677 = vld [vmem:[%s347 + $0x8] sm:$0xff]
          %v678 = vld [vmem:[%s347 + $0x10] sm:$0xff]
          %v679 = vld [vmem:[%s347 + $0x18] sm:$0xff]
          %v680 = vld [vmem:[%s347 + $0x20] sm:$0xff]
          %v681 = vld [vmem:[%s347 + $0x28] sm:$0xff]
          %v682 = vld [vmem:[%s347 + $0x30] sm:$0xff]
          %v683 = vld [vmem:[%s347 + $0x38] sm:$0xff]
          %v684 = vld [vmem:[%s347 + $0x40] sm:$0xff]
          %v685 = vld [vmem:[%s347 + $0x48] sm:$0xff]
          %v686 = vld [vmem:[%s347 + $0x50] sm:$0xff]
          %v687 = vld [vmem:[%s347 + $0x58] sm:$0xff]
          %v688 = vld [vmem:[%s347 + $0x60] sm:$0xff]
          %v689 = vld [vmem:[%s347 + $0x68] sm:$0xff]
          %v690 = vld [vmem:[%s347 + $0x70] sm:$0xff]
          %v691 = vld [vmem:[%s347 + $0x78] sm:$0xff]
          %vm692 = vcmp.ge.f32.partialorder %v676, 0.0
          %vm693 = vcmp.ge.f32.partialorder %v677, 0.0
          %vm694 = vcmp.ge.f32.partialorder %v678, 0.0
          %vm695 = vcmp.ge.f32.partialorder %v679, 0.0
          %vm696 = vcmp.ge.f32.partialorder %v680, 0.0
          %vm697 = vcmp.ge.f32.partialorder %v681, 0.0
          %vm698 = vcmp.ge.f32.partialorder %v682, 0.0
          %vm699 = vcmp.ge.f32.partialorder %v683, 0.0
          %vm700 = vcmp.ge.f32.partialorder %v684, 0.0
          %vm701 = vcmp.ge.f32.partialorder %v685, 0.0
          %vm702 = vcmp.ge.f32.partialorder %v686, 0.0
          %vm703 = vcmp.ge.f32.partialorder %v687, 0.0
          %vm704 = vcmp.ge.f32.partialorder %v688, 0.0
          %vm705 = vcmp.ge.f32.partialorder %v689, 0.0
          %vm706 = vcmp.ge.f32.partialorder %v690, 0.0
          %vm707 = vcmp.ge.f32.partialorder %v691, 0.0
          %v708 = vmul.f32 %v676, 0.01
          %v709 = vmul.f32 %v677, 0.01
          %v710 = vmul.f32 %v678, 0.01
          %v711 = vmul.f32 %v679, 0.01
          %v712 = vmul.f32 %v680, 0.01
          %v713 = vmul.f32 %v681, 0.01
          %v714 = vmul.f32 %v682, 0.01
          %v715 = vmul.f32 %v683, 0.01
          %v716 = vmul.f32 %v684, 0.01
          %v717 = vmul.f32 %v685, 0.01
          %v718 = vmul.f32 %v686, 0.01
          %v719 = vmul.f32 %v687, 0.01
          %v720 = vmul.f32 %v688, 0.01
          %v721 = vmul.f32 %v689, 0.01
          %v722 = vmul.f32 %v690, 0.01
          %v723 = vmul.f32 %v691, 0.01
          %v724 = vsel %vm692, %v676, %v708
          %v725 = vsel %vm693, %v677, %v709
          %v726 = vsel %vm694, %v678, %v710
          %v727 = vsel %vm695, %v679, %v711
          %v728 = vsel %vm696, %v680, %v712
          %v729 = vsel %vm697, %v681, %v713
          %v730 = vsel %vm698, %v682, %v714
          %v731 = vsel %vm699, %v683, %v715
          %v732 = vsel %vm700, %v684, %v716
          %v733 = vsel %vm701, %v685, %v717
          %v734 = vsel %vm702, %v686, %v718
          %v735 = vsel %vm703, %v687, %v719
          %v736 = vsel %vm704, %v688, %v720
          %v737 = vsel %vm705, %v689, %v721
          %v738 = vsel %vm706, %v690, %v722
          %v739 = vsel %vm707, %v691, %v723
          %v740 = vld [vmem:[%s353] sm:$0xff]
          %v741 = vld [vmem:[%s353 + $0x8] sm:$0xff]
          %v742 = vld [vmem:[%s353 + $0x10] sm:$0xff]
          %v743 = vld [vmem:[%s353 + $0x18] sm:$0xff]
          %v744 = vld [vmem:[%s353 + $0x20] sm:$0xff]
          %v745 = vld [vmem:[%s353 + $0x28] sm:$0xff]
          %v746 = vld [vmem:[%s353 + $0x30] sm:$0xff]
          %v747 = vld [vmem:[%s353 + $0x38] sm:$0xff]
          %v748 = vld [vmem:[%s353 + $0x40] sm:$0xff]
          %v749 = vld [vmem:[%s353 + $0x48] sm:$0xff]
          %v750 = vld [vmem:[%s353 + $0x50] sm:$0xff]
          %v751 = vld [vmem:[%s353 + $0x58] sm:$0xff]
          %v752 = vld [vmem:[%s353 + $0x60] sm:$0xff]
          %v753 = vld [vmem:[%s353 + $0x68] sm:$0xff]
          %v754 = vld [vmem:[%s353 + $0x70] sm:$0xff]
          %v755 = vld [vmem:[%s353 + $0x78] sm:$0xff]
          %v756 = vadd.f32 %v724, %v740
          %v757 = vadd.f32 %v725, %v741
          %v758 = vadd.f32 %v726, %v742
          %v759 = vadd.f32 %v727, %v743
          %v760 = vadd.f32 %v728, %v744
          %v761 = vadd.f32 %v729, %v745
          %v762 = vadd.f32 %v730, %v746
          %v763 = vadd.f32 %v731, %v747
          %v764 = vadd.f32 %v732, %v748
          %v765 = vadd.f32 %v733, %v749
          %v766 = vadd.f32 %v734, %v750
          %v767 = vadd.f32 %v735, %v751
          %v768 = vadd.f32 %v736, %v752
          %v769 = vadd.f32 %v737, %v753
          %v770 = vadd.f32 %v738, %v754
          %v771 = vadd.f32 %v739, %v755
          %v772 = vld [vmem:[%s4] sm:$0xff]
          %v773 = vld [vmem:[%s4 + $0x8] sm:$0xff]
          %v774 = vld [vmem:[%s4 + $0x10] sm:$0xff]
          %v775 = vld [vmem:[%s4 + $0x18] sm:$0xff]
          %v776 = vld [vmem:[%s4 + $0x20] sm:$0xff]
          %v777 = vld [vmem:[%s4 + $0x28] sm:$0xff]
          %v778 = vld [vmem:[%s4 + $0x30] sm:$0xff]
          %v779 = vld [vmem:[%s4 + $0x38] sm:$0xff]
          %v780 = vld [vmem:[%s4 + $0x40] sm:$0xff]
          %v781 = vld [vmem:[%s4 + $0x48] sm:$0xff]
          %v782 = vld [vmem:[%s4 + $0x50] sm:$0xff]
          %v783 = vld [vmem:[%s4 + $0x58] sm:$0xff]
          %v784 = vld [vmem:[%s4 + $0x60] sm:$0xff]
          %v785 = vld [vmem:[%s4 + $0x68] sm:$0xff]
          %v786 = vld [vmem:[%s4 + $0x70] sm:$0xff]
          %v787 = vld [vmem:[%s4 + $0x78] sm:$0xff]
          %v788 = vld [vmem:[%s5] sm:$0x1]
          %v790 = vlaneseq
          %v791 = vshrl.u32 %v790, 7
          %v792 = vsub.s32 0, %v791
          %v793 = vrot.slane %v788, %v792
          %795 = vmatprep.subr.mxu0 0.0
          %796 = vmatpush1.msra.mxu0 %v772
          %797 = vmatprep.subr.mxu0 0.0
          %798 = vmatpush1.msra.mxu0 %v773
          %799 = vmatprep.subr.mxu0 0.0
          %800 = vmatpush1.msra.mxu0 %v774
          %801 = vmatprep.subr.mxu0 0.0
          %802 = vmatpush1.msra.mxu0 %v775
          %803 = vmatprep.subr.mxu0 0.0
          %804 = vmatpush1.msra.mxu0 %v776
          %805 = vmatprep.subr.mxu0 0.0
          %806 = vmatpush1.msra.mxu0 %v777
          %807 = vmatprep.subr.mxu0 0.0
          %808 = vmatpush1.msra.mxu0 %v778
          %809 = vmatprep.subr.mxu0 0.0
          %810 = vmatpush1.msra.mxu0 %v779
          %811 = vmatprep.subr.mxu0 0.0
          %812 = vmatpush1.msra.mxu0 %v780
          %813 = vmatprep.subr.mxu0 0.0
          %814 = vmatpush1.msra.mxu0 %v781
          %815 = vmatprep.subr.mxu0 0.0
          %816 = vmatpush1.msra.mxu0 %v782
          %817 = vmatprep.subr.mxu0 0.0
          %818 = vmatpush1.msra.mxu0 %v783
          %819 = vmatprep.subr.mxu0 0.0
          %820 = vmatpush1.msra.mxu0 %v784
          %821 = vmatprep.subr.mxu0 0.0
          %822 = vmatpush1.msra.mxu0 %v785
          %823 = vmatprep.subr.mxu0 0.0
          %824 = vmatpush1.msra.mxu0 %v786
          %825 = vmatprep.subr.mxu0 0.0
          %826 = vmatpush1.msra.mxu0 %v787
          %827 = vmatprep.subr.mxu0 0.0
          %828 = vmatpush1.msra.mxu0 0.0
          %829 = vmatprep.subr.mxu0 0.0
          %830 = vmatpush1.msra.mxu0 0.0
          %831 = vmatprep.subr.mxu0 0.0
          %832 = vmatpush1.msra.mxu0 0.0
          %833 = vmatprep.subr.mxu0 0.0
          %834 = vmatpush1.msra.mxu0 0.0
          %835 = vmatprep.subr.mxu0 0.0
          %836 = vmatpush1.msra.mxu0 0.0
          %837 = vmatprep.subr.mxu0 0.0
          %838 = vmatpush1.msra.mxu0 0.0
          %839 = vmatprep.subr.mxu0 0.0
          %840 = vmatpush1.msra.mxu0 0.0
          %841 = vmatprep.subr.mxu0 0.0
          %842 = vmatpush1.msra.mxu0 0.0
          %843 = vmatprep.subr.mxu0 0.0
          %844 = vmatpush1.msra.mxu0 0.0
          %845 = vmatprep.subr.mxu0 0.0
          %846 = vmatpush1.msra.mxu0 0.0
          %847 = vmatprep.subr.mxu0 0.0
          %848 = vmatpush1.msra.mxu0 0.0
          %849 = vmatprep.subr.mxu0 0.0
          %850 = vmatpush1.msra.mxu0 0.0
          %851 = vmatprep.subr.mxu0 0.0
          %852 = vmatpush1.msra.mxu0 0.0
          %853 = vmatprep.subr.mxu0 0.0
          %854 = vmatpush1.msra.mxu0 0.0
          %855 = vmatprep.subr.mxu0 0.0
          %856 = vmatpush1.msra.mxu0 0.0
          %857 = vmatprep.subr.mxu0 0.0
          %858 = vmatpush1.msra.mxu0 0.0
          %859 = vmatprep.mubr.f32.mxu0 0.0
          %860 = vmatmul.mubr.f32.gmra.mrb[0].mxu0 %v660
          %v861 = vpop.f32.mrb[0].mxu0
          %v862 = vadd.f32 %v793, %v861
          %v863 = vpop.f32.mrb[0].mxu0
          %864 = vmatprep.mubr.f32.mxu0 0.0
          %865 = vmatmul.mubr.f32.gmra.mrb[0].mxu0 %v661
          %v866 = vpop.f32.mrb[0].mxu0
          %v867 = vadd.f32 %v793, %v866
          %v868 = vpop.f32.mrb[0].mxu0
          %869 = vmatprep.mubr.f32.mxu0 0.0
          %870 = vmatmul.mubr.f32.gmra.mrb[0].mxu0 %v662
          %v871 = vpop.f32.mrb[0].mxu0
          %v872 = vadd.f32 %v793, %v871
          %v873 = vpop.f32.mrb[0].mxu0
          %874 = vmatprep.mubr.f32.mxu0 0.0
          %875 = vmatmul.mubr.f32.gmra.mrb[0].mxu0 %v663
          %v876 = vpop.f32.mrb[0].mxu0
          %v877 = vadd.f32 %v793, %v876
          %v878 = vpop.f32.mrb[0].mxu0
          %879 = vmatprep.mubr.f32.mxu0 0.0
          %880 = vmatmul.mubr.f32.gmra.mrb[0].mxu0 %v664
          %v881 = vpop.f32.mrb[0].mxu0
          %v882 = vadd.f32 %v793, %v881
          %v883 = vpop.f32.mrb[0].mxu0
          %884 = vmatprep.mubr.f32.mxu0 0.0
          %885 = vmatmul.mubr.f32.gmra.mrb[0].mxu0 %v665
          %v886 = vpop.f32.mrb[0].mxu0
          %v887 = vadd.f32 %v793, %v886
          %v888 = vpop.f32.mrb[0].mxu0
          %889 = vmatprep.mubr.f32.mxu0 0.0
          %890 = vmatmul.mubr.f32.gmra.mrb[0].mxu0 %v666
          %v891 = vpop.f32.mrb[0].mxu0
          %v892 = vadd.f32 %v793, %v891
          %v893 = vpop.f32.mrb[0].mxu0
          %894 = vmatprep.mubr.f32.mxu0 0.0
          %895 = vmatmul.mubr.f32.gmra.mrb[0].mxu0 %v667
          %v896 = vpop.f32.mrb[0].mxu0
          %v897 = vadd.f32 %v793, %v896
          %v898 = vpop.f32.mrb[0].mxu0
          %899 = vmatprep.mubr.f32.mxu0 0.0
          %900 = vmatmul.mubr.f32.gmra.mrb[0].mxu0 %v668
          %v901 = vpop.f32.mrb[0].mxu0
          %v902 = vadd.f32 %v793, %v901
          %v903 = vpop.f32.mrb[0].mxu0
          %904 = vmatprep.mubr.f32.mxu0 0.0
          %905 = vmatmul.mubr.f32.gmra.mrb[0].mxu0 %v669
          %v906 = vpop.f32.mrb[0].mxu0
          %v907 = vadd.f32 %v793, %v906
          %v908 = vpop.f32.mrb[0].mxu0
          %909 = vmatprep.mubr.f32.mxu0 0.0
          %910 = vmatmul.mubr.f32.gmra.mrb[0].mxu0 %v670
          %v911 = vpop.f32.mrb[0].mxu0
          %v912 = vadd.f32 %v793, %v911
          %v913 = vpop.f32.mrb[0].mxu0
          %914 = vmatprep.mubr.f32.mxu0 0.0
          %915 = vmatmul.mubr.f32.gmra.mrb[0].mxu0 %v671
          %v916 = vpop.f32.mrb[0].mxu0
          %v917 = vadd.f32 %v793, %v916
          %v918 = vpop.f32.mrb[0].mxu0
          %919 = vmatprep.mubr.f32.mxu0 0.0
          %920 = vmatmul.mubr.f32.gmra.mrb[0].mxu0 %v672
          %v921 = vpop.f32.mrb[0].mxu0
          %v922 = vadd.f32 %v793, %v921
          %v923 = vpop.f32.mrb[0].mxu0
          %924 = vmatprep.mubr.f32.mxu0 0.0
          %925 = vmatmul.mubr.f32.gmra.mrb[0].mxu0 %v673
          %v926 = vpop.f32.mrb[0].mxu0
          %v927 = vadd.f32 %v793, %v926
          %v928 = vpop.f32.mrb[0].mxu0
          %929 = vmatprep.mubr.f32.mxu0 0.0
          %930 = vmatmul.mubr.f32.gmra.mrb[0].mxu0 %v674
          %v931 = vpop.f32.mrb[0].mxu0
          %v932 = vadd.f32 %v793, %v931
          %v933 = vpop.f32.mrb[0].mxu0
          %934 = vmatprep.mubr.f32.mxu0 0.0
          %935 = vmatmul.mubr.f32.gmra.mrb[0].mxu0 %v675
          %v936 = vpop.f32.mrb[0].mxu0
          %v937 = vadd.f32 %v793, %v936
          %v938 = vpop.f32.mrb[0].mxu0
          %939 = vdwg.mxu0
          %v940 = vadd.f32 %v862, %v756
          %v941 = vadd.f32 %v867, %v757
          %v942 = vadd.f32 %v872, %v758
          %v943 = vadd.f32 %v877, %v759
          %v944 = vadd.f32 %v882, %v760
          %v945 = vadd.f32 %v887, %v761
          %v946 = vadd.f32 %v892, %v762
          %v947 = vadd.f32 %v897, %v763
          %v948 = vadd.f32 %v902, %v764
          %v949 = vadd.f32 %v907, %v765
          %v950 = vadd.f32 %v912, %v766
          %v951 = vadd.f32 %v917, %v767
          %v952 = vadd.f32 %v922, %v768
          %v953 = vadd.f32 %v927, %v769
          %v954 = vadd.f32 %v932, %v770
          %v955 = vadd.f32 %v937, %v771
          %vm956 = vcmp.ge.f32.partialorder %v940, 0.0
          %vm957 = vcmp.ge.f32.partialorder %v941, 0.0
          %vm958 = vcmp.ge.f32.partialorder %v942, 0.0
          %vm959 = vcmp.ge.f32.partialorder %v943, 0.0
          %vm960 = vcmp.ge.f32.partialorder %v944, 0.0
          %vm961 = vcmp.ge.f32.partialorder %v945, 0.0
          %vm962 = vcmp.ge.f32.partialorder %v946, 0.0
          %vm963 = vcmp.ge.f32.partialorder %v947, 0.0
          %vm964 = vcmp.ge.f32.partialorder %v948, 0.0
          %vm965 = vcmp.ge.f32.partialorder %v949, 0.0
          %vm966 = vcmp.ge.f32.partialorder %v950, 0.0
          %vm967 = vcmp.ge.f32.partialorder %v951, 0.0
          %vm968 = vcmp.ge.f32.partialorder %v952, 0.0
          %vm969 = vcmp.ge.f32.partialorder %v953, 0.0
          %vm970 = vcmp.ge.f32.partialorder %v954, 0.0
          %vm971 = vcmp.ge.f32.partialorder %v955, 0.0
          %v972 = vmul.f32 %v940, 0.01
          %v973 = vmul.f32 %v941, 0.01
          %v974 = vmul.f32 %v942, 0.01
          %v975 = vmul.f32 %v943, 0.01
          %v976 = vmul.f32 %v944, 0.01
          %v977 = vmul.f32 %v945, 0.01
          %v978 = vmul.f32 %v946, 0.01
          %v979 = vmul.f32 %v947, 0.01
          %v980 = vmul.f32 %v948, 0.01
          %v981 = vmul.f32 %v949, 0.01
          %v982 = vmul.f32 %v950, 0.01
          %v983 = vmul.f32 %v951, 0.01
          %v984 = vmul.f32 %v952, 0.01
          %v985 = vmul.f32 %v953, 0.01
          %v986 = vmul.f32 %v954, 0.01
          %v987 = vmul.f32 %v955, 0.01
          %v988 = vsel %vm956, %v940, %v972
          %v989 = vsel %vm957, %v941, %v973
          %v990 = vsel %vm958, %v942, %v974
          %v991 = vsel %vm959, %v943, %v975
          %v992 = vsel %vm960, %v944, %v976
          %v993 = vsel %vm961, %v945, %v977
          %v994 = vsel %vm962, %v946, %v978
          %v995 = vsel %vm963, %v947, %v979
          %v996 = vsel %vm964, %v948, %v980
          %v997 = vsel %vm965, %v949, %v981
          %v998 = vsel %vm966, %v950, %v982
          %v999 = vsel %vm967, %v951, %v983
          %v1000 = vsel %vm968, %v952, %v984
          %v1001 = vsel %vm969, %v953, %v985
          %v1002 = vsel %vm970, %v954, %v986
          %v1003 = vsel %vm971, %v955, %v987
          %1004 = vst [vmem:[%s359] sm:$0xff] %v988
          %1005 = vst [vmem:[%s359 + $0x8] sm:$0xff] %v989
          %1006 = vst [vmem:[%s359 + $0x10] sm:$0xff] %v990
          %1007 = vst [vmem:[%s359 + $0x18] sm:$0xff] %v991
          %1008 = vst [vmem:[%s359 + $0x20] sm:$0xff] %v992
          %1009 = vst [vmem:[%s359 + $0x28] sm:$0xff] %v993
          %1010 = vst [vmem:[%s359 + $0x30] sm:$0xff] %v994
          %1011 = vst [vmem:[%s359 + $0x38] sm:$0xff] %v995
          %1012 = vst [vmem:[%s359 + $0x40] sm:$0xff] %v996
          %1013 = vst [vmem:[%s359 + $0x48] sm:$0xff] %v997
          %1014 = vst [vmem:[%s359 + $0x50] sm:$0xff] %v998
          %1015 = vst [vmem:[%s359 + $0x58] sm:$0xff] %v999
          %1016 = vst [vmem:[%s359 + $0x60] sm:$0xff] %v1000
          %1017 = vst [vmem:[%s359 + $0x68] sm:$0xff] %v1001
          %1018 = vst [vmem:[%s359 + $0x70] sm:$0xff] %v1002
          %1019 = vst [vmem:[%s359 + $0x78] sm:$0xff] %v1003
        $region90: #{gcn_forward.7} parent=77 // pred_fallthru
          _
        %s1020 = smul.u32 16, %s21
        %p1021 = scmp.lt.s32.totalorder %s1020, 31
        %s1022 = scalar_select %p1021, %s1020, 31
        %s1023 = smul.addr %s1022, 8
        %s1024 = scalar_lea.vmem %s6, %s1023
        // Predicated region
        $region91: #{gcn_forward.7} parent=77 // pred_check
          %p1025 = pneg %p190
        $region92: #{gcn_forward.7} parent=77 // pred_check_branch
          %1027 = sbr.rel (%p1025) target = $region94
        $region93: #{gcn_forward.7} parent=77 // pred_region
          %s1028 = smul.u32 16, %s21
        $region94: #{gcn_forward.7} parent=77 // pred_fallthru
          _
      $region78: #{gcn_forward.7} parent=5 // pred_fallthru
        _
      %p1029 = scmp.le.s32.totalorder 2, %s12
      // Predicated region
      $region95: #{gcn_forward.7} parent=5 // pred_check
        %p1030 = pneg %p1029
      $region96: #{gcn_forward.7} parent=5 // pred_check_branch
        %1032 = sbr.rel (%p1030) target = $region98
      $region97: #{gcn_forward.7} parent=5 // pred_region
        %s1033 = ssub.s32 %s12, 2
        // Predicated region
        $region99: #{gcn_forward.7} parent=97 // pred_check
          %p1034 = pneg %p196
        $region100: #{gcn_forward.7} parent=97 // pred_check_branch
          %1036 = sbr.rel (%p1034) target = $region102
        $region101: #{gcn_forward.7} parent=97 // pred_region
          %s1037 = smul.u32 16, %s23
          %p1038 = scmp.lt.s32.totalorder %s1037, 31
          %s1039 = scalar_select %p1038, %s1037, 31
          %s1040 = smul.addr %s1039, 8
          %s1041 = scalar_lea.vmem %s6, %s1040
        $region102: #{gcn_forward.7} parent=97 // pred_fallthru
          _
      $region98: #{gcn_forward.7} parent=5 // pred_fallthru
        _
    $region6: #{gcn_forward.7} parent=1 // loop_footer
      %s16 = sadd.s32 1, %s12
    $region7: #{gcn_forward.7} parent=1 // loop_footer_branch
      %11 = sbr.rel target = $region3
    $region8: #{gcn_forward.7} parent=1 // loop_exit
      _

// kernel: gcn_forward.9
$region0: #{gcn_forward.9}
  #allocation0 [shape = 'u32[]', space=smem, size = 0x4, offset = 0x4, fixed_abs, tag = 'smem constant byte address 0x4 - core index']
  #allocation1 [shape = 'u32[144,128]{1,0:T(1,128)}', space=vmem, size = 0x12000, scoped, tag = 'internal scratch']
  #allocation2 [shape = 'f32[128,128]{1,0:T(8,128)}', space=vmem, size = 0x10000, scoped, tag = 'scratch operand']
  %s0 = inlined_call_operand.vmem [shape: s8[256,256], index: 0, kind: input, shape index: {}]
  %s1 = inlined_call_operand.vmem [shape: bf16[256,128], index: 1, kind: input, shape index: {}]
  %s2 = inlined_call_operand.vmem [shape: f32[256,128], index: 2, kind: input, shape index: {}]
  %s3 = inlined_call_operand.vmem [shape: f32[256,128], index: 3, kind: input, shape index: {}]
  %s4 = inlined_call_operand.vmem [shape: f32[128,128], index: 4, kind: input, shape index: {}]
  %s5 = inlined_call_operand.vmem [shape: f32[1,128], index: 5, kind: input, shape index: {}]
  %s6 = inlined_call_operand.hbm [shape: f32[256,128], index: 6, kind: output, shape index: {}]
  %s7 = sld [smem:[#allocation0]]
  $region103: #{gcn_forward.9} parent=0
    _
  %s9 = ssub.s32 1, %s7
  %s10 = scalar_select 0, %s9, %s7
  $region1: #{gcn_forward.9} parent=0
    #allocation3 [shape = 'u8[32768]{0}', space=vmem, size = 0x8000, scoped, tag = 'input window, operand 0']
    #allocation4 [shape = 'u8[131072]{0}', space=vmem, size = 0x20000, scoped, tag = 'output window, operand 0']
    #allocation5 [shape = 's32[2]{0}', space=sflag, size = 0x8, scoped, tag = 'scoped memory for gcn_forward.9']
    %11 = vsyncpa [#allocation5], 0
    %s12 = scalar_lea.sflag [#allocation5], 1
    %13 = vsyncpa %s12, 0
    loop: start=0, step=1, limit=6
    $region2: #{gcn_forward.9} parent=1 // loop_pre_header
      _
    $region3: #{gcn_forward.9} parent=1 // loop_header
      %s15 = sphi 0, %s19
      %p16 = scmp.ge.s32.totalorder %s15, 6
      %s22 = sphi 0, %s34
      %s23 = sphi 0, %s30
      %s24 = sphi 0, %s22
      %s25 = sphi 0, %s23
      %s26 = sphi 0, %s24
      %s27 = sphi 0, %s25
      %s39 = sphi 0, %s41
      %s42 = sphi 0, %s39
      %s43 = sphi 0, %s42
      %s59 = sphi 0, %s43
      %s63 = sphi 0, %s63
      %s65 = sphi 0, %s63
      %s66 = sphi 0, %s65
      %s80 = sphi 0, %s66
      %s86 = sphi 0, %s88
      %s89 = sphi 0, %s86
      %s90 = sphi 0, %s89
      %s106 = sphi 0, %s90
      %s112 = sphi 0, %s114
      %s115 = sphi 0, %s112
      %s116 = sphi 0, %s115
      %s132 = sphi 0, %s116
      %s136 = sphi 0, %s136
      %s138 = sphi 0, %s136
      %s139 = sphi 0, %s138
      %s153 = sphi 0, %s139
      %s157 = sphi 0, %s157
      %s159 = sphi 0, %s157
      %s160 = sphi 0, %s159
      %s174 = sphi 0, %s160
      %s180 = sphi 0, %s182
      %s183 = sphi 0, %s180
      %s184 = sphi 0, %s183
      %s200 = sphi 0, %s184
    $region4: #{gcn_forward.9} parent=1 // loop_header_branch
      %18 = sbr.rel (%p16) target = $region8
    $region5: #{gcn_forward.9} parent=1 // loop_body
      %s20 = ssub.s32 %s15, 1
      %s21 = ssub.s32 %s15, 2
      %s28 = sadd.s32 1, %s23
      %p29 = scmp.ge.s32.totalorder %s28, 2
      %s30 = scalar_select %p29, 0, %s28
      %s31 = sadd.s32 1, %s22
      %s32 = scalar_select %p29, %s31, %s22
      %p33 = scmp.ge.s32.totalorder %s32, 2
      %s34 = scalar_select %p33, 0, %s32
      %s35 = ssub.s32 %s22, %s34
      %s36 = ssub.s32 %s23, %s30
      %s37 = sor.u32 %s35, %s36
      %p38 = scmp.eq.s32.totalorder %s37, 0
      %s40 = sadd.s32 %s39, 1
      %s41 = scalar_select %p38, %s39, %s40
      %p44 = pneg %p38
      %p45 = scmp.eq.s32.totalorder %s15, 3
      %p46 = por %p44, %p45
      %p47 = scmp.ne.s32.totalorder %s39, %s42
      %p48 = scmp.eq.s32.totalorder %s15, 0
      %p49 = por %p47, %p48
      %p50 = scmp.ne.s32.totalorder %s39, %s42
      %p51 = scmp.eq.s32.totalorder %s20, 3
      %p52 = por %p50, %p51
      %p53 = scmp.ne.s32.totalorder %s42, %s43
      %p54 = scmp.eq.s32.totalorder %s20, 0
      %p55 = por %p53, %p54
      %p56 = scmp.ne.s32.totalorder %s42, %s43
      %p57 = scmp.eq.s32.totalorder %s21, 3
      %p58 = por %p56, %p57
      %p60 = scmp.ne.s32.totalorder %s43, %s59
      %p61 = scmp.eq.s32.totalorder %s21, 0
      %p62 = por %p60, %p61
      %s64 = sadd.s32 %s63, 1
      %p67 = scmp.eq.s32.totalorder %s15, 3
      %p68 = scmp.ne.s32.totalorder %s63, %s65
      %p69 = scmp.eq.s32.totalorder %s15, 0
      %p70 = por %p68, %p69
      %p71 = scmp.ne.s32.totalorder %s63, %s65
      %p72 = scmp.eq.s32.totalorder %s20, 3
      %p73 = por %p71, %p72
      %p74 = scmp.ne.s32.totalorder %s65, %s66
      %p75 = scmp.eq.s32.totalorder %s20, 0
      %p76 = por %p74, %p75
      %p77 = scmp.ne.s32.totalorder %s65, %s66
      %p78 = scmp.eq.s32.totalorder %s21, 3
      %p79 = por %p77, %p78
      %p81 = scmp.ne.s32.totalorder %s66, %s80
      %p82 = scmp.eq.s32.totalorder %s21, 0
      %p83 = por %p81, %p82
      %s84 = ssub.s32 %s22, %s34
      %p85 = scmp.eq.s32.totalorder %s84, 0
      %s87 = sadd.s32 %s86, 1
      %s88 = scalar_select %p85, %s86, %s87
      %p91 = pneg %p85
      %p92 = scmp.eq.s32.totalorder %s15, 3
      %p93 = por %p91, %p92
      %p94 = scmp.ne.s32.totalorder %s86, %s89
      %p95 = scmp.eq.s32.totalorder %s15, 0
      %p96 = por %p94, %p95
      %p97 = scmp.ne.s32.totalorder %s86, %s89
      %p98 = scmp.eq.s32.totalorder %s20, 3
      %p99 = por %p97, %p98
      %p100 = scmp.ne.s32.totalorder %s89, %s90
      %p101 = scmp.eq.s32.totalorder %s20, 0
      %p102 = por %p100, %p101
      %p103 = scmp.ne.s32.totalorder %s89, %s90
      %p104 = scmp.eq.s32.totalorder %s21, 3
      %p105 = por %p103, %p104
      %p107 = scmp.ne.s32.totalorder %s90, %s106
      %p108 = scmp.eq.s32.totalorder %s21, 0
      %p109 = por %p107, %p108
      %s110 = ssub.s32 %s22, %s34
      %p111 = scmp.eq.s32.totalorder %s110, 0
      %s113 = sadd.s32 %s112, 1
      %s114 = scalar_select %p111, %s112, %s113
      %p117 = pneg %p111
      %p118 = scmp.eq.s32.totalorder %s15, 3
      %p119 = por %p117, %p118
      %p120 = scmp.ne.s32.totalorder %s112, %s115
      %p121 = scmp.eq.s32.totalorder %s15, 0
      %p122 = por %p120, %p121
      %p123 = scmp.ne.s32.totalorder %s112, %s115
      %p124 = scmp.eq.s32.totalorder %s20, 3
      %p125 = por %p123, %p124
      %p126 = scmp.ne.s32.totalorder %s115, %s116
      %p127 = scmp.eq.s32.totalorder %s20, 0
      %p128 = por %p126, %p127
      %p129 = scmp.ne.s32.totalorder %s115, %s116
      %p130 = scmp.eq.s32.totalorder %s21, 3
      %p131 = por %p129, %p130
      %p133 = scmp.ne.s32.totalorder %s116, %s132
      %p134 = scmp.eq.s32.totalorder %s21, 0
      %p135 = por %p133, %p134
      %s137 = sadd.s32 %s136, 1
      %p140 = scmp.eq.s32.totalorder %s15, 3
      %p141 = scmp.ne.s32.totalorder %s136, %s138
      %p142 = scmp.eq.s32.totalorder %s15, 0
      %p143 = por %p141, %p142
      %p144 = scmp.ne.s32.totalorder %s136, %s138
      %p145 = scmp.eq.s32.totalorder %s20, 3
      %p146 = por %p144, %p145
      %p147 = scmp.ne.s32.totalorder %s138, %s139
      %p148 = scmp.eq.s32.totalorder %s20, 0
      %p149 = por %p147, %p148
      %p150 = scmp.ne.s32.totalorder %s138, %s139
      %p151 = scmp.eq.s32.totalorder %s21, 3
      %p152 = por %p150, %p151
      %p154 = scmp.ne.s32.totalorder %s139, %s153
      %p155 = scmp.eq.s32.totalorder %s21, 0
      %p156 = por %p154, %p155
      %s158 = sadd.s32 %s157, 1
      %p161 = scmp.eq.s32.totalorder %s15, 3
      %p162 = scmp.ne.s32.totalorder %s157, %s159
      %p163 = scmp.eq.s32.totalorder %s15, 0
      %p164 = por %p162, %p163
      %p165 = scmp.ne.s32.totalorder %s157, %s159
      %p166 = scmp.eq.s32.totalorder %s20, 3
      %p167 = por %p165, %p166
      %p168 = scmp.ne.s32.totalorder %s159, %s160
      %p169 = scmp.eq.s32.totalorder %s20, 0
      %p170 = por %p168, %p169
      %p171 = scmp.ne.s32.totalorder %s159, %s160
      %p172 = scmp.eq.s32.totalorder %s21, 3
      %p173 = por %p171, %p172
      %p175 = scmp.ne.s32.totalorder %s160, %s174
      %p176 = scmp.eq.s32.totalorder %s21, 0
      %p177 = por %p175, %p176
      %s178 = ssub.s32 %s22, %s34
      %p179 = scmp.eq.s32.totalorder %s178, 0
      %s181 = sadd.s32 %s180, 1
      %s182 = scalar_select %p179, %s180, %s181
      %p185 = pneg %p179
      %p186 = scmp.eq.s32.totalorder %s15, 3
      %p187 = por %p185, %p186
      %p188 = scmp.ne.s32.totalorder %s180, %s183
      %p189 = scmp.eq.s32.totalorder %s15, 0
      %p190 = por %p188, %p189
      %p191 = scmp.ne.s32.totalorder %s180, %s183
      %p192 = scmp.eq.s32.totalorder %s20, 3
      %p193 = por %p191, %p192
      %p194 = scmp.ne.s32.totalorder %s183, %s184
      %p195 = scmp.eq.s32.totalorder %s20, 0
      %p196 = por %p194, %p195
      %p197 = scmp.ne.s32.totalorder %s183, %s184
      %p198 = scmp.eq.s32.totalorder %s21, 3
      %p199 = por %p197, %p198
      %p201 = scmp.ne.s32.totalorder %s184, %s200
      %p202 = scmp.eq.s32.totalorder %s21, 0
      %p203 = por %p201, %p202
      %p204 = scmp.le.s32.totalorder 1, %s15
      %p205 = scmp.lt.s32.totalorder %s15, 5
      %p206 = pnand %p204, %p205
      %p207 = pneg %p206
      // Predicated region
      $region9: #{gcn_forward.9} parent=5 // pred_check
        _
      $region10: #{gcn_forward.9} parent=5 // pred_check_branch
        %209 = sbr.rel (%p206) target = $region12
      $region11: #{gcn_forward.9} parent=5 // pred_region
        %s210 = ssub.s32 %s15, 1
        // Predicated region
        $region13: #{gcn_forward.9} parent=11 // pred_check
          %p211 = pneg %p76
        $region14: #{gcn_forward.9} parent=11 // pred_check_branch
          %213 = sbr.rel (%p211) target = $region16
        $region15: #{gcn_forward.9} parent=11 // pred_region
          _
        $region16: #{gcn_forward.9} parent=11 // pred_fallthru
          _
        // Predicated region
        $region17: #{gcn_forward.9} parent=11 // pred_check
          %p214 = pneg %p149
        $region18: #{gcn_forward.9} parent=11 // pred_check_branch
          %216 = sbr.rel (%p214) target = $region20
        $region19: #{gcn_forward.9} parent=11 // pred_region
          _
        $region20: #{gcn_forward.9} parent=11 // pred_fallthru
          _
        // Predicated region
        $region21: #{gcn_forward.9} parent=11 // pred_check
          %p217 = pneg %p170
        $region22: #{gcn_forward.9} parent=11 // pred_check_branch
          %219 = sbr.rel (%p217) target = $region24
        $region23: #{gcn_forward.9} parent=11 // pred_region
          _
        $region24: #{gcn_forward.9} parent=11 // pred_fallthru
          _
      $region12: #{gcn_forward.9} parent=5 // pred_fallthru
        _
      %p220 = scmp.lt.s32.totalorder %s15, 4
      // Predicated region
      $region25: #{gcn_forward.9} parent=5 // pred_check
        %p221 = pneg %p220
      $region26: #{gcn_forward.9} parent=5 // pred_check_branch
        %223 = sbr.rel (%p221) target = $region28
      $region27: #{gcn_forward.9} parent=5 // pred_region
        // Predicated region
        $region29: #{gcn_forward.9} parent=27 // pred_check
          %p224 = pneg %p49
        $region30: #{gcn_forward.9} parent=27 // pred_check_branch
          %226 = sbr.rel (%p224) target = $region32
        $region31: #{gcn_forward.9} parent=27 // pred_region
          %s227 = sand.u32 %s39, 1
          %s228 = sand.u32 %s39, 1
          %s229 = smul.addr %s228, 32
          %s230 = scalar_lea.vmem [#allocation3], %s229
          %s231 = smul.u32 4, %s22
          %s232 = smul.addr %s231, 2
          %s233 = sadd.s32 %s23, %s232
          %s234 = smul.addr %s233, 8
          %s235 = scalar_lea.vmem %s0, %s234
          // Predicated region
          $region33: #{gcn_forward.9} parent=31 // pred_check
            _
          $region34: #{gcn_forward.9} parent=31 // pred_check_branch
            %237 = sbr.rel (0) target = $region36
          $region35: #{gcn_forward.9} parent=31 // pred_region
            // Predicated region
            $region37: #{gcn_forward.9} parent=35 // pred_check
              _
            $region38: #{gcn_forward.9} parent=35 // pred_check_branch
              %239 = sbr.rel (0) target = $region40
            $region39: #{gcn_forward.9} parent=35 // pred_region
              // Predicated region
              $region52: #{gcn_forward.9} parent=39 // pred_check
                _
              $region53: #{gcn_forward.9} parent=39 // pred_check_branch
                %260 = sbr.rel (0) target = $region55
              $region54: #{gcn_forward.9} parent=39 // pred_region
                loop: start=0, step=1, limit=1
                $region56: #{gcn_forward.9} parent=54 // loop_pre_header
                  _
                $region57: #{gcn_forward.9} parent=54 // loop_header
                  %s262 = sphi 0, %s266
                  %p263 = scmp.ge.s32.totalorder %s262, 1
                  %s267 = sphi %s235, %s235
                  %s268 = sphi %s230, %s230
                $region58: #{gcn_forward.9} parent=54 // loop_header_branch
                  %265 = sbr.rel (%p263) target = $region62
                $region59: #{gcn_forward.9} parent=54 // loop_body
                  %v269 = vld [vmem:[%s267] sm:$0xff]
                  %270 = vst [vmem:[%s268] sm:$0xff] %v269
                  %v271 = vld [vmem:[%s267 + $0x10] sm:$0xff]
                  %272 = vst [vmem:[%s268 + $0x8] sm:$0xff] %v271
                  %v273 = vld [vmem:[%s267 + $0x20] sm:$0xff]
                  %274 = vst [vmem:[%s268 + $0x10] sm:$0xff] %v273
                  %v275 = vld [vmem:[%s267 + $0x30] sm:$0xff]
                  %276 = vst [vmem:[%s268 + $0x18] sm:$0xff] %v275
                $region60: #{gcn_forward.9} parent=54 // loop_footer
                  %s266 = sadd.s32 1, %s262
                $region61: #{gcn_forward.9} parent=54 // loop_footer_branch
                  %261 = sbr.rel target = $region57
                $region62: #{gcn_forward.9} parent=54 // loop_exit
                  _
              $region55: #{gcn_forward.9} parent=39 // pred_fallthru
                _
              // Predicated region
              $region63: #{gcn_forward.9} parent=39 // pred_check
                _
              $region64: #{gcn_forward.9} parent=39 // pred_check_branch
                %278 = sbr.rel target = $region66
              $region65: #{gcn_forward.9} parent=39 // pred_region
                _
              $region66: #{gcn_forward.9} parent=39 // pred_fallthru
                _
            $region40: #{gcn_forward.9} parent=35 // pred_fallthru
              _
            // Predicated region
            $region41: #{gcn_forward.9} parent=35 // pred_check
              _
            $region42: #{gcn_forward.9} parent=35 // pred_check_branch
              %241 = sbr.rel target = $region44
            $region43: #{gcn_forward.9} parent=35 // pred_region
              loop: start=0, step=1, limit=1
              $region45: #{gcn_forward.9} parent=43 // loop_pre_header
                _
              $region46: #{gcn_forward.9} parent=43 // loop_header
                %s244 = sphi 0, %s248
                %p245 = scmp.ge.s32.totalorder %s244, 1
                %s249 = sphi %s235, %s235
                %s250 = sphi %s230, %s230
              $region47: #{gcn_forward.9} parent=43 // loop_header_branch
                %247 = sbr.rel (%p245) target = $region51
              $region48: #{gcn_forward.9} parent=43 // loop_body
                %v251 = vld [vmem:[%s249] sm:$0xff]
                %252 = vst [vmem:[%s250] sm:$0xff] %v251
                %v253 = vld [vmem:[%s249 + $0x10] sm:$0xff]
                %254 = vst [vmem:[%s250 + $0x8] sm:$0xff] %v253
                %v255 = vld [vmem:[%s249 + $0x20] sm:$0xff]
                %256 = vst [vmem:[%s250 + $0x10] sm:$0xff] %v255
                %v257 = vld [vmem:[%s249 + $0x30] sm:$0xff]
                %258 = vst [vmem:[%s250 + $0x18] sm:$0xff] %v257
              $region49: #{gcn_forward.9} parent=43 // loop_footer
                %s248 = sadd.s32 1, %s244
              $region50: #{gcn_forward.9} parent=43 // loop_footer_branch
                %243 = sbr.rel target = $region46
              $region51: #{gcn_forward.9} parent=43 // loop_exit
                _
            $region44: #{gcn_forward.9} parent=35 // pred_fallthru
              _
          $region36: #{gcn_forward.9} parent=31 // pred_fallthru
            _
          %279 = vnop
        $region32: #{gcn_forward.9} parent=27 // pred_fallthru
          _
        // Predicated region
        $region67: #{gcn_forward.9} parent=27 // pred_check
          %p280 = pneg %p96
        $region68: #{gcn_forward.9} parent=27 // pred_check_branch
          %282 = sbr.rel (%p280) target = $region70
        $region69: #{gcn_forward.9} parent=27 // pred_region
          %s283 = smul.u32 16, %s22
          %p284 = scmp.lt.s32.totalorder %s283, 31
          %s285 = scalar_select %p284, %s283, 31
          %s286 = smul.addr %s285, 8
          %s287 = scalar_lea.vmem %s2, %s286
          %s288 = smul.u32 16, %s22
        $region70: #{gcn_forward.9} parent=27 // pred_fallthru
          _
        // Predicated region
        $region71: #{gcn_forward.9} parent=27 // pred_check
          %p289 = pneg %p122
        $region72: #{gcn_forward.9} parent=27 // pred_check_branch
          %291 = sbr.rel (%p289) target = $region74
        $region73: #{gcn_forward.9} parent=27 // pred_region
          %s292 = smul.u32 16, %s22
          %p293 = scmp.lt.s32.totalorder %s292, 31
          %s294 = scalar_select %p293, %s292, 31
          %s295 = smul.addr %s294, 8
          %s296 = scalar_lea.vmem %s3, %s295
          %s297 = smul.u32 16, %s22
        $region74: #{gcn_forward.9} parent=27 // pred_fallthru
          _
      $region28: #{gcn_forward.9} parent=5 // pred_fallthru
        _
      %p298 = scmp.le.s32.totalorder 1, %s15
      %p299 = scmp.lt.s32.totalorder %s15, 5
      %p300 = pnand %p298, %p299
      %p301 = pneg %p300
      // Predicated region
      $region75: #{gcn_forward.9} parent=5 // pred_check
        _
      $region76: #{gcn_forward.9} parent=5 // pred_check_branch
        %303 = sbr.rel (%p300) target = $region78
      $region77: #{gcn_forward.9} parent=5 // pred_region
        %s304 = ssub.s32 %s15, 1
        %s305 = sand.u32 %s42, 1
        %s306 = sand.u32 %s42, 1
        %s307 = smul.addr %s306, 32
        %s308 = scalar_lea.vmem [#allocation3], %s307
        // Predicated region
        $region79: #{gcn_forward.9} parent=77 // pred_check
          %p309 = pneg %p55
        $region80: #{gcn_forward.9} parent=77 // pred_check_branch
          %311 = sbr.rel (%p309) target = $region82
        $region81: #{gcn_forward.9} parent=77 // pred_region
          _
        $region82: #{gcn_forward.9} parent=77 // pred_fallthru
          _
        %s312 = sand.u32 %s42, 1
        %s313 = sand.u32 %s42, 1
        %s314 = smul.addr %s313, 32
        %s315 = scalar_lea.vmem [#allocation3], %s314
        %p316 = pneg %p55
        %p317 = pneg %p52
        %p318 = pneg %p76
        %p319 = pneg %p73
        %s320 = smul.u32 16, %s24
        %p321 = scmp.lt.s32.totalorder %s320, 31
        %s322 = scalar_select %p321, %s320, 31
        %s323 = smul.addr %s322, 8
        %s324 = scalar_lea.vmem %s2, %s323
        %p325 = pneg %p102
        %p326 = pneg %p99
        %s327 = smul.u32 16, %s24
        %p328 = scmp.lt.s32.totalorder %s327, 31
        %s329 = scalar_select %p328, %s327, 31
        %s330 = smul.addr %s329, 8
        %s331 = scalar_lea.vmem %s3, %s330
        %p332 = pneg %p128
        %p333 = pneg %p125
        %p334 = pneg %p149
        %p335 = pneg %p146
        %p336 = pneg %p170
        %p337 = pneg %p167
        %p338 = pneg %p196
        %p339 = pneg %p193
        %s340 = sand.u32 %s183, 1
        %s341 = scalar_lea.sflag [#allocation5], %s340
        %s342 = sand.u32 %s183, 1
        %s343 = smul.addr %s342, 128
        %s344 = scalar_lea.vmem [#allocation4], %s343
        %s345 = smul.u32 4, %s24
        %s346 = smul.u32 16, %s24
        %p347 = scmp.lt.s32.totalorder %s346, 31
        %s348 = scalar_select %p347, %s346, 31
        %s349 = smul.addr %s348, 8
        %s350 = scalar_lea.vmem %s2, %s349
        %s351 = smul.u32 16, %s24
        %s352 = smul.u32 16, %s24
        %p353 = scmp.lt.s32.totalorder %s352, 31
        %s354 = scalar_select %p353, %s352, 31
        %s355 = smul.addr %s354, 8
        %s356 = scalar_lea.vmem %s3, %s355
        %s357 = smul.u32 16, %s24
        %s358 = smul.u32 16, %s24
        %p360 = scmp.eq.s32.totalorder %s25, 0
        // Predicated region
        $region83: #{gcn_forward.9} parent=77 // pred_check
          %p361 = pneg %p360
        $region84: #{gcn_forward.9} parent=77 // pred_check_branch
          %363 = sbr.rel (%p361) target = $region86
        $region85: #{gcn_forward.9} parent=77 // pred_region
          %364 = vst [vmem:[#allocation2] sm:$0xff] 0.0
          %365 = vst [vmem:[#allocation2 + $0x8] sm:$0xff] 0.0
          %366 = vst [vmem:[#allocation2 + $0x10] sm:$0xff] 0.0
          %367 = vst [vmem:[#allocation2 + $0x18] sm:$0xff] 0.0
          %368 = vst [vmem:[#allocation2 + $0x20] sm:$0xff] 0.0
          %369 = vst [vmem:[#allocation2 + $0x28] sm:$0xff] 0.0
          %370 = vst [vmem:[#allocation2 + $0x30] sm:$0xff] 0.0
          %371 = vst [vmem:[#allocation2 + $0x38] sm:$0xff] 0.0
          %372 = vst [vmem:[#allocation2 + $0x40] sm:$0xff] 0.0
          %373 = vst [vmem:[#allocation2 + $0x48] sm:$0xff] 0.0
          %374 = vst [vmem:[#allocation2 + $0x50] sm:$0xff] 0.0
          %375 = vst [vmem:[#allocation2 + $0x58] sm:$0xff] 0.0
          %376 = vst [vmem:[#allocation2 + $0x60] sm:$0xff] 0.0
          %377 = vst [vmem:[#allocation2 + $0x68] sm:$0xff] 0.0
          %378 = vst [vmem:[#allocation2 + $0x70] sm:$0xff] 0.0
          %379 = vst [vmem:[#allocation2 + $0x78] sm:$0xff] 0.0
        $region86: #{gcn_forward.9} parent=77 // pred_fallthru
          _
        %v380 = vld [vmem:[%s308] sm:$0xff]
        %v381 = vld [vmem:[%s308 + $0x8] sm:$0xff]
        %v382 = vld [vmem:[%s308 + $0x10] sm:$0xff]
        %v383 = vld [vmem:[%s308 + $0x18] sm:$0xff]
        %v384 = vunpack.c.l.s8.bf16 %v380
        %v385 = vunpack.c.h.s8.bf16 %v380
        %v386 = vunpack.c.l.s8.bf16 %v381
        %v387 = vunpack.c.h.s8.bf16 %v381
        %v388 = vunpack.c.l.s8.bf16 %v382
        %v389 = vunpack.c.h.s8.bf16 %v382
        %v390 = vunpack.c.l.s8.bf16 %v383
        %v391 = vunpack.c.h.s8.bf16 %v383
        %s392 = smul.u32 %s25, 128
        %s393 = sshra.s32 %s392, 3
        %s394 = sand.u32 %s392, 7
        %s395 = smul.addr %s393, 4
        %s396 = scalar_lea.vmem %s1, %s395
        %v397 = vld [vmem:[%s396] sm:$0xf]
        %v398 = vld [vmem:[%s396 + $0x4] sm:$0xf]
        %v399 = vld [vmem:[%s396 + $0x8] sm:$0xf]
        %v400 = vld [vmem:[%s396 + $0xc] sm:$0xf]
        %v401 = vld [vmem:[%s396 + $0x10] sm:$0xf]
        %v402 = vld [vmem:[%s396 + $0x14] sm:$0xf]
        %v403 = vld [vmem:[%s396 + $0x18] sm:$0xf]
        %v404 = vld [vmem:[%s396 + $0x1c] sm:$0xf]
        %v405 = vld [vmem:[%s396 + $0x20] sm:$0xf]
        %v406 = vld [vmem:[%s396 + $0x24] sm:$0xf]
        %v407 = vld [vmem:[%s396 + $0x28] sm:$0xf]
        %v408 = vld [vmem:[%s396 + $0x2c] sm:$0xf]
        %v409 = vld [vmem:[%s396 + $0x30] sm:$0xf]
        %v410 = vld [vmem:[%s396 + $0x34] sm:$0xf]
        %v411 = vld [vmem:[%s396 + $0x38] sm:$0xf]
        %v412 = vld [vmem:[%s396 + $0x3c] sm:$0xf]
        %v413 = vld [vmem:[#allocation2] sm:$0xff]
        %v414 = vld [vmem:[#allocation2 + $0x8] sm:$0xff]
        %v415 = vld [vmem:[#allocation2 + $0x10] sm:$0xff]
        %v416 = vld [vmem:[#allocation2 + $0x18] sm:$0xff]
        %v417 = vld [vmem:[#allocation2 + $0x20] sm:$0xff]
        %v418 = vld [vmem:[#allocation2 + $0x28] sm:$0xff]
        %v419 = vld [vmem:[#allocation2 + $0x30] sm:$0xff]
        %v420 = vld [vmem:[#allocation2 + $0x38] sm:$0xff]
        %v421 = vld [vmem:[#allocation2 + $0x40] sm:$0xff]
        %v422 = vld [vmem:[#allocation2 + $0x48] sm:$0xff]
        %v423 = vld [vmem:[#allocation2 + $0x50] sm:$0xff]
        %v424 = vld [vmem:[#allocation2 + $0x58] sm:$0xff]
        %v425 = vld [vmem:[#allocation2 + $0x60] sm:$0xff]
        %v426 = vld [vmem:[#allocation2 + $0x68] sm:$0xff]
        %v427 = vld [vmem:[#allocation2 + $0x70] sm:$0xff]
        %v428 = vld [vmem:[#allocation2 + $0x78] sm:$0xff]
        %v445 = vunpack.c.l.b16 %v397
        %v446 = vunpack.c.l.b16 %v398
        %v447 = vunpack.c.l.b16 %v399
        %v448 = vunpack.c.l.b16 %v400
        %v449 = vunpack.c.l.b16 %v401
        %v450 = vunpack.c.l.b16 %v402
        %v451 = vunpack.c.l.b16 %v403
        %v452 = vunpack.c.l.b16 %v404
        %v453 = vunpack.c.l.b16 %v405
        %v454 = vunpack.c.l.b16 %v406
        %v455 = vunpack.c.l.b16 %v407
        %v456 = vunpack.c.l.b16 %v408
        %v457 = vunpack.c.l.b16 %v409
        %v458 = vunpack.c.l.b16 %v410
        %v459 = vunpack.c.l.b16 %v411
        %v460 = vunpack.c.l.b16 %v412
        %v461 = vpack.c.b16 %v446, %v445
        %v462 = vpack.c.b16 %v448, %v447
        %v463 = vpack.c.b16 %v450, %v449
        %v464 = vpack.c.b16 %v452, %v451
        %v465 = vpack.c.b16 %v454, %v453
        %v466 = vpack.c.b16 %v456, %v455
        %v467 = vpack.c.b16 %v458, %v457
        %v468 = vpack.c.b16 %v460, %v459
        %477 = vmatprep.subr.bf16.mxu0 0
        %478 = vmatpush1.bf16.msra.mxu0 %v461
        %479 = vmatprep.subr.bf16.mxu0 0
        %480 = vmatpush1.bf16.msra.mxu0 %v462
        %481 = vmatprep.subr.bf16.mxu0 0
        %482 = vmatpush1.bf16.msra.mxu0 %v463
        %483 = vmatprep.subr.bf16.mxu0 0
        %484 = vmatpush1.bf16.msra.mxu0 %v464
        %485 = vmatprep.subr.bf16.mxu0 0
        %486 = vmatpush1.bf16.msra.mxu0 %v465
        %487 = vmatprep.subr.bf16.mxu0 0
        %488 = vmatpush1.bf16.msra.mxu0 %v466
        %489 = vmatprep.subr.bf16.mxu0 0
        %490 = vmatpush1.bf16.msra.mxu0 %v467
        %491 = vmatprep.subr.bf16.mxu0 0
        %492 = vmatpush1.bf16.msra.mxu0 %v468
        %493 = vmatprep.subr.bf16.mxu0 0
        %494 = vmatpush1.bf16.msra.mxu0 0
        %495 = vmatprep.subr.bf16.mxu0 0
        %496 = vmatpush1.bf16.msra.mxu0 0
        %497 = vmatprep.subr.bf16.mxu0 0
        %498 = vmatpush1.bf16.msra.mxu0 0
        %499 = vmatprep.subr.bf16.mxu0 0
        %500 = vmatpush1.bf16.msra.mxu0 0
        %501 = vmatprep.subr.bf16.mxu0 0
        %502 = vmatpush1.bf16.msra.mxu0 0
        %503 = vmatprep.subr.bf16.mxu0 0
        %504 = vmatpush1.bf16.msra.mxu0 0
        %505 = vmatprep.subr.bf16.mxu0 0
        %506 = vmatpush1.bf16.msra.mxu0 0
        %507 = vmatprep.subr.bf16.mxu0 0
        %508 = vmatpush1.bf16.msra.mxu0 0
        %509 = vmatprep.mubr.bf16.mxu0 0
        %510 = vmatmul.mubr.bf16.gmra.mrb[0].mxu0 %v384
        %v511 = vpop.f32.mrb[0].mxu0
        %v512 = vadd.f32 0.0, %v511
        %v513 = vpop.f32.mrb[0].mxu0
        %v514 = vpop.f32.mrb[0].mxu0
        %v515 = vadd.f32 0.0, %v514
        %v516 = vpop.f32.mrb[0].mxu0
        %517 = vmatprep.mubr.bf16.mxu0 0
        %518 = vmatmul.mubr.bf16.gmra.mrb[0].mxu0 %v385
        %v519 = vpop.f32.mrb[0].mxu0
        %v520 = vadd.f32 0.0, %v519
        %v521 = vpop.f32.mrb[0].mxu0
        %v522 = vpop.f32.mrb[0].mxu0
        %v523 = vadd.f32 0.0, %v522
        %v524 = vpop.f32.mrb[0].mxu0
        %525 = vmatprep.mubr.bf16.mxu0 0
        %526 = vmatmul.mubr.bf16.gmra.mrb[0].mxu0 %v386
        %v527 = vpop.f32.mrb[0].mxu0
        %v528 = vadd.f32 0.0, %v527
        %v529 = vpop.f32.mrb[0].mxu0
        %v530 = vpop.f32.mrb[0].mxu0
        %v531 = vadd.f32 0.0, %v530
        %v532 = vpop.f32.mrb[0].mxu0
        %533 = vmatprep.mubr.bf16.mxu0 0
        %534 = vmatmul.mubr.bf16.gmra.mrb[0].mxu0 %v387
        %v535 = vpop.f32.mrb[0].mxu0
        %v536 = vadd.f32 0.0, %v535
        %v537 = vpop.f32.mrb[0].mxu0
        %v538 = vpop.f32.mrb[0].mxu0
        %v539 = vadd.f32 0.0, %v538
        %v540 = vpop.f32.mrb[0].mxu0
        %541 = vmatprep.mubr.bf16.mxu0 0
        %542 = vmatmul.mubr.bf16.gmra.mrb[0].mxu0 %v388
        %v543 = vpop.f32.mrb[0].mxu0
        %v544 = vadd.f32 0.0, %v543
        %v545 = vpop.f32.mrb[0].mxu0
        %v546 = vpop.f32.mrb[0].mxu0
        %v547 = vadd.f32 0.0, %v546
        %v548 = vpop.f32.mrb[0].mxu0
        %549 = vmatprep.mubr.bf16.mxu0 0
        %550 = vmatmul.mubr.bf16.gmra.mrb[0].mxu0 %v389
        %v551 = vpop.f32.mrb[0].mxu0
        %v552 = vadd.f32 0.0, %v551
        %v553 = vpop.f32.mrb[0].mxu0
        %v554 = vpop.f32.mrb[0].mxu0
        %v555 = vadd.f32 0.0, %v554
        %v556 = vpop.f32.mrb[0].mxu0
        %557 = vmatprep.mubr.bf16.mxu0 0
        %558 = vmatmul.mubr.bf16.gmra.mrb[0].mxu0 %v390
        %v559 = vpop.f32.mrb[0].mxu0
        %v560 = vadd.f32 0.0, %v559
        %v561 = vpop.f32.mrb[0].mxu0
        %v562 = vpop.f32.mrb[0].mxu0
        %v563 = vadd.f32 0.0, %v562
        %v564 = vpop.f32.mrb[0].mxu0
        %565 = vmatprep.mubr.bf16.mxu0 0
        %566 = vmatmul.mubr.bf16.gmra.mrb[0].mxu0 %v391
        %v567 = vpop.f32.mrb[0].mxu0
        %v568 = vadd.f32 0.0, %v567
        %v569 = vpop.f32.mrb[0].mxu0
        %v570 = vpop.f32.mrb[0].mxu0
        %v571 = vadd.f32 0.0, %v570
        %v572 = vpop.f32.mrb[0].mxu0
        %573 = vdwg.mxu0
        %v574 = vadd.f32 %v413, %v512
        %v575 = vadd.f32 %v414, %v515
        %v576 = vadd.f32 %v415, %v520
        %v577 = vadd.f32 %v416, %v523
        %v578 = vadd.f32 %v417, %v528
        %v579 = vadd.f32 %v418, %v531
        %v580 = vadd.f32 %v419, %v536
        %v581 = vadd.f32 %v420, %v539
        %v582 = vadd.f32 %v421, %v544
        %v583 = vadd.f32 %v422, %v547
        %v584 = vadd.f32 %v423, %v552
        %v585 = vadd.f32 %v424, %v555
        %v586 = vadd.f32 %v425, %v560
        %v587 = vadd.f32 %v426, %v563
        %v588 = vadd.f32 %v427, %v568
        %v589 = vadd.f32 %v428, %v571
        %590 = vst [vmem:[#allocation2] sm:$0xff] %v574
        %591 = vst [vmem:[#allocation2 + $0x8] sm:$0xff] %v575
        %592 = vst [vmem:[#allocation2 + $0x10] sm:$0xff] %v576
        %593 = vst [vmem:[#allocation2 + $0x18] sm:$0xff] %v577
        %594 = vst [vmem:[#allocation2 + $0x20] sm:$0xff] %v578
        %595 = vst [vmem:[#allocation2 + $0x28] sm:$0xff] %v579
        %596 = vst [vmem:[#allocation2 + $0x30] sm:$0xff] %v580
        %597 = vst [vmem:[#allocation2 + $0x38] sm:$0xff] %v581
        %598 = vst [vmem:[#allocation2 + $0x40] sm:$0xff] %v582
        %599 = vst [vmem:[#allocation2 + $0x48] sm:$0xff] %v583
        %600 = vst [vmem:[#allocation2 + $0x50] sm:$0xff] %v584
        %601 = vst [vmem:[#allocation2 + $0x58] sm:$0xff] %v585
        %602 = vst [vmem:[#allocation2 + $0x60] sm:$0xff] %v586
        %603 = vst [vmem:[#allocation2 + $0x68] sm:$0xff] %v587
        %604 = vst [vmem:[#allocation2 + $0x70] sm:$0xff] %v588
        %605 = vst [vmem:[#allocation2 + $0x78] sm:$0xff] %v589
        %p606 = scmp.eq.s32.totalorder %s25, 1
        // Predicated region
        $region87: #{gcn_forward.9} parent=77 // pred_check
          %p607 = pneg %p606
        $region88: #{gcn_forward.9} parent=77 // pred_check_branch
          %609 = sbr.rel (%p607) target = $region90
        $region89: #{gcn_forward.9} parent=77 // pred_region
          %v610 = vld [vmem:[#allocation2] sm:$0xff]
          %v611 = vld [vmem:[#allocation2 + $0x8] sm:$0xff]
          %v612 = vld [vmem:[#allocation2 + $0x10] sm:$0xff]
          %v613 = vld [vmem:[#allocation2 + $0x18] sm:$0xff]
          %v614 = vld [vmem:[#allocation2 + $0x20] sm:$0xff]
          %v615 = vld [vmem:[#allocation2 + $0x28] sm:$0xff]
          %v616 = vld [vmem:[#allocation2 + $0x30] sm:$0xff]
          %v617 = vld [vmem:[#allocation2 + $0x38] sm:$0xff]
          %v618 = vld [vmem:[#allocation2 + $0x40] sm:$0xff]
          %v619 = vld [vmem:[#allocation2 + $0x48] sm:$0xff]
          %v620 = vld [vmem:[#allocation2 + $0x50] sm:$0xff]
          %v621 = vld [vmem:[#allocation2 + $0x58] sm:$0xff]
          %v622 = vld [vmem:[#allocation2 + $0x60] sm:$0xff]
          %v623 = vld [vmem:[#allocation2 + $0x68] sm:$0xff]
          %v624 = vld [vmem:[#allocation2 + $0x70] sm:$0xff]
          %v625 = vld [vmem:[#allocation2 + $0x78] sm:$0xff]
          %vm626 = vcmp.ge.f32.partialorder %v610, 0.0
          %vm627 = vcmp.ge.f32.partialorder %v611, 0.0
          %vm628 = vcmp.ge.f32.partialorder %v612, 0.0
          %vm629 = vcmp.ge.f32.partialorder %v613, 0.0
          %vm630 = vcmp.ge.f32.partialorder %v614, 0.0
          %vm631 = vcmp.ge.f32.partialorder %v615, 0.0
          %vm632 = vcmp.ge.f32.partialorder %v616, 0.0
          %vm633 = vcmp.ge.f32.partialorder %v617, 0.0
          %vm634 = vcmp.ge.f32.partialorder %v618, 0.0
          %vm635 = vcmp.ge.f32.partialorder %v619, 0.0
          %vm636 = vcmp.ge.f32.partialorder %v620, 0.0
          %vm637 = vcmp.ge.f32.partialorder %v621, 0.0
          %vm638 = vcmp.ge.f32.partialorder %v622, 0.0
          %vm639 = vcmp.ge.f32.partialorder %v623, 0.0
          %vm640 = vcmp.ge.f32.partialorder %v624, 0.0
          %vm641 = vcmp.ge.f32.partialorder %v625, 0.0
          %v642 = vmul.f32 %v610, 0.01
          %v643 = vmul.f32 %v611, 0.01
          %v644 = vmul.f32 %v612, 0.01
          %v645 = vmul.f32 %v613, 0.01
          %v646 = vmul.f32 %v614, 0.01
          %v647 = vmul.f32 %v615, 0.01
          %v648 = vmul.f32 %v616, 0.01
          %v649 = vmul.f32 %v617, 0.01
          %v650 = vmul.f32 %v618, 0.01
          %v651 = vmul.f32 %v619, 0.01
          %v652 = vmul.f32 %v620, 0.01
          %v653 = vmul.f32 %v621, 0.01
          %v654 = vmul.f32 %v622, 0.01
          %v655 = vmul.f32 %v623, 0.01
          %v656 = vmul.f32 %v624, 0.01
          %v657 = vmul.f32 %v625, 0.01
          %v658 = vsel %vm626, %v610, %v642
          %v659 = vsel %vm627, %v611, %v643
          %v660 = vsel %vm628, %v612, %v644
          %v661 = vsel %vm629, %v613, %v645
          %v662 = vsel %vm630, %v614, %v646
          %v663 = vsel %vm631, %v615, %v647
          %v664 = vsel %vm632, %v616, %v648
          %v665 = vsel %vm633, %v617, %v649
          %v666 = vsel %vm634, %v618, %v650
          %v667 = vsel %vm635, %v619, %v651
          %v668 = vsel %vm636, %v620, %v652
          %v669 = vsel %vm637, %v621, %v653
          %v670 = vsel %vm638, %v622, %v654
          %v671 = vsel %vm639, %v623, %v655
          %v672 = vsel %vm640, %v624, %v656
          %v673 = vsel %vm641, %v625, %v657
          %v674 = vld [vmem:[%s350] sm:$0xff]
          %v675 = vld [vmem:[%s350 + $0x8] sm:$0xff]
          %v676 = vld [vmem:[%s350 + $0x10] sm:$0xff]
          %v677 = vld [vmem:[%s350 + $0x18] sm:$0xff]
          %v678 = vld [vmem:[%s350 + $0x20] sm:$0xff]
          %v679 = vld [vmem:[%s350 + $0x28] sm:$0xff]
          %v680 = vld [vmem:[%s350 + $0x30] sm:$0xff]
          %v681 = vld [vmem:[%s350 + $0x38] sm:$0xff]
          %v682 = vld [vmem:[%s350 + $0x40] sm:$0xff]
          %v683 = vld [vmem:[%s350 + $0x48] sm:$0xff]
          %v684 = vld [vmem:[%s350 + $0x50] sm:$0xff]
          %v685 = vld [vmem:[%s350 + $0x58] sm:$0xff]
          %v686 = vld [vmem:[%s350 + $0x60] sm:$0xff]
          %v687 = vld [vmem:[%s350 + $0x68] sm:$0xff]
          %v688 = vld [vmem:[%s350 + $0x70] sm:$0xff]
          %v689 = vld [vmem:[%s350 + $0x78] sm:$0xff]
          %vm690 = vcmp.ge.f32.partialorder %v674, 0.0
          %vm691 = vcmp.ge.f32.partialorder %v675, 0.0
          %vm692 = vcmp.ge.f32.partialorder %v676, 0.0
          %vm693 = vcmp.ge.f32.partialorder %v677, 0.0
          %vm694 = vcmp.ge.f32.partialorder %v678, 0.0
          %vm695 = vcmp.ge.f32.partialorder %v679, 0.0
          %vm696 = vcmp.ge.f32.partialorder %v680, 0.0
          %vm697 = vcmp.ge.f32.partialorder %v681, 0.0
          %vm698 = vcmp.ge.f32.partialorder %v682, 0.0
          %vm699 = vcmp.ge.f32.partialorder %v683, 0.0
          %vm700 = vcmp.ge.f32.partialorder %v684, 0.0
          %vm701 = vcmp.ge.f32.partialorder %v685, 0.0
          %vm702 = vcmp.ge.f32.partialorder %v686, 0.0
          %vm703 = vcmp.ge.f32.partialorder %v687, 0.0
          %vm704 = vcmp.ge.f32.partialorder %v688, 0.0
          %vm705 = vcmp.ge.f32.partialorder %v689, 0.0
          %v706 = vmul.f32 %v674, 0.01
          %v707 = vmul.f32 %v675, 0.01
          %v708 = vmul.f32 %v676, 0.01
          %v709 = vmul.f32 %v677, 0.01
          %v710 = vmul.f32 %v678, 0.01
          %v711 = vmul.f32 %v679, 0.01
          %v712 = vmul.f32 %v680, 0.01
          %v713 = vmul.f32 %v681, 0.01
          %v714 = vmul.f32 %v682, 0.01
          %v715 = vmul.f32 %v683, 0.01
          %v716 = vmul.f32 %v684, 0.01
          %v717 = vmul.f32 %v685, 0.01
          %v718 = vmul.f32 %v686, 0.01
          %v719 = vmul.f32 %v687, 0.01
          %v720 = vmul.f32 %v688, 0.01
          %v721 = vmul.f32 %v689, 0.01
          %v722 = vsel %vm690, %v674, %v706
          %v723 = vsel %vm691, %v675, %v707
          %v724 = vsel %vm692, %v676, %v708
          %v725 = vsel %vm693, %v677, %v709
          %v726 = vsel %vm694, %v678, %v710
          %v727 = vsel %vm695, %v679, %v711
          %v728 = vsel %vm696, %v680, %v712
          %v729 = vsel %vm697, %v681, %v713
          %v730 = vsel %vm698, %v682, %v714
          %v731 = vsel %vm699, %v683, %v715
          %v732 = vsel %vm700, %v684, %v716
          %v733 = vsel %vm701, %v685, %v717
          %v734 = vsel %vm702, %v686, %v718
          %v735 = vsel %vm703, %v687, %v719
          %v736 = vsel %vm704, %v688, %v720
          %v737 = vsel %vm705, %v689, %v721
          %v738 = vld [vmem:[%s356] sm:$0xff]
          %v739 = vld [vmem:[%s356 + $0x8] sm:$0xff]
          %v740 = vld [vmem:[%s356 + $0x10] sm:$0xff]
          %v741 = vld [vmem:[%s356 + $0x18] sm:$0xff]
          %v742 = vld [vmem:[%s356 + $0x20] sm:$0xff]
          %v743 = vld [vmem:[%s356 + $0x28] sm:$0xff]
          %v744 = vld [vmem:[%s356 + $0x30] sm:$0xff]
          %v745 = vld [vmem:[%s356 + $0x38] sm:$0xff]
          %v746 = vld [vmem:[%s356 + $0x40] sm:$0xff]
          %v747 = vld [vmem:[%s356 + $0x48] sm:$0xff]
          %v748 = vld [vmem:[%s356 + $0x50] sm:$0xff]
          %v749 = vld [vmem:[%s356 + $0x58] sm:$0xff]
          %v750 = vld [vmem:[%s356 + $0x60] sm:$0xff]
          %v751 = vld [vmem:[%s356 + $0x68] sm:$0xff]
          %v752 = vld [vmem:[%s356 + $0x70] sm:$0xff]
          %v753 = vld [vmem:[%s356 + $0x78] sm:$0xff]
          %v754 = vadd.f32 %v722, %v738
          %v755 = vadd.f32 %v723, %v739
          %v756 = vadd.f32 %v724, %v740
          %v757 = vadd.f32 %v725, %v741
          %v758 = vadd.f32 %v726, %v742
          %v759 = vadd.f32 %v727, %v743
          %v760 = vadd.f32 %v728, %v744
          %v761 = vadd.f32 %v729, %v745
          %v762 = vadd.f32 %v730, %v746
          %v763 = vadd.f32 %v731, %v747
          %v764 = vadd.f32 %v732, %v748
          %v765 = vadd.f32 %v733, %v749
          %v766 = vadd.f32 %v734, %v750
          %v767 = vadd.f32 %v735, %v751
          %v768 = vadd.f32 %v736, %v752
          %v769 = vadd.f32 %v737, %v753
          %v770 = vld [vmem:[%s4] sm:$0xff]
          %v771 = vld [vmem:[%s4 + $0x8] sm:$0xff]
          %v772 = vld [vmem:[%s4 + $0x10] sm:$0xff]
          %v773 = vld [vmem:[%s4 + $0x18] sm:$0xff]
          %v774 = vld [vmem:[%s4 + $0x20] sm:$0xff]
          %v775 = vld [vmem:[%s4 + $0x28] sm:$0xff]
          %v776 = vld [vmem:[%s4 + $0x30] sm:$0xff]
          %v777 = vld [vmem:[%s4 + $0x38] sm:$0xff]
          %v778 = vld [vmem:[%s4 + $0x40] sm:$0xff]
          %v779 = vld [vmem:[%s4 + $0x48] sm:$0xff]
          %v780 = vld [vmem:[%s4 + $0x50] sm:$0xff]
          %v781 = vld [vmem:[%s4 + $0x58] sm:$0xff]
          %v782 = vld [vmem:[%s4 + $0x60] sm:$0xff]
          %v783 = vld [vmem:[%s4 + $0x68] sm:$0xff]
          %v784 = vld [vmem:[%s4 + $0x70] sm:$0xff]
          %v785 = vld [vmem:[%s4 + $0x78] sm:$0xff]
          %v786 = vld [vmem:[%s5] sm:$0x1]
          %v788 = vlaneseq
          %v789 = vshrl.u32 %v788, 7
          %v790 = vsub.s32 0, %v789
          %v791 = vrot.slane %v786, %v790
          %793 = vmatprep.subr.mxu0 0.0
          %794 = vmatpush1.msra.mxu0 %v770
          %795 = vmatprep.subr.mxu0 0.0
          %796 = vmatpush1.msra.mxu0 %v771
          %797 = vmatprep.subr.mxu0 0.0
          %798 = vmatpush1.msra.mxu0 %v772
          %799 = vmatprep.subr.mxu0 0.0
          %800 = vmatpush1.msra.mxu0 %v773
          %801 = vmatprep.subr.mxu0 0.0
          %802 = vmatpush1.msra.mxu0 %v774
          %803 = vmatprep.subr.mxu0 0.0
          %804 = vmatpush1.msra.mxu0 %v775
          %805 = vmatprep.subr.mxu0 0.0
          %806 = vmatpush1.msra.mxu0 %v776
          %807 = vmatprep.subr.mxu0 0.0
          %808 = vmatpush1.msra.mxu0 %v777
          %809 = vmatprep.subr.mxu0 0.0
          %810 = vmatpush1.msra.mxu0 %v778
          %811 = vmatprep.subr.mxu0 0.0
          %812 = vmatpush1.msra.mxu0 %v779
          %813 = vmatprep.subr.mxu0 0.0
          %814 = vmatpush1.msra.mxu0 %v780
          %815 = vmatprep.subr.mxu0 0.0
          %816 = vmatpush1.msra.mxu0 %v781
          %817 = vmatprep.subr.mxu0 0.0
          %818 = vmatpush1.msra.mxu0 %v782
          %819 = vmatprep.subr.mxu0 0.0
          %820 = vmatpush1.msra.mxu0 %v783
          %821 = vmatprep.subr.mxu0 0.0
          %822 = vmatpush1.msra.mxu0 %v784
          %823 = vmatprep.subr.mxu0 0.0
          %824 = vmatpush1.msra.mxu0 %v785
          %825 = vmatprep.subr.mxu0 0.0
          %826 = vmatpush1.msra.mxu0 0.0
          %827 = vmatprep.subr.mxu0 0.0
          %828 = vmatpush1.msra.mxu0 0.0
          %829 = vmatprep.subr.mxu0 0.0
          %830 = vmatpush1.msra.mxu0 0.0
          %831 = vmatprep.subr.mxu0 0.0
          %832 = vmatpush1.msra.mxu0 0.0
          %833 = vmatprep.subr.mxu0 0.0
          %834 = vmatpush1.msra.mxu0 0.0
          %835 = vmatprep.subr.mxu0 0.0
          %836 = vmatpush1.msra.mxu0 0.0
          %837 = vmatprep.subr.mxu0 0.0
          %838 = vmatpush1.msra.mxu0 0.0
          %839 = vmatprep.subr.mxu0 0.0
          %840 = vmatpush1.msra.mxu0 0.0
          %841 = vmatprep.subr.mxu0 0.0
          %842 = vmatpush1.msra.mxu0 0.0
          %843 = vmatprep.subr.mxu0 0.0
          %844 = vmatpush1.msra.mxu0 0.0
          %845 = vmatprep.subr.mxu0 0.0
          %846 = vmatpush1.msra.mxu0 0.0
          %847 = vmatprep.subr.mxu0 0.0
          %848 = vmatpush1.msra.mxu0 0.0
          %849 = vmatprep.subr.mxu0 0.0
          %850 = vmatpush1.msra.mxu0 0.0
          %851 = vmatprep.subr.mxu0 0.0
          %852 = vmatpush1.msra.mxu0 0.0
          %853 = vmatprep.subr.mxu0 0.0
          %854 = vmatpush1.msra.mxu0 0.0
          %855 = vmatprep.subr.mxu0 0.0
          %856 = vmatpush1.msra.mxu0 0.0
          %857 = vmatprep.mubr.f32.mxu0 0.0
          %858 = vmatmul.mubr.f32.gmra.mrb[0].mxu0 %v658
          %v859 = vpop.f32.mrb[0].mxu0
          %v860 = vadd.f32 %v791, %v859
          %v861 = vpop.f32.mrb[0].mxu0
          %862 = vmatprep.mubr.f32.mxu0 0.0
          %863 = vmatmul.mubr.f32.gmra.mrb[0].mxu0 %v659
          %v864 = vpop.f32.mrb[0].mxu0
          %v865 = vadd.f32 %v791, %v864
          %v866 = vpop.f32.mrb[0].mxu0
          %867 = vmatprep.mubr.f32.mxu0 0.0
          %868 = vmatmul.mubr.f32.gmra.mrb[0].mxu0 %v660
          %v869 = vpop.f32.mrb[0].mxu0
          %v870 = vadd.f32 %v791, %v869
          %v871 = vpop.f32.mrb[0].mxu0
          %872 = vmatprep.mubr.f32.mxu0 0.0
          %873 = vmatmul.mubr.f32.gmra.mrb[0].mxu0 %v661
          %v874 = vpop.f32.mrb[0].mxu0
          %v875 = vadd.f32 %v791, %v874
          %v876 = vpop.f32.mrb[0].mxu0
          %877 = vmatprep.mubr.f32.mxu0 0.0
          %878 = vmatmul.mubr.f32.gmra.mrb[0].mxu0 %v662
          %v879 = vpop.f32.mrb[0].mxu0
          %v880 = vadd.f32 %v791, %v879
          %v881 = vpop.f32.mrb[0].mxu0
          %882 = vmatprep.mubr.f32.mxu0 0.0
          %883 = vmatmul.mubr.f32.gmra.mrb[0].mxu0 %v663
          %v884 = vpop.f32.mrb[0].mxu0
          %v885 = vadd.f32 %v791, %v884
          %v886 = vpop.f32.mrb[0].mxu0
          %887 = vmatprep.mubr.f32.mxu0 0.0
          %888 = vmatmul.mubr.f32.gmra.mrb[0].mxu0 %v664
          %v889 = vpop.f32.mrb[0].mxu0
          %v890 = vadd.f32 %v791, %v889
          %v891 = vpop.f32.mrb[0].mxu0
          %892 = vmatprep.mubr.f32.mxu0 0.0
          %893 = vmatmul.mubr.f32.gmra.mrb[0].mxu0 %v665
          %v894 = vpop.f32.mrb[0].mxu0
          %v895 = vadd.f32 %v791, %v894
          %v896 = vpop.f32.mrb[0].mxu0
          %897 = vmatprep.mubr.f32.mxu0 0.0
          %898 = vmatmul.mubr.f32.gmra.mrb[0].mxu0 %v666
          %v899 = vpop.f32.mrb[0].mxu0
          %v900 = vadd.f32 %v791, %v899
          %v901 = vpop.f32.mrb[0].mxu0
          %902 = vmatprep.mubr.f32.mxu0 0.0
          %903 = vmatmul.mubr.f32.gmra.mrb[0].mxu0 %v667
          %v904 = vpop.f32.mrb[0].mxu0
          %v905 = vadd.f32 %v791, %v904
          %v906 = vpop.f32.mrb[0].mxu0
          %907 = vmatprep.mubr.f32.mxu0 0.0
          %908 = vmatmul.mubr.f32.gmra.mrb[0].mxu0 %v668
          %v909 = vpop.f32.mrb[0].mxu0
          %v910 = vadd.f32 %v791, %v909
          %v911 = vpop.f32.mrb[0].mxu0
          %912 = vmatprep.mubr.f32.mxu0 0.0
          %913 = vmatmul.mubr.f32.gmra.mrb[0].mxu0 %v669
          %v914 = vpop.f32.mrb[0].mxu0
          %v915 = vadd.f32 %v791, %v914
          %v916 = vpop.f32.mrb[0].mxu0
          %917 = vmatprep.mubr.f32.mxu0 0.0
          %918 = vmatmul.mubr.f32.gmra.mrb[0].mxu0 %v670
          %v919 = vpop.f32.mrb[0].mxu0
          %v920 = vadd.f32 %v791, %v919
          %v921 = vpop.f32.mrb[0].mxu0
          %922 = vmatprep.mubr.f32.mxu0 0.0
          %923 = vmatmul.mubr.f32.gmra.mrb[0].mxu0 %v671
          %v924 = vpop.f32.mrb[0].mxu0
          %v925 = vadd.f32 %v791, %v924
          %v926 = vpop.f32.mrb[0].mxu0
          %927 = vmatprep.mubr.f32.mxu0 0.0
          %928 = vmatmul.mubr.f32.gmra.mrb[0].mxu0 %v672
          %v929 = vpop.f32.mrb[0].mxu0
          %v930 = vadd.f32 %v791, %v929
          %v931 = vpop.f32.mrb[0].mxu0
          %932 = vmatprep.mubr.f32.mxu0 0.0
          %933 = vmatmul.mubr.f32.gmra.mrb[0].mxu0 %v673
          %v934 = vpop.f32.mrb[0].mxu0
          %v935 = vadd.f32 %v791, %v934
          %v936 = vpop.f32.mrb[0].mxu0
          %937 = vdwg.mxu0
          %v938 = vadd.f32 %v860, %v754
          %v939 = vadd.f32 %v865, %v755
          %v940 = vadd.f32 %v870, %v756
          %v941 = vadd.f32 %v875, %v757
          %v942 = vadd.f32 %v880, %v758
          %v943 = vadd.f32 %v885, %v759
          %v944 = vadd.f32 %v890, %v760
          %v945 = vadd.f32 %v895, %v761
          %v946 = vadd.f32 %v900, %v762
          %v947 = vadd.f32 %v905, %v763
          %v948 = vadd.f32 %v910, %v764
          %v949 = vadd.f32 %v915, %v765
          %v950 = vadd.f32 %v920, %v766
          %v951 = vadd.f32 %v925, %v767
          %v952 = vadd.f32 %v930, %v768
          %v953 = vadd.f32 %v935, %v769
          %vm954 = vcmp.ge.f32.partialorder %v938, 0.0
          %vm955 = vcmp.ge.f32.partialorder %v939, 0.0
          %vm956 = vcmp.ge.f32.partialorder %v940, 0.0
          %vm957 = vcmp.ge.f32.partialorder %v941, 0.0
          %vm958 = vcmp.ge.f32.partialorder %v942, 0.0
          %vm959 = vcmp.ge.f32.partialorder %v943, 0.0
          %vm960 = vcmp.ge.f32.partialorder %v944, 0.0
          %vm961 = vcmp.ge.f32.partialorder %v945, 0.0
          %vm962 = vcmp.ge.f32.partialorder %v946, 0.0
          %vm963 = vcmp.ge.f32.partialorder %v947, 0.0
          %vm964 = vcmp.ge.f32.partialorder %v948, 0.0
          %vm965 = vcmp.ge.f32.partialorder %v949, 0.0
          %vm966 = vcmp.ge.f32.partialorder %v950, 0.0
          %vm967 = vcmp.ge.f32.partialorder %v951, 0.0
          %vm968 = vcmp.ge.f32.partialorder %v952, 0.0
          %vm969 = vcmp.ge.f32.partialorder %v953, 0.0
          %v970 = vmul.f32 %v938, 0.01
          %v971 = vmul.f32 %v939, 0.01
          %v972 = vmul.f32 %v940, 0.01
          %v973 = vmul.f32 %v941, 0.01
          %v974 = vmul.f32 %v942, 0.01
          %v975 = vmul.f32 %v943, 0.01
          %v976 = vmul.f32 %v944, 0.01
          %v977 = vmul.f32 %v945, 0.01
          %v978 = vmul.f32 %v946, 0.01
          %v979 = vmul.f32 %v947, 0.01
          %v980 = vmul.f32 %v948, 0.01
          %v981 = vmul.f32 %v949, 0.01
          %v982 = vmul.f32 %v950, 0.01
          %v983 = vmul.f32 %v951, 0.01
          %v984 = vmul.f32 %v952, 0.01
          %v985 = vmul.f32 %v953, 0.01
          %v986 = vsel %vm954, %v938, %v970
          %v987 = vsel %vm955, %v939, %v971
          %v988 = vsel %vm956, %v940, %v972
          %v989 = vsel %vm957, %v941, %v973
          %v990 = vsel %vm958, %v942, %v974
          %v991 = vsel %vm959, %v943, %v975
          %v992 = vsel %vm960, %v944, %v976
          %v993 = vsel %vm961, %v945, %v977
          %v994 = vsel %vm962, %v946, %v978
          %v995 = vsel %vm963, %v947, %v979
          %v996 = vsel %vm964, %v948, %v980
          %v997 = vsel %vm965, %v949, %v981
          %v998 = vsel %vm966, %v950, %v982
          %v999 = vsel %vm967, %v951, %v983
          %v1000 = vsel %vm968, %v952, %v984
          %v1001 = vsel %vm969, %v953, %v985
          %1002 = vst [vmem:[%s344] sm:$0xff] %v986
          %1003 = vst [vmem:[%s344 + $0x8] sm:$0xff] %v987
          %1004 = vst [vmem:[%s344 + $0x10] sm:$0xff] %v988
          %1005 = vst [vmem:[%s344 + $0x18] sm:$0xff] %v989
          %1006 = vst [vmem:[%s344 + $0x20] sm:$0xff] %v990
          %1007 = vst [vmem:[%s344 + $0x28] sm:$0xff] %v991
          %1008 = vst [vmem:[%s344 + $0x30] sm:$0xff] %v992
          %1009 = vst [vmem:[%s344 + $0x38] sm:$0xff] %v993
          %1010 = vst [vmem:[%s344 + $0x40] sm:$0xff] %v994
          %1011 = vst [vmem:[%s344 + $0x48] sm:$0xff] %v995
          %1012 = vst [vmem:[%s344 + $0x50] sm:$0xff] %v996
          %1013 = vst [vmem:[%s344 + $0x58] sm:$0xff] %v997
          %1014 = vst [vmem:[%s344 + $0x60] sm:$0xff] %v998
          %1015 = vst [vmem:[%s344 + $0x68] sm:$0xff] %v999
          %1016 = vst [vmem:[%s344 + $0x70] sm:$0xff] %v1000
          %1017 = vst [vmem:[%s344 + $0x78] sm:$0xff] %v1001
        $region90: #{gcn_forward.9} parent=77 // pred_fallthru
          _
        %s1018 = sand.u32 %s183, 1
        %s1019 = scalar_lea.sflag [#allocation5], %s1018
        %s1020 = sand.u32 %s183, 1
        %s1021 = smul.addr %s1020, 128
        %s1022 = scalar_lea.vmem [#allocation4], %s1021
        // Predicated region
        $region91: #{gcn_forward.9} parent=77 // pred_check
          %p1023 = pneg %p193
        $region92: #{gcn_forward.9} parent=77 // pred_check_branch
          %1025 = sbr.rel (%p1023) target = $region94
        $region93: #{gcn_forward.9} parent=77 // pred_region
          %s1026 = smul.u32 16, %s24
          %s1028 = ssub.s32 2048, 2048
          %1029 = vsyncadd %s1019, %s1028
          %s1030 = smul.addr %s1026, 128
          %s1031 = scalar_lea.hbm %s6, %s1030
          %s1032 = sshll.u32 %s1022, 4
          %s1033 = int_to_ptr.vmem [resolvable:$true] %s1032
          %1038 = dma.vmem_to_hbm [thread:$0]  %s1033, 2048, %s1031, %s1019, 128, 128, 8
        $region94: #{gcn_forward.9} parent=77 // pred_fallthru
          _
      $region78: #{gcn_forward.9} parent=5 // pred_fallthru
        _
      %p1039 = scmp.le.s32.totalorder 2, %s15
      // Predicated region
      $region95: #{gcn_forward.9} parent=5 // pred_check
        %p1040 = pneg %p1039
      $region96: #{gcn_forward.9} parent=5 // pred_check_branch
        %1042 = sbr.rel (%p1040) target = $region98
      $region97: #{gcn_forward.9} parent=5 // pred_region
        %s1043 = ssub.s32 %s15, 2
        // Predicated region
        $region99: #{gcn_forward.9} parent=97 // pred_check
          %p1044 = pneg %p199
        $region100: #{gcn_forward.9} parent=97 // pred_check_branch
          %1046 = sbr.rel (%p1044) target = $region102
        $region101: #{gcn_forward.9} parent=97 // pred_region
          %s1047 = sand.u32 %s184, 1
          %s1048 = scalar_lea.sflag [#allocation5], %s1047
          %s1049 = sand.u32 %s184, 1
          %s1050 = smul.addr %s1049, 128
          %s1051 = scalar_lea.vmem [#allocation4], %s1050
          %1052 = dma.done %s1048, 2048
        $region102: #{gcn_forward.9} parent=97 // pred_fallthru
          _
      $region98: #{gcn_forward.9} parent=5 // pred_fallthru
        _
    $region6: #{gcn_forward.9} parent=1 // loop_footer
      %s19 = sadd.s32 1, %s15
    $region7: #{gcn_forward.9} parent=1 // loop_footer_branch
      %14 = sbr.rel target = $region3
    $region8: #{gcn_forward.9} parent=1 // loop_exit
      _
    %1053 = vsyncpa [#allocation5], 1
    %s1054 = scalar_lea.sflag [#allocation5], 1
    %1055 = vsyncpa %s1054, 1

</llo_original>
